<compile_context>
chip_gen: v7x
topology: tpu7x:2x2x1
jax: 0.10.0
libtpu: 0.0.40
codegen_flags: <defaults>
</compile_context>

<pallas_src>
import functools
import math

import jax
import jax.numpy as jnp
from jax import lax
from jax.experimental import pallas as pl
from jax.experimental.pallas import tpu as pltpu

# ---- static config (the "args" of the PyTorch module) -----------------------
ENC_NUM_UNIT = 32          # args.enc_num_unit
ENC_NUM_LAYER = 2          # args.enc_num_layer
CODE_RATE_N = 2            # args.code_rate_n
CODE_RATE_K = 1            # args.code_rate_k
C_OUT = CODE_RATE_N // CODE_RATE_K
GATE_PITCH = 128           # each GRU gate occupies its own 128-lane segment
# TODO(synk): STEQuantize ('block_norm_ste') and precompute_norm_stats stateful
# running averages are training/statefulness details not implemented here.


def enc_kernel(*refs, L, B, H, GP, num_layers, c_out, n_valid):
    """Stacked GRU -> Linear -> ELU -> block power normalization.

    Layout: batch on sublanes (B already padded to a multiple of 8 by the
    wrapper); the 3 GRU gates each occupy their own GP(=128)-lane segment so
    all per-step gate slices are tile-aligned.

    inputs (refs):
      [0] x_ref    (L*B, 1)   time-major input (batch padded)
      [1] mask_ref (L*B, 1)   1.0 for real batch rows, 0.0 for padding
      per layer l (base 2+4l): WihP (Din, 3*GP), WhhP (H, 3*GP),
                               bihP (1, 3*GP),   bhhP (1, 3*GP)
                               (gate order along the segments is [r | z | n])
      [-2], [-1]  Wlin (H, c_out), blin (1, c_out)
    output:       out_ref (L*B, c_out)
    scratch:      xi_ref (L*B, 3*GP)  hoisted input projections
                  y_ref  (L*B, H)     current layer's output sequence
    """
    n_in = 2 + num_layers * 4 + 2
    x_ref, mask_ref = refs[0], refs[1]
    wlin_ref, blin_ref = refs[n_in - 2], refs[n_in - 1]
    out_ref = refs[n_in]
    xi_ref, y_ref = refs[n_in + 1], refs[n_in + 2]

    def recurrence(whh_ref, bhh_ref):
        # Hoist weight/bias reads out of the loop; h is carried in registers.
        whh = whh_ref[...]                                   # (H, 3*GP), K = 32
        bhh = bhh_ref[...]                                   # (1, 3*GP)
        # TODO(synk): weight-stationary MXU driving (pltpu.matmul_push_rhs /
        # matmul_acc_lhs) would avoid re-pushing whh each step; jnp.dot kept
        # for portability/robustness.

        def step(t, h):
            off = pl.multiple_of(t * B, 8)                   # aligned sublane group
            xi_t = xi_ref[pl.ds(off, B), :]                  # (B, 3*GP)
            gh = jnp.dot(h, whh,
                         preferred_element_type=jnp.float32) + bhh  # (B, 3*GP)
            # All slices below start on a 128-lane tile boundary (or at lane 0
            # inside a tile), so no lane realignment is generated.
            rz = jax.nn.sigmoid(xi_t[:, :2 * GP] + gh[:, :2 * GP])
            r = rz[:, :H]
            z = rz[:, GP:GP + H]
            n = jnp.tanh(xi_t[:, 2 * GP:2 * GP + H]
                         + r * gh[:, 2 * GP:2 * GP + H])     # b_hn stays inside r*( )
            h_new = n + z * (h - n)                          # == (1-z)*n + z*h
            y_ref[pl.ds(off, B), :] = h_new                  # aligned store
            return h_new

        lax.fori_loop(0, L, step, jnp.zeros((B, H), jnp.float32),
                      unroll=min(L, 8))

    # ---- layer 0: Din == 1 -> input projection is a broadcast multiply (VPU) --
    wih0 = refs[2][...]                                      # (1, 3*GP)
    bih0 = refs[4][...]                                      # (1, 3*GP)
    xi_ref[...] = x_ref[...] * wih0 + bih0                   # (L*B, 3*GP)
    recurrence(refs[3], refs[5])

    # ---- layers 1.. : one hoisted (L*B, H) @ (H, 3*GP) matmul per layer -------
    for layer in range(1, num_layers):
        base = 2 + 4 * layer
        wih_ref, whh_ref, bih_ref, bhh_ref = refs[base:base + 4]
        xi_ref[...] = jnp.dot(y_ref[...], wih_ref[...],
                              preferred_element_type=jnp.float32) + bih_ref[...]
        recurrence(whh_ref, bhh_ref)

    # ---- head: Linear + ELU + power_constraint ('block_norm') ----------------
    code = jnp.dot(y_ref[...], wlin_ref[...],
                   preferred_element_type=jnp.float32) + blin_ref[...]
    # ELU(alpha=1); clamp the exp argument so the unselected branch can't inf.
    code = jnp.where(code > 0, code, jnp.exp(jnp.minimum(code, 0.0)) - 1.0)
    # Mean / unbiased std over the REAL elements only (padded rows masked out).
    m = mask_ref[...]                                        # (L*B, 1)
    mean = jnp.sum(code * m) / n_valid
    centered = code - mean
    var = jnp.sum(centered * centered * m) / max(n_valid - 1, 1)  # torch.std (unbiased)
    inv_std = lax.rsqrt(var)                                 # EUP, no vector divide
    out_ref[...] = centered * inv_std


def _pad_gate_segments(w, hidden, gate_pitch):
    """(.., 3*hidden) -> (.., 3*gate_pitch): each gate in its own lane segment."""
    r, z, n = jnp.split(w, 3, axis=-1)
    pad = [(0, 0)] * (w.ndim - 1) + [(0, gate_pitch - hidden)]
    return jnp.concatenate([jnp.pad(g, pad) for g in (r, z, n)], axis=-1)


def init_params(key, hidden, num_layers, c_out):
    """Packed parameters, PyTorch-RNN-style uniform init.

    Per layer: Wih (Din, 3H), Whh (H, 3H), bih (1, 3H), bhh (1, 3H), where the
    3H axis is the [r | z | n] gate concat (i.e. PyTorch weight_ih_l{k}.T etc.).
    Then Wlin (H, c_out), blin (1, c_out).
    """
    params = []
    bound = 1.0 / math.sqrt(float(hidden))
    for layer in range(num_layers):
        d_in = 1 if layer == 0 else hidden
        for shape in [(d_in, 3 * hidden), (hidden, 3 * hidden),
                      (1, 3 * hidden), (1, 3 * hidden)]:
            key, sub = jax.random.split(key)
            params.append(jax.random.uniform(sub, shape, jnp.float32,
                                             -bound, bound))
    for shape in [(hidden, c_out), (1, c_out)]:
        key, sub = jax.random.split(key)
        params.append(jax.random.uniform(sub, shape, jnp.float32,
                                         -bound, bound))
    return params


@jax.jit
def enc_forward(x, *params):
    """x: (B, L, 1) batch-first float32 -> codes (B, L, C_OUT)."""
    B, L, _ = x.shape
    H, GP = ENC_NUM_UNIT, GATE_PITCH
    Bp = ((B + 7) // 8) * 8                                  # sublane-group pad

    x_tm = jnp.transpose(x, (1, 0, 2)).astype(jnp.float32)   # (L, B, 1)
    if Bp != B:
        x_tm = jnp.pad(x_tm, ((0, 0), (0, Bp - B), (0, 0)))
    x2d = x_tm.reshape(L * Bp, 1)

    mask = (jnp.arange(Bp) < B).astype(jnp.float32)          # (Bp,)
    mask2d = jnp.tile(mask, (L,)).reshape(L * Bp, 1)

    packed = []
    for layer in range(ENC_NUM_LAYER):
        wih, whh, bih, bhh = params[4 * layer:4 * layer + 4]
        packed += [_pad_gate_segments(p, H, GP) for p in (wih, whh, bih, bhh)]
    wlin, blin = params[-2], params[-1]
    inputs = (x2d, mask2d, *packed, wlin, blin)

    kernel = functools.partial(
        enc_kernel, L=L, B=Bp, H=H, GP=GP,
        num_layers=ENC_NUM_LAYER, c_out=C_OUT, n_valid=L * B * C_OUT)

    # Advisory cost estimate (per-step recurrence + hoisted projections + head).
    mm_flops = (ENC_NUM_LAYER * L * 2 * Bp * H * 3 * GP          # h @ Whh per step
                + (ENC_NUM_LAYER - 1) * 2 * L * Bp * H * 3 * GP  # hoisted x-proj
                + 2 * L * Bp * H * C_OUT)                        # head
    flops = int(mm_flops + 12 * ENC_NUM_LAYER * L * Bp * 3 * GP)
    transcendentals = int(ENC_NUM_LAYER * L * Bp * (2 * GP + H) + L * Bp * C_OUT)
    bytes_accessed = int(4 * (sum(a.size for a in inputs) + L * Bp * C_OUT))

    out2d = pl.pallas_call(
        kernel,
        out_shape=jax.ShapeDtypeStruct((L * Bp, C_OUT), jnp.float32),
        in_specs=[pl.BlockSpec(memory_space=pltpu.MemorySpace.VMEM)] * len(inputs),
        out_specs=pl.BlockSpec(memory_space=pltpu.MemorySpace.VMEM),
        scratch_shapes=[
            pltpu.VMEM((L * Bp, 3 * GP), jnp.float32),  # hoisted x-proj Xi
            pltpu.VMEM((L * Bp, H), jnp.float32),       # layer output y
        ],
        compiler_params=pltpu.CompilerParams(
            vmem_limit_bytes=48 * 1024 * 1024),
        cost_estimate=pl.CostEstimate(flops=flops,
                                      transcendentals=transcendentals,
                                      bytes_accessed=bytes_accessed),
    )(*inputs)

    out = out2d.reshape(L, Bp, C_OUT)[:, :B, :]              # drop batch padding
    return jnp.transpose(out, (1, 0, 2))                     # (B, L, C_OUT)


if __name__ == "__main__":
    key = jax.random.PRNGKey(0)
    k_x, k_p = jax.random.split(key)

    B, L = 2, 8
    # turbo-code style binary message bits as float input, shape (B, L, 1)
    x = jax.random.bernoulli(k_x, 0.5, (B, L, 1)).astype(jnp.float32)

    params = init_params(k_p, ENC_NUM_UNIT, ENC_NUM_LAYER, C_OUT)

    codes = enc_forward(x, *params)
    jax.block_until_ready(codes)

    assert codes.shape == (B, L, C_OUT)
    assert codes.dtype == jnp.float32
    assert bool(jnp.isfinite(codes).all())
    print("KERNEL_OK")
</pallas_src>

<mosaic_0001>
module attributes {stable_mosaic.version = 11 : i64} {
  func.func @enc_kernel(%arg0: memref<64x1xf32, #tpu.memory_space<vmem>>, %arg1: memref<64x1xf32, #tpu.memory_space<vmem>>, %arg2: memref<1x384xf32, #tpu.memory_space<vmem>>, %arg3: memref<32x384xf32, #tpu.memory_space<vmem>>, %arg4: memref<1x384xf32, #tpu.memory_space<vmem>>, %arg5: memref<1x384xf32, #tpu.memory_space<vmem>>, %arg6: memref<32x384xf32, #tpu.memory_space<vmem>>, %arg7: memref<32x384xf32, #tpu.memory_space<vmem>>, %arg8: memref<1x384xf32, #tpu.memory_space<vmem>>, %arg9: memref<1x384xf32, #tpu.memory_space<vmem>>, %arg10: memref<32x2xf32, #tpu.memory_space<vmem>>, %arg11: memref<1x2xf32, #tpu.memory_space<vmem>>, %arg12: memref<64x2xf32, #tpu.memory_space<vmem>>, %arg13: memref<64x384xf32, #tpu.memory_space<vmem>>, %arg14: memref<64x32xf32, #tpu.memory_space<vmem>>) attributes {dimension_semantics = [], scalar_prefetch = 0 : i64, scratch_operands = 2 : i64, tpu.core_type = #tpu.core_type<tc>} {
    %c0 = arith.constant 0 : index
    %c0_0 = arith.constant 0 : index
    %0 = vector.load %arg2[%c0, %c0_0] : memref<1x384xf32, #tpu.memory_space<vmem>>, vector<1x384xf32>
    %c0_1 = arith.constant 0 : index
    %c0_2 = arith.constant 0 : index
    %1 = vector.load %arg4[%c0_1, %c0_2] : memref<1x384xf32, #tpu.memory_space<vmem>>, vector<1x384xf32>
    %c0_3 = arith.constant 0 : index
    %c0_4 = arith.constant 0 : index
    %2 = vector.load %arg0[%c0_3, %c0_4] : memref<64x1xf32, #tpu.memory_space<vmem>>, vector<64x1xf32>
    %3 = vector.broadcast %2 : vector<64x1xf32> to vector<64x384xf32>
    %4 = vector.broadcast %0 : vector<1x384xf32> to vector<64x384xf32>
    %5 = arith.mulf %3, %4 : vector<64x384xf32>
    %6 = vector.broadcast %1 : vector<1x384xf32> to vector<64x384xf32>
    %7 = arith.addf %5, %6 : vector<64x384xf32>
    %c0_5 = arith.constant 0 : index
    %c0_6 = arith.constant 0 : index
    %8 = vector.load %arg13[%c0_5, %c0_6] : memref<64x384xf32, #tpu.memory_space<vmem>>, vector<64x384xf32>
    tpu.vector_store %arg13[%c0_5, %c0_6], %7 {strides = array<i32>} : memref<64x384xf32, #tpu.memory_space<vmem>>, vector<64x384xf32>,
    %c0_7 = arith.constant 0 : index
    %c0_8 = arith.constant 0 : index
    %9 = vector.load %arg3[%c0_7, %c0_8] : memref<32x384xf32, #tpu.memory_space<vmem>>, vector<32x384xf32>
    %c0_9 = arith.constant 0 : index
    %c0_10 = arith.constant 0 : index
    %10 = vector.load %arg5[%c0_9, %c0_10] : memref<1x384xf32, #tpu.memory_space<vmem>>, vector<1x384xf32>
    %cst = arith.constant 0.000000e+00 : f32
    %11 = vector.broadcast %cst : f32 to vector<8x32xf32>
    %c0_i32 = arith.constant 0 : i32
    %c8_i32 = arith.constant 8 : i32
    %12 = arith.muli %c0_i32, %c8_i32 : i32
    %13 = tpu.assume_multiple %12, 8 : i32
    %14 = arith.index_cast %13 : i32 to index
    %c0_11 = arith.constant 0 : index
    %15 = vector.load %arg13[%14, %c0_11] : memref<64x384xf32, #tpu.memory_space<vmem>>, vector<8x384xf32>
    %cst_12 = arith.constant dense<0.000000e+00> : vector<8x384xf32>
    %16 = tpu.matmul %11, %9, %cst_12 {dimension_numbers = #tpu.dot_dimension_numbers<[1], [0], [0], [1], [0, 0, 1, 1], [], []>} : vector<8x32xf32>, vector<32x384xf32>, vector<8x384xf32> -> vector<8x384xf32>
    %17 = vector.broadcast %10 : vector<1x384xf32> to vector<8x384xf32>
    %18 = arith.addf %16, %17 : vector<8x384xf32>
    %19 = vector.extract_strided_slice %15 {offsets = [0, 0], sizes = [8, 256], strides = [1, 1]} : vector<8x384xf32> to vector<8x256xf32>
    %20 = vector.extract_strided_slice %18 {offsets = [0, 0], sizes = [8, 256], strides = [1, 1]} : vector<8x384xf32> to vector<8x256xf32>
    %21 = arith.addf %19, %20 : vector<8x256xf32>
    %22 = arith.negf %21 : vector<8x256xf32>
    %23 = math.exp %22 : vector<8x256xf32>
    %cst_13 = arith.constant 1.000000e+00 : f32
    %24 = vector.broadcast %cst_13 : f32 to vector<8x256xf32>
    %25 = arith.addf %24, %23 : vector<8x256xf32>
    %26 = arith.divf %24, %25 : vector<8x256xf32>
    %27 = vector.extract_strided_slice %26 {offsets = [0, 0], sizes = [8, 32], strides = [1, 1]} : vector<8x256xf32> to vector<8x32xf32>
    %28 = vector.extract_strided_slice %26 {offsets = [0, 128], sizes = [8, 32], strides = [1, 1]} : vector<8x256xf32> to vector<8x32xf32>
    %29 = vector.extract_strided_slice %15 {offsets = [0, 256], sizes = [8, 32], strides = [1, 1]} : vector<8x384xf32> to vector<8x32xf32>
    %30 = vector.extract_strided_slice %18 {offsets = [0, 256], sizes = [8, 32], strides = [1, 1]} : vector<8x384xf32> to vector<8x32xf32>
    %31 = arith.mulf %27, %30 : vector<8x32xf32>
    %32 = arith.addf %29, %31 : vector<8x32xf32>
    %33 = math.tanh %32 : vector<8x32xf32>
    %34 = arith.subf %11, %33 : vector<8x32xf32>
    %35 = arith.mulf %28, %34 : vector<8x32xf32>
    %36 = arith.addf %33, %35 : vector<8x32xf32>
    %37 = arith.index_cast %13 : i32 to index
    %c0_14 = arith.constant 0 : index
    %38 = vector.load %arg14[%37, %c0_14] : memref<64x32xf32, #tpu.memory_space<vmem>>, vector<8x32xf32>
    tpu.vector_store %arg14[%37, %c0_14], %36 {strides = array<i32>} : memref<64x32xf32, #tpu.memory_space<vmem>>, vector<8x32xf32>,
    %c1_i32 = arith.constant 1 : i32
    %c8_i32_15 = arith.constant 8 : i32
    %39 = arith.muli %c1_i32, %c8_i32_15 : i32
    %40 = tpu.assume_multiple %39, 8 : i32
    %41 = arith.index_cast %40 : i32 to index
    %c0_16 = arith.constant 0 : index
    %42 = vector.load %arg13[%41, %c0_16] : memref<64x384xf32, #tpu.memory_space<vmem>>, vector<8x384xf32>
    %cst_17 = arith.constant dense<0.000000e+00> : vector<8x384xf32>
    %43 = tpu.matmul %36, %9, %cst_17 {dimension_numbers = #tpu.dot_dimension_numbers<[1], [0], [0], [1], [0, 0, 1, 1], [], []>} : vector<8x32xf32>, vector<32x384xf32>, vector<8x384xf32> -> vector<8x384xf32>
    %44 = vector.broadcast %10 : vector<1x384xf32> to vector<8x384xf32>
    %45 = arith.addf %43, %44 : vector<8x384xf32>
    %46 = vector.extract_strided_slice %42 {offsets = [0, 0], sizes = [8, 256], strides = [1, 1]} : vector<8x384xf32> to vector<8x256xf32>
    %47 = vector.extract_strided_slice %45 {offsets = [0, 0], sizes = [8, 256], strides = [1, 1]} : vector<8x384xf32> to vector<8x256xf32>
    %48 = arith.addf %46, %47 : vector<8x256xf32>
    %49 = arith.negf %48 : vector<8x256xf32>
    %50 = math.exp %49 : vector<8x256xf32>
    %cst_18 = arith.constant 1.000000e+00 : f32
    %51 = vector.broadcast %cst_18 : f32 to vector<8x256xf32>
    %52 = arith.addf %51, %50 : vector<8x256xf32>
    %53 = arith.divf %51, %52 : vector<8x256xf32>
    %54 = vector.extract_strided_slice %53 {offsets = [0, 0], sizes = [8, 32], strides = [1, 1]} : vector<8x256xf32> to vector<8x32xf32>
    %55 = vector.extract_strided_slice %53 {offsets = [0, 128], sizes = [8, 32], strides = [1, 1]} : vector<8x256xf32> to vector<8x32xf32>
    %56 = vector.extract_strided_slice %42 {offsets = [0, 256], sizes = [8, 32], strides = [1, 1]} : vector<8x384xf32> to vector<8x32xf32>
    %57 = vector.extract_strided_slice %45 {offsets = [0, 256], sizes = [8, 32], strides = [1, 1]} : vector<8x384xf32> to vector<8x32xf32>
    %58 = arith.mulf %54, %57 : vector<8x32xf32>
    %59 = arith.addf %56, %58 : vector<8x32xf32>
    %60 = math.tanh %59 : vector<8x32xf32>
    %61 = arith.subf %36, %60 : vector<8x32xf32>
    %62 = arith.mulf %55, %61 : vector<8x32xf32>
    %63 = arith.addf %60, %62 : vector<8x32xf32>
    %64 = arith.index_cast %40 : i32 to index
    %c0_19 = arith.constant 0 : index
    %65 = vector.load %arg14[%64, %c0_19] : memref<64x32xf32, #tpu.memory_space<vmem>>, vector<8x32xf32>
    tpu.vector_store %arg14[%64, %c0_19], %63 {strides = array<i32>} : memref<64x32xf32, #tpu.memory_space<vmem>>, vector<8x32xf32>,
    %c2_i32 = arith.constant 2 : i32
    %c8_i32_20 = arith.constant 8 : i32
    %66 = arith.muli %c2_i32, %c8_i32_20 : i32
    %67 = tpu.assume_multiple %66, 8 : i32
    %68 = arith.index_cast %67 : i32 to index
    %c0_21 = arith.constant 0 : index
    %69 = vector.load %arg13[%68, %c0_21] : memref<64x384xf32, #tpu.memory_space<vmem>>, vector<8x384xf32>
    %cst_22 = arith.constant dense<0.000000e+00> : vector<8x384xf32>
    %70 = tpu.matmul %63, %9, %cst_22 {dimension_numbers = #tpu.dot_dimension_numbers<[1], [0], [0], [1], [0, 0, 1, 1], [], []>} : vector<8x32xf32>, vector<32x384xf32>, vector<8x384xf32> -> vector<8x384xf32>
    %71 = vector.broadcast %10 : vector<1x384xf32> to vector<8x384xf32>
    %72 = arith.addf %70, %71 : vector<8x384xf32>
    %73 = vector.extract_strided_slice %69 {offsets = [0, 0], sizes = [8, 256], strides = [1, 1]} : vector<8x384xf32> to vector<8x256xf32>
    %74 = vector.extract_strided_slice %72 {offsets = [0, 0], sizes = [8, 256], strides = [1, 1]} : vector<8x384xf32> to vector<8x256xf32>
    %75 = arith.addf %73, %74 : vector<8x256xf32>
    %76 = arith.negf %75 : vector<8x256xf32>
    %77 = math.exp %76 : vector<8x256xf32>
    %cst_23 = arith.constant 1.000000e+00 : f32
    %78 = vector.broadcast %cst_23 : f32 to vector<8x256xf32>
    %79 = arith.addf %78, %77 : vector<8x256xf32>
    %80 = arith.divf %78, %79 : vector<8x256xf32>
    %81 = vector.extract_strided_slice %80 {offsets = [0, 0], sizes = [8, 32], strides = [1, 1]} : vector<8x256xf32> to vector<8x32xf32>
    %82 = vector.extract_strided_slice %80 {offsets = [0, 128], sizes = [8, 32], strides = [1, 1]} : vector<8x256xf32> to vector<8x32xf32>
    %83 = vector.extract_strided_slice %69 {offsets = [0, 256], sizes = [8, 32], strides = [1, 1]} : vector<8x384xf32> to vector<8x32xf32>
    %84 = vector.extract_strided_slice %72 {offsets = [0, 256], sizes = [8, 32], strides = [1, 1]} : vector<8x384xf32> to vector<8x32xf32>
    %85 = arith.mulf %81, %84 : vector<8x32xf32>
    %86 = arith.addf %83, %85 : vector<8x32xf32>
    %87 = math.tanh %86 : vector<8x32xf32>
    %88 = arith.subf %63, %87 : vector<8x32xf32>
    %89 = arith.mulf %82, %88 : vector<8x32xf32>
    %90 = arith.addf %87, %89 : vector<8x32xf32>
    %91 = arith.index_cast %67 : i32 to index
    %c0_24 = arith.constant 0 : index
    %92 = vector.load %arg14[%91, %c0_24] : memref<64x32xf32, #tpu.memory_space<vmem>>, vector<8x32xf32>
    tpu.vector_store %arg14[%91, %c0_24], %90 {strides = array<i32>} : memref<64x32xf32, #tpu.memory_space<vmem>>, vector<8x32xf32>,
    %c3_i32 = arith.constant 3 : i32
    %c8_i32_25 = arith.constant 8 : i32
    %93 = arith.muli %c3_i32, %c8_i32_25 : i32
    %94 = tpu.assume_multiple %93, 8 : i32
    %95 = arith.index_cast %94 : i32 to index
    %c0_26 = arith.constant 0 : index
    %96 = vector.load %arg13[%95, %c0_26] : memref<64x384xf32, #tpu.memory_space<vmem>>, vector<8x384xf32>
    %cst_27 = arith.constant dense<0.000000e+00> : vector<8x384xf32>
    %97 = tpu.matmul %90, %9, %cst_27 {dimension_numbers = #tpu.dot_dimension_numbers<[1], [0], [0], [1], [0, 0, 1, 1], [], []>} : vector<8x32xf32>, vector<32x384xf32>, vector<8x384xf32> -> vector<8x384xf32>
    %98 = vector.broadcast %10 : vector<1x384xf32> to vector<8x384xf32>
    %99 = arith.addf %97, %98 : vector<8x384xf32>
    %100 = vector.extract_strided_slice %96 {offsets = [0, 0], sizes = [8, 256], strides = [1, 1]} : vector<8x384xf32> to vector<8x256xf32>
    %101 = vector.extract_strided_slice %99 {offsets = [0, 0], sizes = [8, 256], strides = [1, 1]} : vector<8x384xf32> to vector<8x256xf32>
    %102 = arith.addf %100, %101 : vector<8x256xf32>
    %103 = arith.negf %102 : vector<8x256xf32>
    %104 = math.exp %103 : vector<8x256xf32>
    %cst_28 = arith.constant 1.000000e+00 : f32
    %105 = vector.broadcast %cst_28 : f32 to vector<8x256xf32>
    %106 = arith.addf %105, %104 : vector<8x256xf32>
    %107 = arith.divf %105, %106 : vector<8x256xf32>
    %108 = vector.extract_strided_slice %107 {offsets = [0, 0], sizes = [8, 32], strides = [1, 1]} : vector<8x256xf32> to vector<8x32xf32>
    %109 = vector.extract_strided_slice %107 {offsets = [0, 128], sizes = [8, 32], strides = [1, 1]} : vector<8x256xf32> to vector<8x32xf32>
    %110 = vector.extract_strided_slice %96 {offsets = [0, 256], sizes = [8, 32], strides = [1, 1]} : vector<8x384xf32> to vector<8x32xf32>
    %111 = vector.extract_strided_slice %99 {offsets = [0, 256], sizes = [8, 32], strides = [1, 1]} : vector<8x384xf32> to vector<8x32xf32>
    %112 = arith.mulf %108, %111 : vector<8x32xf32>
    %113 = arith.addf %110, %112 : vector<8x32xf32>
    %114 = math.tanh %113 : vector<8x32xf32>
    %115 = arith.subf %90, %114 : vector<8x32xf32>
    %116 = arith.mulf %109, %115 : vector<8x32xf32>
    %117 = arith.addf %114, %116 : vector<8x32xf32>
    %118 = arith.index_cast %94 : i32 to index
    %c0_29 = arith.constant 0 : index
    %119 = vector.load %arg14[%118, %c0_29] : memref<64x32xf32, #tpu.memory_space<vmem>>, vector<8x32xf32>
    tpu.vector_store %arg14[%118, %c0_29], %117 {strides = array<i32>} : memref<64x32xf32, #tpu.memory_space<vmem>>, vector<8x32xf32>,
    %c4_i32 = arith.constant 4 : i32
    %c8_i32_30 = arith.constant 8 : i32
    %120 = arith.muli %c4_i32, %c8_i32_30 : i32
    %121 = tpu.assume_multiple %120, 8 : i32
    %122 = arith.index_cast %121 : i32 to index
    %c0_31 = arith.constant 0 : index
    %123 = vector.load %arg13[%122, %c0_31] : memref<64x384xf32, #tpu.memory_space<vmem>>, vector<8x384xf32>
    %cst_32 = arith.constant dense<0.000000e+00> : vector<8x384xf32>
    %124 = tpu.matmul %117, %9, %cst_32 {dimension_numbers = #tpu.dot_dimension_numbers<[1], [0], [0], [1], [0, 0, 1, 1], [], []>} : vector<8x32xf32>, vector<32x384xf32>, vector<8x384xf32> -> vector<8x384xf32>
    %125 = vector.broadcast %10 : vector<1x384xf32> to vector<8x384xf32>
    %126 = arith.addf %124, %125 : vector<8x384xf32>
    %127 = vector.extract_strided_slice %123 {offsets = [0, 0], sizes = [8, 256], strides = [1, 1]} : vector<8x384xf32> to vector<8x256xf32>
    %128 = vector.extract_strided_slice %126 {offsets = [0, 0], sizes = [8, 256], strides = [1, 1]} : vector<8x384xf32> to vector<8x256xf32>
    %129 = arith.addf %127, %128 : vector<8x256xf32>
    %130 = arith.negf %129 : vector<8x256xf32>
    %131 = math.exp %130 : vector<8x256xf32>
    %cst_33 = arith.constant 1.000000e+00 : f32
    %132 = vector.broadcast %cst_33 : f32 to vector<8x256xf32>
    %133 = arith.addf %132, %131 : vector<8x256xf32>
    %134 = arith.divf %132, %133 : vector<8x256xf32>
    %135 = vector.extract_strided_slice %134 {offsets = [0, 0], sizes = [8, 32], strides = [1, 1]} : vector<8x256xf32> to vector<8x32xf32>
    %136 = vector.extract_strided_slice %134 {offsets = [0, 128], sizes = [8, 32], strides = [1, 1]} : vector<8x256xf32> to vector<8x32xf32>
    %137 = vector.extract_strided_slice %123 {offsets = [0, 256], sizes = [8, 32], strides = [1, 1]} : vector<8x384xf32> to vector<8x32xf32>
    %138 = vector.extract_strided_slice %126 {offsets = [0, 256], sizes = [8, 32], strides = [1, 1]} : vector<8x384xf32> to vector<8x32xf32>
    %139 = arith.mulf %135, %138 : vector<8x32xf32>
    %140 = arith.addf %137, %139 : vector<8x32xf32>
    %141 = math.tanh %140 : vector<8x32xf32>
    %142 = arith.subf %117, %141 : vector<8x32xf32>
    %143 = arith.mulf %136, %142 : vector<8x32xf32>
    %144 = arith.addf %141, %143 : vector<8x32xf32>
    %145 = arith.index_cast %121 : i32 to index
    %c0_34 = arith.constant 0 : index
    %146 = vector.load %arg14[%145, %c0_34] : memref<64x32xf32, #tpu.memory_space<vmem>>, vector<8x32xf32>
    tpu.vector_store %arg14[%145, %c0_34], %144 {strides = array<i32>} : memref<64x32xf32, #tpu.memory_space<vmem>>, vector<8x32xf32>,
    %c5_i32 = arith.constant 5 : i32
    %c8_i32_35 = arith.constant 8 : i32
    %147 = arith.muli %c5_i32, %c8_i32_35 : i32
    %148 = tpu.assume_multiple %147, 8 : i32
    %149 = arith.index_cast %148 : i32 to index
    %c0_36 = arith.constant 0 : index
    %150 = vector.load %arg13[%149, %c0_36] : memref<64x384xf32, #tpu.memory_space<vmem>>, vector<8x384xf32>
    %cst_37 = arith.constant dense<0.000000e+00> : vector<8x384xf32>
    %151 = tpu.matmul %144, %9, %cst_37 {dimension_numbers = #tpu.dot_dimension_numbers<[1], [0], [0], [1], [0, 0, 1, 1], [], []>} : vector<8x32xf32>, vector<32x384xf32>, vector<8x384xf32> -> vector<8x384xf32>
    %152 = vector.broadcast %10 : vector<1x384xf32> to vector<8x384xf32>
    %153 = arith.addf %151, %152 : vector<8x384xf32>
    %154 = vector.extract_strided_slice %150 {offsets = [0, 0], sizes = [8, 256], strides = [1, 1]} : vector<8x384xf32> to vector<8x256xf32>
    %155 = vector.extract_strided_slice %153 {offsets = [0, 0], sizes = [8, 256], strides = [1, 1]} : vector<8x384xf32> to vector<8x256xf32>
    %156 = arith.addf %154, %155 : vector<8x256xf32>
    %157 = arith.negf %156 : vector<8x256xf32>
    %158 = math.exp %157 : vector<8x256xf32>
    %cst_38 = arith.constant 1.000000e+00 : f32
    %159 = vector.broadcast %cst_38 : f32 to vector<8x256xf32>
    %160 = arith.addf %159, %158 : vector<8x256xf32>
    %161 = arith.divf %159, %160 : vector<8x256xf32>
    %162 = vector.extract_strided_slice %161 {offsets = [0, 0], sizes = [8, 32], strides = [1, 1]} : vector<8x256xf32> to vector<8x32xf32>
    %163 = vector.extract_strided_slice %161 {offsets = [0, 128], sizes = [8, 32], strides = [1, 1]} : vector<8x256xf32> to vector<8x32xf32>
    %164 = vector.extract_strided_slice %150 {offsets = [0, 256], sizes = [8, 32], strides = [1, 1]} : vector<8x384xf32> to vector<8x32xf32>
    %165 = vector.extract_strided_slice %153 {offsets = [0, 256], sizes = [8, 32], strides = [1, 1]} : vector<8x384xf32> to vector<8x32xf32>
    %166 = arith.mulf %162, %165 : vector<8x32xf32>
    %167 = arith.addf %164, %166 : vector<8x32xf32>
    %168 = math.tanh %167 : vector<8x32xf32>
    %169 = arith.subf %144, %168 : vector<8x32xf32>
    %170 = arith.mulf %163, %169 : vector<8x32xf32>
    %171 = arith.addf %168, %170 : vector<8x32xf32>
    %172 = arith.index_cast %148 : i32 to index
    %c0_39 = arith.constant 0 : index
    %173 = vector.load %arg14[%172, %c0_39] : memref<64x32xf32, #tpu.memory_space<vmem>>, vector<8x32xf32>
    tpu.vector_store %arg14[%172, %c0_39], %171 {strides = array<i32>} : memref<64x32xf32, #tpu.memory_space<vmem>>, vector<8x32xf32>,
    %c6_i32 = arith.constant 6 : i32
    %c8_i32_40 = arith.constant 8 : i32
    %174 = arith.muli %c6_i32, %c8_i32_40 : i32
    %175 = tpu.assume_multiple %174, 8 : i32
    %176 = arith.index_cast %175 : i32 to index
    %c0_41 = arith.constant 0 : index
    %177 = vector.load %arg13[%176, %c0_41] : memref<64x384xf32, #tpu.memory_space<vmem>>, vector<8x384xf32>
    %cst_42 = arith.constant dense<0.000000e+00> : vector<8x384xf32>
    %178 = tpu.matmul %171, %9, %cst_42 {dimension_numbers = #tpu.dot_dimension_numbers<[1], [0], [0], [1], [0, 0, 1, 1], [], []>} : vector<8x32xf32>, vector<32x384xf32>, vector<8x384xf32> -> vector<8x384xf32>
    %179 = vector.broadcast %10 : vector<1x384xf32> to vector<8x384xf32>
    %180 = arith.addf %178, %179 : vector<8x384xf32>
    %181 = vector.extract_strided_slice %177 {offsets = [0, 0], sizes = [8, 256], strides = [1, 1]} : vector<8x384xf32> to vector<8x256xf32>
    %182 = vector.extract_strided_slice %180 {offsets = [0, 0], sizes = [8, 256], strides = [1, 1]} : vector<8x384xf32> to vector<8x256xf32>
    %183 = arith.addf %181, %182 : vector<8x256xf32>
    %184 = arith.negf %183 : vector<8x256xf32>
    %185 = math.exp %184 : vector<8x256xf32>
    %cst_43 = arith.constant 1.000000e+00 : f32
    %186 = vector.broadcast %cst_43 : f32 to vector<8x256xf32>
    %187 = arith.addf %186, %185 : vector<8x256xf32>
    %188 = arith.divf %186, %187 : vector<8x256xf32>
    %189 = vector.extract_strided_slice %188 {offsets = [0, 0], sizes = [8, 32], strides = [1, 1]} : vector<8x256xf32> to vector<8x32xf32>
    %190 = vector.extract_strided_slice %188 {offsets = [0, 128], sizes = [8, 32], strides = [1, 1]} : vector<8x256xf32> to vector<8x32xf32>
    %191 = vector.extract_strided_slice %177 {offsets = [0, 256], sizes = [8, 32], strides = [1, 1]} : vector<8x384xf32> to vector<8x32xf32>
    %192 = vector.extract_strided_slice %180 {offsets = [0, 256], sizes = [8, 32], strides = [1, 1]} : vector<8x384xf32> to vector<8x32xf32>
    %193 = arith.mulf %189, %192 : vector<8x32xf32>
    %194 = arith.addf %191, %193 : vector<8x32xf32>
    %195 = math.tanh %194 : vector<8x32xf32>
    %196 = arith.subf %171, %195 : vector<8x32xf32>
    %197 = arith.mulf %190, %196 : vector<8x32xf32>
    %198 = arith.addf %195, %197 : vector<8x32xf32>
    %199 = arith.index_cast %175 : i32 to index
    %c0_44 = arith.constant 0 : index
    %200 = vector.load %arg14[%199, %c0_44] : memref<64x32xf32, #tpu.memory_space<vmem>>, vector<8x32xf32>
    tpu.vector_store %arg14[%199, %c0_44], %198 {strides = array<i32>} : memref<64x32xf32, #tpu.memory_space<vmem>>, vector<8x32xf32>,
    %c7_i32 = arith.constant 7 : i32
    %c8_i32_45 = arith.constant 8 : i32
    %201 = arith.muli %c7_i32, %c8_i32_45 : i32
    %202 = tpu.assume_multiple %201, 8 : i32
    %203 = arith.index_cast %202 : i32 to index
    %c0_46 = arith.constant 0 : index
    %204 = vector.load %arg13[%203, %c0_46] : memref<64x384xf32, #tpu.memory_space<vmem>>, vector<8x384xf32>
    %cst_47 = arith.constant dense<0.000000e+00> : vector<8x384xf32>
    %205 = tpu.matmul %198, %9, %cst_47 {dimension_numbers = #tpu.dot_dimension_numbers<[1], [0], [0], [1], [0, 0, 1, 1], [], []>} : vector<8x32xf32>, vector<32x384xf32>, vector<8x384xf32> -> vector<8x384xf32>
    %206 = vector.broadcast %10 : vector<1x384xf32> to vector<8x384xf32>
    %207 = arith.addf %205, %206 : vector<8x384xf32>
    %208 = vector.extract_strided_slice %204 {offsets = [0, 0], sizes = [8, 256], strides = [1, 1]} : vector<8x384xf32> to vector<8x256xf32>
    %209 = vector.extract_strided_slice %207 {offsets = [0, 0], sizes = [8, 256], strides = [1, 1]} : vector<8x384xf32> to vector<8x256xf32>
    %210 = arith.addf %208, %209 : vector<8x256xf32>
    %211 = arith.negf %210 : vector<8x256xf32>
    %212 = math.exp %211 : vector<8x256xf32>
    %cst_48 = arith.constant 1.000000e+00 : f32
    %213 = vector.broadcast %cst_48 : f32 to vector<8x256xf32>
    %214 = arith.addf %213, %212 : vector<8x256xf32>
    %215 = arith.divf %213, %214 : vector<8x256xf32>
    %216 = vector.extract_strided_slice %215 {offsets = [0, 0], sizes = [8, 32], strides = [1, 1]} : vector<8x256xf32> to vector<8x32xf32>
    %217 = vector.extract_strided_slice %215 {offsets = [0, 128], sizes = [8, 32], strides = [1, 1]} : vector<8x256xf32> to vector<8x32xf32>
    %218 = vector.extract_strided_slice %204 {offsets = [0, 256], sizes = [8, 32], strides = [1, 1]} : vector<8x384xf32> to vector<8x32xf32>
    %219 = vector.extract_strided_slice %207 {offsets = [0, 256], sizes = [8, 32], strides = [1, 1]} : vector<8x384xf32> to vector<8x32xf32>
    %220 = arith.mulf %216, %219 : vector<8x32xf32>
    %221 = arith.addf %218, %220 : vector<8x32xf32>
    %222 = math.tanh %221 : vector<8x32xf32>
    %223 = arith.subf %198, %222 : vector<8x32xf32>
    %224 = arith.mulf %217, %223 : vector<8x32xf32>
    %225 = arith.addf %222, %224 : vector<8x32xf32>
    %226 = arith.index_cast %202 : i32 to index
    %c0_49 = arith.constant 0 : index
    %227 = vector.load %arg14[%226, %c0_49] : memref<64x32xf32, #tpu.memory_space<vmem>>, vector<8x32xf32>
    tpu.vector_store %arg14[%226, %c0_49], %225 {strides = array<i32>} : memref<64x32xf32, #tpu.memory_space<vmem>>, vector<8x32xf32>,
    %c8_i32_50 = arith.constant 8 : i32
    %c0_51 = arith.constant 0 : index
    %c0_52 = arith.constant 0 : index
    %228 = vector.load %arg14[%c0_51, %c0_52] : memref<64x32xf32, #tpu.memory_space<vmem>>, vector<64x32xf32>
    %c0_53 = arith.constant 0 : index
    %c0_54 = arith.constant 0 : index
    %229 = vector.load %arg6[%c0_53, %c0_54] : memref<32x384xf32, #tpu.memory_space<vmem>>, vector<32x384xf32>
    %cst_55 = arith.constant dense<0.000000e+00> : vector<64x384xf32>
    %230 = tpu.matmul %228, %229, %cst_55 {dimension_numbers = #tpu.dot_dimension_numbers<[1], [0], [0], [1], [0, 0, 1, 1], [], []>} : vector<64x32xf32>, vector<32x384xf32>, vector<64x384xf32> -> vector<64x384xf32>
    %c0_56 = arith.constant 0 : index
    %c0_57 = arith.constant 0 : index
    %231 = vector.load %arg8[%c0_56, %c0_57] : memref<1x384xf32, #tpu.memory_space<vmem>>, vector<1x384xf32>
    %232 = vector.broadcast %231 : vector<1x384xf32> to vector<64x384xf32>
    %233 = arith.addf %230, %232 : vector<64x384xf32>
    %c0_58 = arith.constant 0 : index
    %c0_59 = arith.constant 0 : index
    %234 = vector.load %arg13[%c0_58, %c0_59] : memref<64x384xf32, #tpu.memory_space<vmem>>, vector<64x384xf32>
    tpu.vector_store %arg13[%c0_58, %c0_59], %233 {strides = array<i32>} : memref<64x384xf32, #tpu.memory_space<vmem>>, vector<64x384xf32>,
    %c0_60 = arith.constant 0 : index
    %c0_61 = arith.constant 0 : index
    %235 = vector.load %arg7[%c0_60, %c0_61] : memref<32x384xf32, #tpu.memory_space<vmem>>, vector<32x384xf32>
    %c0_62 = arith.constant 0 : index
    %c0_63 = arith.constant 0 : index
    %236 = vector.load %arg9[%c0_62, %c0_63] : memref<1x384xf32, #tpu.memory_space<vmem>>, vector<1x384xf32>
    %cst_64 = arith.constant 0.000000e+00 : f32
    %237 = vector.broadcast %cst_64 : f32 to vector<8x32xf32>
    %c0_i32_65 = arith.constant 0 : i32
    %c8_i32_66 = arith.constant 8 : i32
    %238 = arith.muli %c0_i32_65, %c8_i32_66 : i32
    %239 = tpu.assume_multiple %238, 8 : i32
    %240 = arith.index_cast %239 : i32 to index
    %c0_67 = arith.constant 0 : index
    %241 = vector.load %arg13[%240, %c0_67] : memref<64x384xf32, #tpu.memory_space<vmem>>, vector<8x384xf32>
    %cst_68 = arith.constant dense<0.000000e+00> : vector<8x384xf32>
    %242 = tpu.matmul %237, %235, %cst_68 {dimension_numbers = #tpu.dot_dimension_numbers<[1], [0], [0], [1], [0, 0, 1, 1], [], []>} : vector<8x32xf32>, vector<32x384xf32>, vector<8x384xf32> -> vector<8x384xf32>
    %243 = vector.broadcast %236 : vector<1x384xf32> to vector<8x384xf32>
    %244 = arith.addf %242, %243 : vector<8x384xf32>
    %245 = vector.extract_strided_slice %241 {offsets = [0, 0], sizes = [8, 256], strides = [1, 1]} : vector<8x384xf32> to vector<8x256xf32>
    %246 = vector.extract_strided_slice %244 {offsets = [0, 0], sizes = [8, 256], strides = [1, 1]} : vector<8x384xf32> to vector<8x256xf32>
    %247 = arith.addf %245, %246 : vector<8x256xf32>
    %248 = arith.negf %247 : vector<8x256xf32>
    %249 = math.exp %248 : vector<8x256xf32>
    %cst_69 = arith.constant 1.000000e+00 : f32
    %250 = vector.broadcast %cst_69 : f32 to vector<8x256xf32>
    %251 = arith.addf %250, %249 : vector<8x256xf32>
    %252 = arith.divf %250, %251 : vector<8x256xf32>
    %253 = vector.extract_strided_slice %252 {offsets = [0, 0], sizes = [8, 32], strides = [1, 1]} : vector<8x256xf32> to vector<8x32xf32>
    %254 = vector.extract_strided_slice %252 {offsets = [0, 128], sizes = [8, 32], strides = [1, 1]} : vector<8x256xf32> to vector<8x32xf32>
    %255 = vector.extract_strided_slice %241 {offsets = [0, 256], sizes = [8, 32], strides = [1, 1]} : vector<8x384xf32> to vector<8x32xf32>
    %256 = vector.extract_strided_slice %244 {offsets = [0, 256], sizes = [8, 32], strides = [1, 1]} : vector<8x384xf32> to vector<8x32xf32>
    %257 = arith.mulf %253, %256 : vector<8x32xf32>
    %258 = arith.addf %255, %257 : vector<8x32xf32>
    %259 = math.tanh %258 : vector<8x32xf32>
    %260 = arith.subf %237, %259 : vector<8x32xf32>
    %261 = arith.mulf %254, %260 : vector<8x32xf32>
    %262 = arith.addf %259, %261 : vector<8x32xf32>
    %263 = arith.index_cast %239 : i32 to index
    %c0_70 = arith.constant 0 : index
    %264 = vector.load %arg14[%263, %c0_70] : memref<64x32xf32, #tpu.memory_space<vmem>>, vector<8x32xf32>
    tpu.vector_store %arg14[%263, %c0_70], %262 {strides = array<i32>} : memref<64x32xf32, #tpu.memory_space<vmem>>, vector<8x32xf32>,
    %c1_i32_71 = arith.constant 1 : i32
    %c8_i32_72 = arith.constant 8 : i32
    %265 = arith.muli %c1_i32_71, %c8_i32_72 : i32
    %266 = tpu.assume_multiple %265, 8 : i32
    %267 = arith.index_cast %266 : i32 to index
    %c0_73 = arith.constant 0 : index
    %268 = vector.load %arg13[%267, %c0_73] : memref<64x384xf32, #tpu.memory_space<vmem>>, vector<8x384xf32>
    %cst_74 = arith.constant dense<0.000000e+00> : vector<8x384xf32>
    %269 = tpu.matmul %262, %235, %cst_74 {dimension_numbers = #tpu.dot_dimension_numbers<[1], [0], [0], [1], [0, 0, 1, 1], [], []>} : vector<8x32xf32>, vector<32x384xf32>, vector<8x384xf32> -> vector<8x384xf32>
    %270 = vector.broadcast %236 : vector<1x384xf32> to vector<8x384xf32>
    %271 = arith.addf %269, %270 : vector<8x384xf32>
    %272 = vector.extract_strided_slice %268 {offsets = [0, 0], sizes = [8, 256], strides = [1, 1]} : vector<8x384xf32> to vector<8x256xf32>
    %273 = vector.extract_strided_slice %271 {offsets = [0, 0], sizes = [8, 256], strides = [1, 1]} : vector<8x384xf32> to vector<8x256xf32>
    %274 = arith.addf %272, %273 : vector<8x256xf32>
    %275 = arith.negf %274 : vector<8x256xf32>
    %276 = math.exp %275 : vector<8x256xf32>
    %cst_75 = arith.constant 1.000000e+00 : f32
    %277 = vector.broadcast %cst_75 : f32 to vector<8x256xf32>
    %278 = arith.addf %277, %276 : vector<8x256xf32>
    %279 = arith.divf %277, %278 : vector<8x256xf32>
    %280 = vector.extract_strided_slice %279 {offsets = [0, 0], sizes = [8, 32], strides = [1, 1]} : vector<8x256xf32> to vector<8x32xf32>
    %281 = vector.extract_strided_slice %279 {offsets = [0, 128], sizes = [8, 32], strides = [1, 1]} : vector<8x256xf32> to vector<8x32xf32>
    %282 = vector.extract_strided_slice %268 {offsets = [0, 256], sizes = [8, 32], strides = [1, 1]} : vector<8x384xf32> to vector<8x32xf32>
    %283 = vector.extract_strided_slice %271 {offsets = [0, 256], sizes = [8, 32], strides = [1, 1]} : vector<8x384xf32> to vector<8x32xf32>
    %284 = arith.mulf %280, %283 : vector<8x32xf32>
    %285 = arith.addf %282, %284 : vector<8x32xf32>
    %286 = math.tanh %285 : vector<8x32xf32>
    %287 = arith.subf %262, %286 : vector<8x32xf32>
    %288 = arith.mulf %281, %287 : vector<8x32xf32>
    %289 = arith.addf %286, %288 : vector<8x32xf32>
    %290 = arith.index_cast %266 : i32 to index
    %c0_76 = arith.constant 0 : index
    %291 = vector.load %arg14[%290, %c0_76] : memref<64x32xf32, #tpu.memory_space<vmem>>, vector<8x32xf32>
    tpu.vector_store %arg14[%290, %c0_76], %289 {strides = array<i32>} : memref<64x32xf32, #tpu.memory_space<vmem>>, vector<8x32xf32>,
    %c2_i32_77 = arith.constant 2 : i32
    %c8_i32_78 = arith.constant 8 : i32
    %292 = arith.muli %c2_i32_77, %c8_i32_78 : i32
    %293 = tpu.assume_multiple %292, 8 : i32
    %294 = arith.index_cast %293 : i32 to index
    %c0_79 = arith.constant 0 : index
    %295 = vector.load %arg13[%294, %c0_79] : memref<64x384xf32, #tpu.memory_space<vmem>>, vector<8x384xf32>
    %cst_80 = arith.constant dense<0.000000e+00> : vector<8x384xf32>
    %296 = tpu.matmul %289, %235, %cst_80 {dimension_numbers = #tpu.dot_dimension_numbers<[1], [0], [0], [1], [0, 0, 1, 1], [], []>} : vector<8x32xf32>, vector<32x384xf32>, vector<8x384xf32> -> vector<8x384xf32>
    %297 = vector.broadcast %236 : vector<1x384xf32> to vector<8x384xf32>
    %298 = arith.addf %296, %297 : vector<8x384xf32>
    %299 = vector.extract_strided_slice %295 {offsets = [0, 0], sizes = [8, 256], strides = [1, 1]} : vector<8x384xf32> to vector<8x256xf32>
    %300 = vector.extract_strided_slice %298 {offsets = [0, 0], sizes = [8, 256], strides = [1, 1]} : vector<8x384xf32> to vector<8x256xf32>
    %301 = arith.addf %299, %300 : vector<8x256xf32>
    %302 = arith.negf %301 : vector<8x256xf32>
    %303 = math.exp %302 : vector<8x256xf32>
    %cst_81 = arith.constant 1.000000e+00 : f32
    %304 = vector.broadcast %cst_81 : f32 to vector<8x256xf32>
    %305 = arith.addf %304, %303 : vector<8x256xf32>
    %306 = arith.divf %304, %305 : vector<8x256xf32>
    %307 = vector.extract_strided_slice %306 {offsets = [0, 0], sizes = [8, 32], strides = [1, 1]} : vector<8x256xf32> to vector<8x32xf32>
    %308 = vector.extract_strided_slice %306 {offsets = [0, 128], sizes = [8, 32], strides = [1, 1]} : vector<8x256xf32> to vector<8x32xf32>
    %309 = vector.extract_strided_slice %295 {offsets = [0, 256], sizes = [8, 32], strides = [1, 1]} : vector<8x384xf32> to vector<8x32xf32>
    %310 = vector.extract_strided_slice %298 {offsets = [0, 256], sizes = [8, 32], strides = [1, 1]} : vector<8x384xf32> to vector<8x32xf32>
    %311 = arith.mulf %307, %310 : vector<8x32xf32>
    %312 = arith.addf %309, %311 : vector<8x32xf32>
    %313 = math.tanh %312 : vector<8x32xf32>
    %314 = arith.subf %289, %313 : vector<8x32xf32>
    %315 = arith.mulf %308, %314 : vector<8x32xf32>
    %316 = arith.addf %313, %315 : vector<8x32xf32>
    %317 = arith.index_cast %293 : i32 to index
    %c0_82 = arith.constant 0 : index
    %318 = vector.load %arg14[%317, %c0_82] : memref<64x32xf32, #tpu.memory_space<vmem>>, vector<8x32xf32>
    tpu.vector_store %arg14[%317, %c0_82], %316 {strides = array<i32>} : memref<64x32xf32, #tpu.memory_space<vmem>>, vector<8x32xf32>,
    %c3_i32_83 = arith.constant 3 : i32
    %c8_i32_84 = arith.constant 8 : i32
    %319 = arith.muli %c3_i32_83, %c8_i32_84 : i32
    %320 = tpu.assume_multiple %319, 8 : i32
    %321 = arith.index_cast %320 : i32 to index
    %c0_85 = arith.constant 0 : index
    %322 = vector.load %arg13[%321, %c0_85] : memref<64x384xf32, #tpu.memory_space<vmem>>, vector<8x384xf32>
    %cst_86 = arith.constant dense<0.000000e+00> : vector<8x384xf32>
    %323 = tpu.matmul %316, %235, %cst_86 {dimension_numbers = #tpu.dot_dimension_numbers<[1], [0], [0], [1], [0, 0, 1, 1], [], []>} : vector<8x32xf32>, vector<32x384xf32>, vector<8x384xf32> -> vector<8x384xf32>
    %324 = vector.broadcast %236 : vector<1x384xf32> to vector<8x384xf32>
    %325 = arith.addf %323, %324 : vector<8x384xf32>
    %326 = vector.extract_strided_slice %322 {offsets = [0, 0], sizes = [8, 256], strides = [1, 1]} : vector<8x384xf32> to vector<8x256xf32>
    %327 = vector.extract_strided_slice %325 {offsets = [0, 0], sizes = [8, 256], strides = [1, 1]} : vector<8x384xf32> to vector<8x256xf32>
    %328 = arith.addf %326, %327 : vector<8x256xf32>
    %329 = arith.negf %328 : vector<8x256xf32>
    %330 = math.exp %329 : vector<8x256xf32>
    %cst_87 = arith.constant 1.000000e+00 : f32
    %331 = vector.broadcast %cst_87 : f32 to vector<8x256xf32>
    %332 = arith.addf %331, %330 : vector<8x256xf32>
    %333 = arith.divf %331, %332 : vector<8x256xf32>
    %334 = vector.extract_strided_slice %333 {offsets = [0, 0], sizes = [8, 32], strides = [1, 1]} : vector<8x256xf32> to vector<8x32xf32>
    %335 = vector.extract_strided_slice %333 {offsets = [0, 128], sizes = [8, 32], strides = [1, 1]} : vector<8x256xf32> to vector<8x32xf32>
    %336 = vector.extract_strided_slice %322 {offsets = [0, 256], sizes = [8, 32], strides = [1, 1]} : vector<8x384xf32> to vector<8x32xf32>
    %337 = vector.extract_strided_slice %325 {offsets = [0, 256], sizes = [8, 32], strides = [1, 1]} : vector<8x384xf32> to vector<8x32xf32>
    %338 = arith.mulf %334, %337 : vector<8x32xf32>
    %339 = arith.addf %336, %338 : vector<8x32xf32>
    %340 = math.tanh %339 : vector<8x32xf32>
    %341 = arith.subf %316, %340 : vector<8x32xf32>
    %342 = arith.mulf %335, %341 : vector<8x32xf32>
    %343 = arith.addf %340, %342 : vector<8x32xf32>
    %344 = arith.index_cast %320 : i32 to index
    %c0_88 = arith.constant 0 : index
    %345 = vector.load %arg14[%344, %c0_88] : memref<64x32xf32, #tpu.memory_space<vmem>>, vector<8x32xf32>
    tpu.vector_store %arg14[%344, %c0_88], %343 {strides = array<i32>} : memref<64x32xf32, #tpu.memory_space<vmem>>, vector<8x32xf32>,
    %c4_i32_89 = arith.constant 4 : i32
    %c8_i32_90 = arith.constant 8 : i32
    %346 = arith.muli %c4_i32_89, %c8_i32_90 : i32
    %347 = tpu.assume_multiple %346, 8 : i32
    %348 = arith.index_cast %347 : i32 to index
    %c0_91 = arith.constant 0 : index
    %349 = vector.load %arg13[%348, %c0_91] : memref<64x384xf32, #tpu.memory_space<vmem>>, vector<8x384xf32>
    %cst_92 = arith.constant dense<0.000000e+00> : vector<8x384xf32>
    %350 = tpu.matmul %343, %235, %cst_92 {dimension_numbers = #tpu.dot_dimension_numbers<[1], [0], [0], [1], [0, 0, 1, 1], [], []>} : vector<8x32xf32>, vector<32x384xf32>, vector<8x384xf32> -> vector<8x384xf32>
    %351 = vector.broadcast %236 : vector<1x384xf32> to vector<8x384xf32>
    %352 = arith.addf %350, %351 : vector<8x384xf32>
    %353 = vector.extract_strided_slice %349 {offsets = [0, 0], sizes = [8, 256], strides = [1, 1]} : vector<8x384xf32> to vector<8x256xf32>
    %354 = vector.extract_strided_slice %352 {offsets = [0, 0], sizes = [8, 256], strides = [1, 1]} : vector<8x384xf32> to vector<8x256xf32>
    %355 = arith.addf %353, %354 : vector<8x256xf32>
    %356 = arith.negf %355 : vector<8x256xf32>
    %357 = math.exp %356 : vector<8x256xf32>
    %cst_93 = arith.constant 1.000000e+00 : f32
    %358 = vector.broadcast %cst_93 : f32 to vector<8x256xf32>
    %359 = arith.addf %358, %357 : vector<8x256xf32>
    %360 = arith.divf %358, %359 : vector<8x256xf32>
    %361 = vector.extract_strided_slice %360 {offsets = [0, 0], sizes = [8, 32], strides = [1, 1]} : vector<8x256xf32> to vector<8x32xf32>
    %362 = vector.extract_strided_slice %360 {offsets = [0, 128], sizes = [8, 32], strides = [1, 1]} : vector<8x256xf32> to vector<8x32xf32>
    %363 = vector.extract_strided_slice %349 {offsets = [0, 256], sizes = [8, 32], strides = [1, 1]} : vector<8x384xf32> to vector<8x32xf32>
    %364 = vector.extract_strided_slice %352 {offsets = [0, 256], sizes = [8, 32], strides = [1, 1]} : vector<8x384xf32> to vector<8x32xf32>
    %365 = arith.mulf %361, %364 : vector<8x32xf32>
    %366 = arith.addf %363, %365 : vector<8x32xf32>
    %367 = math.tanh %366 : vector<8x32xf32>
    %368 = arith.subf %343, %367 : vector<8x32xf32>
    %369 = arith.mulf %362, %368 : vector<8x32xf32>
    %370 = arith.addf %367, %369 : vector<8x32xf32>
    %371 = arith.index_cast %347 : i32 to index
    %c0_94 = arith.constant 0 : index
    %372 = vector.load %arg14[%371, %c0_94] : memref<64x32xf32, #tpu.memory_space<vmem>>, vector<8x32xf32>
    tpu.vector_store %arg14[%371, %c0_94], %370 {strides = array<i32>} : memref<64x32xf32, #tpu.memory_space<vmem>>, vector<8x32xf32>,
    %c5_i32_95 = arith.constant 5 : i32
    %c8_i32_96 = arith.constant 8 : i32
    %373 = arith.muli %c5_i32_95, %c8_i32_96 : i32
    %374 = tpu.assume_multiple %373, 8 : i32
    %375 = arith.index_cast %374 : i32 to index
    %c0_97 = arith.constant 0 : index
    %376 = vector.load %arg13[%375, %c0_97] : memref<64x384xf32, #tpu.memory_space<vmem>>, vector<8x384xf32>
    %cst_98 = arith.constant dense<0.000000e+00> : vector<8x384xf32>
    %377 = tpu.matmul %370, %235, %cst_98 {dimension_numbers = #tpu.dot_dimension_numbers<[1], [0], [0], [1], [0, 0, 1, 1], [], []>} : vector<8x32xf32>, vector<32x384xf32>, vector<8x384xf32> -> vector<8x384xf32>
    %378 = vector.broadcast %236 : vector<1x384xf32> to vector<8x384xf32>
    %379 = arith.addf %377, %378 : vector<8x384xf32>
    %380 = vector.extract_strided_slice %376 {offsets = [0, 0], sizes = [8, 256], strides = [1, 1]} : vector<8x384xf32> to vector<8x256xf32>
    %381 = vector.extract_strided_slice %379 {offsets = [0, 0], sizes = [8, 256], strides = [1, 1]} : vector<8x384xf32> to vector<8x256xf32>
    %382 = arith.addf %380, %381 : vector<8x256xf32>
    %383 = arith.negf %382 : vector<8x256xf32>
    %384 = math.exp %383 : vector<8x256xf32>
    %cst_99 = arith.constant 1.000000e+00 : f32
    %385 = vector.broadcast %cst_99 : f32 to vector<8x256xf32>
    %386 = arith.addf %385, %384 : vector<8x256xf32>
    %387 = arith.divf %385, %386 : vector<8x256xf32>
    %388 = vector.extract_strided_slice %387 {offsets = [0, 0], sizes = [8, 32], strides = [1, 1]} : vector<8x256xf32> to vector<8x32xf32>
    %389 = vector.extract_strided_slice %387 {offsets = [0, 128], sizes = [8, 32], strides = [1, 1]} : vector<8x256xf32> to vector<8x32xf32>
    %390 = vector.extract_strided_slice %376 {offsets = [0, 256], sizes = [8, 32], strides = [1, 1]} : vector<8x384xf32> to vector<8x32xf32>
    %391 = vector.extract_strided_slice %379 {offsets = [0, 256], sizes = [8, 32], strides = [1, 1]} : vector<8x384xf32> to vector<8x32xf32>
    %392 = arith.mulf %388, %391 : vector<8x32xf32>
    %393 = arith.addf %390, %392 : vector<8x32xf32>
    %394 = math.tanh %393 : vector<8x32xf32>
    %395 = arith.subf %370, %394 : vector<8x32xf32>
    %396 = arith.mulf %389, %395 : vector<8x32xf32>
    %397 = arith.addf %394, %396 : vector<8x32xf32>
    %398 = arith.index_cast %374 : i32 to index
    %c0_100 = arith.constant 0 : index
    %399 = vector.load %arg14[%398, %c0_100] : memref<64x32xf32, #tpu.memory_space<vmem>>, vector<8x32xf32>
    tpu.vector_store %arg14[%398, %c0_100], %397 {strides = array<i32>} : memref<64x32xf32, #tpu.memory_space<vmem>>, vector<8x32xf32>,
    %c6_i32_101 = arith.constant 6 : i32
    %c8_i32_102 = arith.constant 8 : i32
    %400 = arith.muli %c6_i32_101, %c8_i32_102 : i32
    %401 = tpu.assume_multiple %400, 8 : i32
    %402 = arith.index_cast %401 : i32 to index
    %c0_103 = arith.constant 0 : index
    %403 = vector.load %arg13[%402, %c0_103] : memref<64x384xf32, #tpu.memory_space<vmem>>, vector<8x384xf32>
    %cst_104 = arith.constant dense<0.000000e+00> : vector<8x384xf32>
    %404 = tpu.matmul %397, %235, %cst_104 {dimension_numbers = #tpu.dot_dimension_numbers<[1], [0], [0], [1], [0, 0, 1, 1], [], []>} : vector<8x32xf32>, vector<32x384xf32>, vector<8x384xf32> -> vector<8x384xf32>
    %405 = vector.broadcast %236 : vector<1x384xf32> to vector<8x384xf32>
    %406 = arith.addf %404, %405 : vector<8x384xf32>
    %407 = vector.extract_strided_slice %403 {offsets = [0, 0], sizes = [8, 256], strides = [1, 1]} : vector<8x384xf32> to vector<8x256xf32>
    %408 = vector.extract_strided_slice %406 {offsets = [0, 0], sizes = [8, 256], strides = [1, 1]} : vector<8x384xf32> to vector<8x256xf32>
    %409 = arith.addf %407, %408 : vector<8x256xf32>
    %410 = arith.negf %409 : vector<8x256xf32>
    %411 = math.exp %410 : vector<8x256xf32>
    %cst_105 = arith.constant 1.000000e+00 : f32
    %412 = vector.broadcast %cst_105 : f32 to vector<8x256xf32>
    %413 = arith.addf %412, %411 : vector<8x256xf32>
    %414 = arith.divf %412, %413 : vector<8x256xf32>
    %415 = vector.extract_strided_slice %414 {offsets = [0, 0], sizes = [8, 32], strides = [1, 1]} : vector<8x256xf32> to vector<8x32xf32>
    %416 = vector.extract_strided_slice %414 {offsets = [0, 128], sizes = [8, 32], strides = [1, 1]} : vector<8x256xf32> to vector<8x32xf32>
    %417 = vector.extract_strided_slice %403 {offsets = [0, 256], sizes = [8, 32], strides = [1, 1]} : vector<8x384xf32> to vector<8x32xf32>
    %418 = vector.extract_strided_slice %406 {offsets = [0, 256], sizes = [8, 32], strides = [1, 1]} : vector<8x384xf32> to vector<8x32xf32>
    %419 = arith.mulf %415, %418 : vector<8x32xf32>
    %420 = arith.addf %417, %419 : vector<8x32xf32>
    %421 = math.tanh %420 : vector<8x32xf32>
    %422 = arith.subf %397, %421 : vector<8x32xf32>
    %423 = arith.mulf %416, %422 : vector<8x32xf32>
    %424 = arith.addf %421, %423 : vector<8x32xf32>
    %425 = arith.index_cast %401 : i32 to index
    %c0_106 = arith.constant 0 : index
    %426 = vector.load %arg14[%425, %c0_106] : memref<64x32xf32, #tpu.memory_space<vmem>>, vector<8x32xf32>
    tpu.vector_store %arg14[%425, %c0_106], %424 {strides = array<i32>} : memref<64x32xf32, #tpu.memory_space<vmem>>, vector<8x32xf32>,
    %c7_i32_107 = arith.constant 7 : i32
    %c8_i32_108 = arith.constant 8 : i32
    %427 = arith.muli %c7_i32_107, %c8_i32_108 : i32
    %428 = tpu.assume_multiple %427, 8 : i32
    %429 = arith.index_cast %428 : i32 to index
    %c0_109 = arith.constant 0 : index
    %430 = vector.load %arg13[%429, %c0_109] : memref<64x384xf32, #tpu.memory_space<vmem>>, vector<8x384xf32>
    %cst_110 = arith.constant dense<0.000000e+00> : vector<8x384xf32>
    %431 = tpu.matmul %424, %235, %cst_110 {dimension_numbers = #tpu.dot_dimension_numbers<[1], [0], [0], [1], [0, 0, 1, 1], [], []>} : vector<8x32xf32>, vector<32x384xf32>, vector<8x384xf32> -> vector<8x384xf32>
    %432 = vector.broadcast %236 : vector<1x384xf32> to vector<8x384xf32>
    %433 = arith.addf %431, %432 : vector<8x384xf32>
    %434 = vector.extract_strided_slice %430 {offsets = [0, 0], sizes = [8, 256], strides = [1, 1]} : vector<8x384xf32> to vector<8x256xf32>
    %435 = vector.extract_strided_slice %433 {offsets = [0, 0], sizes = [8, 256], strides = [1, 1]} : vector<8x384xf32> to vector<8x256xf32>
    %436 = arith.addf %434, %435 : vector<8x256xf32>
    %437 = arith.negf %436 : vector<8x256xf32>
    %438 = math.exp %437 : vector<8x256xf32>
    %cst_111 = arith.constant 1.000000e+00 : f32
    %439 = vector.broadcast %cst_111 : f32 to vector<8x256xf32>
    %440 = arith.addf %439, %438 : vector<8x256xf32>
    %441 = arith.divf %439, %440 : vector<8x256xf32>
    %442 = vector.extract_strided_slice %441 {offsets = [0, 0], sizes = [8, 32], strides = [1, 1]} : vector<8x256xf32> to vector<8x32xf32>
    %443 = vector.extract_strided_slice %441 {offsets = [0, 128], sizes = [8, 32], strides = [1, 1]} : vector<8x256xf32> to vector<8x32xf32>
    %444 = vector.extract_strided_slice %430 {offsets = [0, 256], sizes = [8, 32], strides = [1, 1]} : vector<8x384xf32> to vector<8x32xf32>
    %445 = vector.extract_strided_slice %433 {offsets = [0, 256], sizes = [8, 32], strides = [1, 1]} : vector<8x384xf32> to vector<8x32xf32>
    %446 = arith.mulf %442, %445 : vector<8x32xf32>
    %447 = arith.addf %444, %446 : vector<8x32xf32>
    %448 = math.tanh %447 : vector<8x32xf32>
    %449 = arith.subf %424, %448 : vector<8x32xf32>
    %450 = arith.mulf %443, %449 : vector<8x32xf32>
    %451 = arith.addf %448, %450 : vector<8x32xf32>
    %452 = arith.index_cast %428 : i32 to index
    %c0_112 = arith.constant 0 : index
    %453 = vector.load %arg14[%452, %c0_112] : memref<64x32xf32, #tpu.memory_space<vmem>>, vector<8x32xf32>
    tpu.vector_store %arg14[%452, %c0_112], %451 {strides = array<i32>} : memref<64x32xf32, #tpu.memory_space<vmem>>, vector<8x32xf32>,
    %c8_i32_113 = arith.constant 8 : i32
    %c0_114 = arith.constant 0 : index
    %c0_115 = arith.constant 0 : index
    %454 = vector.load %arg14[%c0_114, %c0_115] : memref<64x32xf32, #tpu.memory_space<vmem>>, vector<64x32xf32>
    %c0_116 = arith.constant 0 : index
    %c0_117 = arith.constant 0 : index
    %455 = vector.load %arg10[%c0_116, %c0_117] : memref<32x2xf32, #tpu.memory_space<vmem>>, vector<32x2xf32>
    %cst_118 = arith.constant dense<0.000000e+00> : vector<64x2xf32>
    %456 = tpu.matmul %454, %455, %cst_118 {dimension_numbers = #tpu.dot_dimension_numbers<[1], [0], [0], [1], [0, 0, 1, 1], [], []>} : vector<64x32xf32>, vector<32x2xf32>, vector<64x2xf32> -> vector<64x2xf32>
    %c0_119 = arith.constant 0 : index
    %c0_120 = arith.constant 0 : index
    %457 = vector.load %arg11[%c0_119, %c0_120] : memref<1x2xf32, #tpu.memory_space<vmem>>, vector<1x2xf32>
    %458 = vector.broadcast %457 : vector<1x2xf32> to vector<64x2xf32>
    %459 = arith.addf %456, %458 : vector<64x2xf32>
    %cst_121 = arith.constant 0.000000e+00 : f32
    %460 = vector.broadcast %cst_121 : f32 to vector<64x2xf32>
    %461 = arith.cmpf ogt, %459, %460 : vector<64x2xf32>
    %cst_122 = arith.constant 0.000000e+00 : f32
    %462 = vector.broadcast %cst_122 : f32 to vector<64x2xf32>
    %463 = arith.minimumf %459, %462 : vector<64x2xf32>
    %464 = math.exp %463 : vector<64x2xf32>
    %cst_123 = arith.constant 1.000000e+00 : f32
    %465 = vector.broadcast %cst_123 : f32 to vector<64x2xf32>
    %466 = arith.subf %464, %465 : vector<64x2xf32>
    %467 = arith.select %461, %459, %466 : vector<64x2xi1>, vector<64x2xf32>
    %c0_124 = arith.constant 0 : index
    %c0_125 = arith.constant 0 : index
    %468 = vector.load %arg1[%c0_124, %c0_125] : memref<64x1xf32, #tpu.memory_space<vmem>>, vector<64x1xf32>
    %469 = vector.broadcast %468 : vector<64x1xf32> to vector<64x2xf32>
    %470 = arith.mulf %467, %469 : vector<64x2xf32>
    %471 = vector.shape_cast %470 : vector<64x2xf32> to vector<1x64x2xf32>
    %cst_126 = arith.constant dense<0.000000e+00> : vector<1xf32>
    %472 = vector.multi_reduction <add>, %471, %cst_126 [1, 2] : vector<1x64x2xf32> to vector<1xf32>
    %473 = vector.shape_cast %472 : vector<1xf32> to vector<1x1x1xf32>
    %474 = vector.extract %473[0, 0, 0] : f32 from vector<1x1x1xf32>
    %cst_127 = arith.constant 3.200000e+01 : f32
    %475 = arith.divf %474, %cst_127 : f32
    %476 = vector.broadcast %475 : f32 to vector<64x2xf32>
    %477 = arith.subf %467, %476 : vector<64x2xf32>
    %478 = arith.mulf %477, %477 : vector<64x2xf32>
    %479 = vector.broadcast %468 : vector<64x1xf32> to vector<64x2xf32>
    %480 = arith.mulf %478, %479 : vector<64x2xf32>
    %481 = vector.shape_cast %480 : vector<64x2xf32> to vector<1x64x2xf32>
    %cst_128 = arith.constant dense<0.000000e+00> : vector<1xf32>
    %482 = vector.multi_reduction <add>, %481, %cst_128 [1, 2] : vector<1x64x2xf32> to vector<1xf32>
    %483 = vector.shape_cast %482 : vector<1xf32> to vector<1x1x1xf32>
    %484 = vector.extract %483[0, 0, 0] : f32 from vector<1x1x1xf32>
    %cst_129 = arith.constant 3.100000e+01 : f32
    %485 = arith.divf %484, %cst_129 : f32
    %486 = math.rsqrt %485 : f32
    %487 = vector.broadcast %486 : f32 to vector<64x2xf32>
    %488 = arith.mulf %477, %487 : vector<64x2xf32>
    %c0_130 = arith.constant 0 : index
    %c0_131 = arith.constant 0 : index
    %489 = vector.load %arg12[%c0_130, %c0_131] : memref<64x2xf32, #tpu.memory_space<vmem>>, vector<64x2xf32>
    tpu.vector_store %arg12[%c0_130, %c0_131], %488 {strides = array<i32>} : memref<64x2xf32, #tpu.memory_space<vmem>>, vector<64x2xf32>,
    return
  }
}

</mosaic_0001>

<llo_original>
// kernel: tile.8
$region0: #{tile.8}
  #allocation0 [shape = 's32[1]{0}', space=sflag, size = 0x4, scoped, tag = 'scoped memory for tile.8']
  %s0 = inlined_call_operand.vmem [shape: f32[8], index: 0, kind: input, shape index: {}]
  %s1 = inlined_call_operand.vmem [shape: f32[8,8], index: 1, kind: output, shape index: {}]
  // Predicated region
  $region2: #{tile.8} parent=0 // pred_check
    _
  $region3: #{tile.8} parent=0 // pred_check_branch
    %3 = sbr.rel (0) target = $region5
  $region4: #{tile.8} parent=0 // pred_region
    _
  $region5: #{tile.8} parent=0 // pred_fallthru
    _
  %v4 = vld [vmem:[%s0] ss:$0 sm:$0xff]
  %5 = vst [vmem:[%s1] sm:$0xff] %v4

// kernel: tile.0
$region0: #{tile.0}
  %s0 = inlined_call_operand.vmem [shape: f32[8,8], index: 0, kind: input, shape index: {}]
  %s1 = inlined_call_operand.vmem [shape: f32[64,1], index: 1, kind: output, shape index: {}]
  %v2 = vld [vmem:[%s0] sm:$0xff]
  %vm3 = vcmask 7168
  %4 = vst.msk [vmem:[%s1] ss:$8 sm:$0xf] %vm3, %v2
  %5 = vst.msk [vmem:[%s1] ss:$8 sm:$0xf0] %vm3, %v2
  %v6 = vld [vmem:[%s0] sm:$0xff]
  %7 = vrot.lane.b32.xlu0 %v6, 127
  %v8 = vpop.permute.xlu0 %7
  %vm9 = vcmask 7168
  %s10 = scalar_lea.vmem %s1, 1
  %11 = vst.msk [vmem:[%s10] ss:$8 sm:$0xf] %vm9, %v8
  %s12 = scalar_lea.vmem %s1, 1
  %13 = vst.msk [vmem:[%s12] ss:$8 sm:$0xf0] %vm9, %v8
  %v14 = vld [vmem:[%s0] sm:$0xff]
  %15 = vrot.lane.b32.xlu0 %v14, 126
  %v16 = vpop.permute.xlu0 %15
  %vm17 = vcmask 7168
  %s18 = scalar_lea.vmem %s1, 2
  %19 = vst.msk [vmem:[%s18] ss:$8 sm:$0xf] %vm17, %v16
  %s20 = scalar_lea.vmem %s1, 2
  %21 = vst.msk [vmem:[%s20] ss:$8 sm:$0xf0] %vm17, %v16
  %v22 = vld [vmem:[%s0] sm:$0xff]
  %23 = vrot.lane.b32.xlu0 %v22, 125
  %v24 = vpop.permute.xlu0 %23
  %vm25 = vcmask 7168
  %s26 = scalar_lea.vmem %s1, 3
  %27 = vst.msk [vmem:[%s26] ss:$8 sm:$0xf] %vm25, %v24
  %s28 = scalar_lea.vmem %s1, 3
  %29 = vst.msk [vmem:[%s28] ss:$8 sm:$0xf0] %vm25, %v24
  %v30 = vld [vmem:[%s0] sm:$0xff]
  %31 = vrot.lane.b32.xlu0 %v30, 124
  %v32 = vpop.permute.xlu0 %31
  %vm33 = vcmask 7168
  %s34 = scalar_lea.vmem %s1, 4
  %35 = vst.msk [vmem:[%s34] ss:$8 sm:$0xf] %vm33, %v32
  %s36 = scalar_lea.vmem %s1, 4
  %37 = vst.msk [vmem:[%s36] ss:$8 sm:$0xf0] %vm33, %v32
  %v38 = vld [vmem:[%s0] sm:$0xff]
  %39 = vrot.lane.b32.xlu0 %v38, 123
  %v40 = vpop.permute.xlu0 %39
  %vm41 = vcmask 7168
  %s42 = scalar_lea.vmem %s1, 5
  %43 = vst.msk [vmem:[%s42] ss:$8 sm:$0xf] %vm41, %v40
  %s44 = scalar_lea.vmem %s1, 5
  %45 = vst.msk [vmem:[%s44] ss:$8 sm:$0xf0] %vm41, %v40
  %v46 = vld [vmem:[%s0] sm:$0xff]
  %47 = vrot.lane.b32.xlu0 %v46, 122
  %v48 = vpop.permute.xlu0 %47
  %vm49 = vcmask 7168
  %s50 = scalar_lea.vmem %s1, 6
  %51 = vst.msk [vmem:[%s50] ss:$8 sm:$0xf] %vm49, %v48
  %s52 = scalar_lea.vmem %s1, 6
  %53 = vst.msk [vmem:[%s52] ss:$8 sm:$0xf0] %vm49, %v48
  %v54 = vld [vmem:[%s0] sm:$0xff]
  %55 = vrot.lane.b32.xlu0 %v54, 121
  %v56 = vpop.permute.xlu0 %55
  %vm57 = vcmask 7168
  %s58 = scalar_lea.vmem %s1, 7
  %59 = vst.msk [vmem:[%s58] ss:$8 sm:$0xf] %vm57, %v56
  %s60 = scalar_lea.vmem %s1, 7
  %61 = vst.msk [vmem:[%s60] ss:$8 sm:$0xf0] %vm57, %v56

// kernel: enc_forward.1
$region0: #{enc_forward.1}
  #allocation0 [shape = 'u32[]', space=smem, size = 0x4, offset = 0x4, fixed_abs, tag = 'smem constant byte address 0x4 - core index']
  #allocation1 [shape = 'u32[144,128]{1,0:T(1,128)}', space=vmem, size = 0x12000, scoped, tag = 'internal scratch']
  #allocation2 [shape = 'f32[64,384]{1,0:T(8,128)}', space=vmem, size = 0x18000, scoped, tag = 'scratch operand']
  #allocation3 [shape = 'f32[64,32]{1,0:T(8,128)}', space=vmem, size = 0x8000, scoped, tag = 'scratch operand']
  %s0 = inlined_call_operand.vmem [shape: f32[64,1], index: 0, kind: input, shape index: {}]
  %s1 = inlined_call_operand.vmem [shape: f32[64,1], index: 1, kind: input, shape index: {}]
  %s2 = inlined_call_operand.vmem [shape: f32[1,384], index: 2, kind: input, shape index: {}]
  %s3 = inlined_call_operand.vmem [shape: f32[32,384], index: 3, kind: input, shape index: {}]
  %s4 = inlined_call_operand.vmem [shape: f32[1,384], index: 4, kind: input, shape index: {}]
  %s5 = inlined_call_operand.vmem [shape: f32[1,384], index: 5, kind: input, shape index: {}]
  %s6 = inlined_call_operand.vmem [shape: f32[32,384], index: 6, kind: input, shape index: {}]
  %s7 = inlined_call_operand.vmem [shape: f32[32,384], index: 7, kind: input, shape index: {}]
  %s8 = inlined_call_operand.vmem [shape: f32[1,384], index: 8, kind: input, shape index: {}]
  %s9 = inlined_call_operand.vmem [shape: f32[1,384], index: 9, kind: input, shape index: {}]
  %s10 = inlined_call_operand.vmem [shape: f32[32,2], index: 10, kind: input, shape index: {}]
  %s11 = inlined_call_operand.vmem [shape: f32[1,2], index: 11, kind: input, shape index: {}]
  %s12 = inlined_call_operand.vmem [shape: f32[64,2], index: 12, kind: output, shape index: {}]
  %s13 = sld [smem:[#allocation0]]
  $region58: #{enc_forward.1} parent=0
    _
  %s15 = ssub.s32 1, %s13
  %s16 = scalar_select 0, %s15, %s13
  // Predicated region
  $region2: #{enc_forward.1} parent=0 // pred_check
    _
  $region3: #{enc_forward.1} parent=0 // pred_check_branch
    %18 = sbr.rel (0) target = $region5
  $region4: #{enc_forward.1} parent=0 // pred_region
    _
  $region5: #{enc_forward.1} parent=0 // pred_fallthru
    _
  // Predicated region
  $region6: #{enc_forward.1} parent=0 // pred_check
    _
  $region7: #{enc_forward.1} parent=0 // pred_check_branch
    %20 = sbr.rel (0) target = $region9
  $region8: #{enc_forward.1} parent=0 // pred_region
    _
  $region9: #{enc_forward.1} parent=0 // pred_fallthru
    _
  // Predicated region
  $region10: #{enc_forward.1} parent=0 // pred_check
    _
  $region11: #{enc_forward.1} parent=0 // pred_check_branch
    %22 = sbr.rel (0) target = $region13
  $region12: #{enc_forward.1} parent=0 // pred_region
    _
  $region13: #{enc_forward.1} parent=0 // pred_fallthru
    _
  // Predicated region
  $region14: #{enc_forward.1} parent=0 // pred_check
    _
  $region15: #{enc_forward.1} parent=0 // pred_check_branch
    %24 = sbr.rel (0) target = $region17
  $region16: #{enc_forward.1} parent=0 // pred_region
    _
  $region17: #{enc_forward.1} parent=0 // pred_fallthru
    _
  // Predicated region
  $region18: #{enc_forward.1} parent=0 // pred_check
    _
  $region19: #{enc_forward.1} parent=0 // pred_check_branch
    %26 = sbr.rel (0) target = $region21
  $region20: #{enc_forward.1} parent=0 // pred_region
    _
  $region21: #{enc_forward.1} parent=0 // pred_fallthru
    _
  // Predicated region
  $region22: #{enc_forward.1} parent=0 // pred_check
    _
  $region23: #{enc_forward.1} parent=0 // pred_check_branch
    %28 = sbr.rel (0) target = $region25
  $region24: #{enc_forward.1} parent=0 // pred_region
    _
  $region25: #{enc_forward.1} parent=0 // pred_fallthru
    _
  // Predicated region
  $region26: #{enc_forward.1} parent=0 // pred_check
    _
  $region27: #{enc_forward.1} parent=0 // pred_check_branch
    %30 = sbr.rel (0) target = $region29
  $region28: #{enc_forward.1} parent=0 // pred_region
    _
  $region29: #{enc_forward.1} parent=0 // pred_fallthru
    _
  // Predicated region
  $region30: #{enc_forward.1} parent=0 // pred_check
    _
  $region31: #{enc_forward.1} parent=0 // pred_check_branch
    %32 = sbr.rel (0) target = $region33
  $region32: #{enc_forward.1} parent=0 // pred_region
    _
  $region33: #{enc_forward.1} parent=0 // pred_fallthru
    _
  // Predicated region
  $region34: #{enc_forward.1} parent=0 // pred_check
    _
  $region35: #{enc_forward.1} parent=0 // pred_check_branch
    %34 = sbr.rel (0) target = $region37
  $region36: #{enc_forward.1} parent=0 // pred_region
    _
  $region37: #{enc_forward.1} parent=0 // pred_fallthru
    _
  // Predicated region
  $region38: #{enc_forward.1} parent=0 // pred_check
    _
  $region39: #{enc_forward.1} parent=0 // pred_check_branch
    %36 = sbr.rel (0) target = $region41
  $region40: #{enc_forward.1} parent=0 // pred_region
    _
  $region41: #{enc_forward.1} parent=0 // pred_fallthru
    _
  // Predicated region
  $region42: #{enc_forward.1} parent=0 // pred_check
    _
  $region43: #{enc_forward.1} parent=0 // pred_check_branch
    %38 = sbr.rel (0) target = $region45
  $region44: #{enc_forward.1} parent=0 // pred_region
    _
  $region45: #{enc_forward.1} parent=0 // pred_fallthru
    _
  // Predicated region
  $region46: #{enc_forward.1} parent=0 // pred_check
    _
  $region47: #{enc_forward.1} parent=0 // pred_check_branch
    %40 = sbr.rel (0) target = $region49
  $region48: #{enc_forward.1} parent=0 // pred_region
    _
  $region49: #{enc_forward.1} parent=0 // pred_fallthru
    _
  %v41 = vld [vmem:[%s2] sm:$0x7]
  %v42 = vld [vmem:[%s4] sm:$0x7]
  %v43 = vld [vmem:[%s0] sm:$0xff]
  %v44 = vld [vmem:[%s0 + $0x8] sm:$0xff]
  %v45 = vld [vmem:[%s0 + $0x10] sm:$0xff]
  %v46 = vld [vmem:[%s0 + $0x18] sm:$0xff]
  %v47 = vld [vmem:[%s0 + $0x20] sm:$0xff]
  %v48 = vld [vmem:[%s0 + $0x28] sm:$0xff]
  %v49 = vld [vmem:[%s0 + $0x30] sm:$0xff]
  %v50 = vld [vmem:[%s0 + $0x38] sm:$0xff]
  %52 = vset.pattern.permute.xlu0 0
  %53 = vperm.xlu0 %52, %v43
  %v54 = vpop.permute.xlu0 %53
  %57 = vset.pattern.permute.xlu0 0
  %58 = vperm.xlu0 %57, %v44
  %v59 = vpop.permute.xlu0 %58
  %62 = vset.pattern.permute.xlu0 0
  %63 = vperm.xlu0 %62, %v45
  %v64 = vpop.permute.xlu0 %63
  %67 = vset.pattern.permute.xlu0 0
  %68 = vperm.xlu0 %67, %v46
  %v69 = vpop.permute.xlu0 %68
  %72 = vset.pattern.permute.xlu0 0
  %73 = vperm.xlu0 %72, %v47
  %v74 = vpop.permute.xlu0 %73
  %77 = vset.pattern.permute.xlu0 0
  %78 = vperm.xlu0 %77, %v48
  %v79 = vpop.permute.xlu0 %78
  %82 = vset.pattern.permute.xlu0 0
  %83 = vperm.xlu0 %82, %v49
  %v84 = vpop.permute.xlu0 %83
  %87 = vset.pattern.permute.xlu0 0
  %88 = vperm.xlu0 %87, %v50
  %v89 = vpop.permute.xlu0 %88
  %v92 = vlaneseq
  %v93 = vshrl.u32 %v92, 7
  %v94 = vsub.s32 0, %v93
  %v95 = vrot.slane %v41, %v94
  %v96 = vlaneseq
  %v97 = vshrl.u32 %v96, 7
  %v98 = vsub.s32 1, %v97
  %v99 = vrot.slane %v41, %v98
  %v100 = vlaneseq
  %v101 = vshrl.u32 %v100, 7
  %v102 = vsub.s32 2, %v101
  %v103 = vrot.slane %v41, %v102
  %v107 = vmul.f32 %v54, %v95
  %v108 = vmul.f32 %v54, %v99
  %v109 = vmul.f32 %v54, %v103
  %v110 = vmul.f32 %v59, %v95
  %v111 = vmul.f32 %v59, %v99
  %v112 = vmul.f32 %v59, %v103
  %v113 = vmul.f32 %v64, %v95
  %v114 = vmul.f32 %v64, %v99
  %v115 = vmul.f32 %v64, %v103
  %v116 = vmul.f32 %v69, %v95
  %v117 = vmul.f32 %v69, %v99
  %v118 = vmul.f32 %v69, %v103
  %v119 = vmul.f32 %v74, %v95
  %v120 = vmul.f32 %v74, %v99
  %v121 = vmul.f32 %v74, %v103
  %v122 = vmul.f32 %v79, %v95
  %v123 = vmul.f32 %v79, %v99
  %v124 = vmul.f32 %v79, %v103
  %v125 = vmul.f32 %v84, %v95
  %v126 = vmul.f32 %v84, %v99
  %v127 = vmul.f32 %v84, %v103
  %v128 = vmul.f32 %v89, %v95
  %v129 = vmul.f32 %v89, %v99
  %v130 = vmul.f32 %v89, %v103
  %v132 = vlaneseq
  %v133 = vshrl.u32 %v132, 7
  %v134 = vsub.s32 0, %v133
  %v135 = vrot.slane %v42, %v134
  %v136 = vlaneseq
  %v137 = vshrl.u32 %v136, 7
  %v138 = vsub.s32 1, %v137
  %v139 = vrot.slane %v42, %v138
  %v140 = vlaneseq
  %v141 = vshrl.u32 %v140, 7
  %v142 = vsub.s32 2, %v141
  %v143 = vrot.slane %v42, %v142
  %v147 = vadd.f32 %v107, %v135
  %v148 = vadd.f32 %v108, %v139
  %v149 = vadd.f32 %v109, %v143
  %v150 = vadd.f32 %v110, %v135
  %v151 = vadd.f32 %v111, %v139
  %v152 = vadd.f32 %v112, %v143
  %v153 = vadd.f32 %v113, %v135
  %v154 = vadd.f32 %v114, %v139
  %v155 = vadd.f32 %v115, %v143
  %v156 = vadd.f32 %v116, %v135
  %v157 = vadd.f32 %v117, %v139
  %v158 = vadd.f32 %v118, %v143
  %v159 = vadd.f32 %v119, %v135
  %v160 = vadd.f32 %v120, %v139
  %v161 = vadd.f32 %v121, %v143
  %v162 = vadd.f32 %v122, %v135
  %v163 = vadd.f32 %v123, %v139
  %v164 = vadd.f32 %v124, %v143
  %v165 = vadd.f32 %v125, %v135
  %v166 = vadd.f32 %v126, %v139
  %v167 = vadd.f32 %v127, %v143
  %v168 = vadd.f32 %v128, %v135
  %v169 = vadd.f32 %v129, %v139
  %v170 = vadd.f32 %v130, %v143
  %171 = vst [vmem:[#allocation2] sm:$0xff] %v147
  %172 = vst [vmem:[#allocation2 + $0x8] sm:$0xff] %v148
  %173 = vst [vmem:[#allocation2 + $0x10] sm:$0xff] %v149
  %174 = vst [vmem:[#allocation2 + $0x18] sm:$0xff] %v150
  %175 = vst [vmem:[#allocation2 + $0x20] sm:$0xff] %v151
  %176 = vst [vmem:[#allocation2 + $0x28] sm:$0xff] %v152
  %177 = vst [vmem:[#allocation2 + $0x30] sm:$0xff] %v153
  %178 = vst [vmem:[#allocation2 + $0x38] sm:$0xff] %v154
  %179 = vst [vmem:[#allocation2 + $0x40] sm:$0xff] %v155
  %180 = vst [vmem:[#allocation2 + $0x48] sm:$0xff] %v156
  %181 = vst [vmem:[#allocation2 + $0x50] sm:$0xff] %v157
  %182 = vst [vmem:[#allocation2 + $0x58] sm:$0xff] %v158
  %183 = vst [vmem:[#allocation2 + $0x60] sm:$0xff] %v159
  %184 = vst [vmem:[#allocation2 + $0x68] sm:$0xff] %v160
  %185 = vst [vmem:[#allocation2 + $0x70] sm:$0xff] %v161
  %186 = vst [vmem:[#allocation2 + $0x78] sm:$0xff] %v162
  %187 = vst [vmem:[#allocation2 + $0x80] sm:$0xff] %v163
  %188 = vst [vmem:[#allocation2 + $0x88] sm:$0xff] %v164
  %189 = vst [vmem:[#allocation2 + $0x90] sm:$0xff] %v165
  %190 = vst [vmem:[#allocation2 + $0x98] sm:$0xff] %v166
  %191 = vst [vmem:[#allocation2 + $0xa0] sm:$0xff] %v167
  %192 = vst [vmem:[#allocation2 + $0xa8] sm:$0xff] %v168
  %193 = vst [vmem:[#allocation2 + $0xb0] sm:$0xff] %v169
  %194 = vst [vmem:[#allocation2 + $0xb8] sm:$0xff] %v170
  %v195 = vld [vmem:[%s3] sm:$0xff]
  %v196 = vld [vmem:[%s3 + $0x8] sm:$0xff]
  %v197 = vld [vmem:[%s3 + $0x10] sm:$0xff]
  %v198 = vld [vmem:[%s3 + $0x18] sm:$0xff]
  %v199 = vld [vmem:[%s3 + $0x20] sm:$0xff]
  %v200 = vld [vmem:[%s3 + $0x28] sm:$0xff]
  %v201 = vld [vmem:[%s3 + $0x30] sm:$0xff]
  %v202 = vld [vmem:[%s3 + $0x38] sm:$0xff]
  %v203 = vld [vmem:[%s3 + $0x40] sm:$0xff]
  %v204 = vld [vmem:[%s3 + $0x48] sm:$0xff]
  %v205 = vld [vmem:[%s3 + $0x50] sm:$0xff]
  %v206 = vld [vmem:[%s3 + $0x58] sm:$0xff]
  %v207 = vld [vmem:[%s5] sm:$0x7]
  %s208 = smul.u32 0, 3
  %s209 = smul.addr %s208, 8
  %s210 = scalar_lea.vmem [#allocation2], %s209
  %v211 = vld [vmem:[%s210] sm:$0xff]
  %v212 = vld [vmem:[%s210 + $0x8] sm:$0xff]
  %v213 = vld [vmem:[%s210 + $0x10] sm:$0xff]
  %v215 = vlaneseq
  %v216 = vshrl.u32 %v215, 7
  %v217 = vsub.s32 0, %v216
  %v218 = vrot.slane %v207, %v217
  %v219 = vlaneseq
  %v220 = vshrl.u32 %v219, 7
  %v221 = vsub.s32 1, %v220
  %v222 = vrot.slane %v207, %v221
  %v223 = vlaneseq
  %v224 = vshrl.u32 %v223, 7
  %v225 = vsub.s32 2, %v224
  %v226 = vrot.slane %v207, %v225
  %vm230 = vcmask 261120
  %v232 = vsel %vm230, 0.0, 0
  %234 = vmatprep.subr.mxu0 %v196
  %235 = vmatpush1.msra.mxu0 %v195
  %236 = vmatprep.subr.mxu0 %v199
  %237 = vmatpush1.msra.mxu0 %v198
  %238 = vmatprep.subr.mxu0 %v202
  %239 = vmatpush1.msra.mxu0 %v201
  %240 = vmatprep.subr.mxu0 %v205
  %241 = vmatpush1.msra.mxu0 %v204
  %242 = vmatprep.subr.mxu0 0.0
  %243 = vmatpush1.msra.mxu0 0.0
  %244 = vmatprep.subr.mxu0 0.0
  %245 = vmatpush1.msra.mxu0 0.0
  %246 = vmatprep.subr.mxu0 0.0
  %247 = vmatpush1.msra.mxu0 0.0
  %248 = vmatprep.subr.mxu0 0.0
  %249 = vmatpush1.msra.mxu0 0.0
  %250 = vmatprep.subr.mxu0 0.0
  %251 = vmatpush1.msra.mxu0 0.0
  %252 = vmatprep.subr.mxu0 0.0
  %253 = vmatpush1.msra.mxu0 0.0
  %254 = vmatprep.subr.mxu0 0.0
  %255 = vmatpush1.msra.mxu0 0.0
  %256 = vmatprep.subr.mxu0 0.0
  %257 = vmatpush1.msra.mxu0 0.0
  %258 = vmatprep.subr.mxu0 0.0
  %259 = vmatpush1.msra.mxu0 0.0
  %260 = vmatprep.subr.mxu0 0.0
  %261 = vmatpush1.msra.mxu0 0.0
  %262 = vmatprep.subr.mxu0 0.0
  %263 = vmatpush1.msra.mxu0 0.0
  %264 = vmatprep.subr.mxu0 0.0
  %265 = vmatpush1.msra.mxu0 0.0
  %266 = vmatprep.subr.mxu0 0.0
  %267 = vmatpush1.msra.mxu0 0.0
  %268 = vmatprep.subr.mxu0 0.0
  %269 = vmatpush1.msra.mxu0 0.0
  %270 = vmatprep.subr.mxu0 0.0
  %271 = vmatpush1.msra.mxu0 0.0
  %272 = vmatprep.subr.mxu0 0.0
  %273 = vmatpush1.msra.mxu0 0.0
  %274 = vmatprep.subr.mxu0 0.0
  %275 = vmatpush1.msra.mxu0 0.0
  %276 = vmatprep.subr.mxu0 0.0
  %277 = vmatpush1.msra.mxu0 0.0
  %278 = vmatprep.subr.mxu0 0.0
  %279 = vmatpush1.msra.mxu0 0.0
  %280 = vmatprep.subr.mxu0 0.0
  %281 = vmatpush1.msra.mxu0 0.0
  %282 = vmatprep.subr.mxu0 0.0
  %283 = vmatpush1.msra.mxu0 0.0
  %284 = vmatprep.subr.mxu0 0.0
  %285 = vmatpush1.msra.mxu0 0.0
  %286 = vmatprep.subr.mxu0 0.0
  %287 = vmatpush1.msra.mxu0 0.0
  %288 = vmatprep.subr.mxu0 0.0
  %289 = vmatpush1.msra.mxu0 0.0
  %290 = vmatprep.subr.mxu0 0.0
  %291 = vmatpush1.msra.mxu0 0.0
  %292 = vmatprep.subr.mxu0 0.0
  %293 = vmatpush1.msra.mxu0 0.0
  %294 = vmatprep.subr.mxu0 0.0
  %295 = vmatpush1.msra.mxu0 0.0
  %296 = vmatprep.subr.mxu0 0.0
  %297 = vmatpush1.msra.mxu0 0.0
  %298 = vmatprep.mubr.f32.mxu0 0.0
  %299 = vmatmul.mubr.f32.gmra.mrb[0].mxu0 %v232
  %v300 = vpop.f32.mrb[0].mxu0
  %v301 = vadd.f32 %v218, %v300
  %v302 = vpop.f32.mrb[0].mxu0
  %v303 = vadd.f32 %v222, %v302
  %304 = vdwg.mxu0
  %305 = vmatprep.subr.mxu0 0.0
  %306 = vmatpush1.msra.mxu0 %v197
  %307 = vmatprep.subr.mxu0 0.0
  %308 = vmatpush1.msra.mxu0 %v200
  %309 = vmatprep.subr.mxu0 0.0
  %310 = vmatpush1.msra.mxu0 %v203
  %311 = vmatprep.subr.mxu0 0.0
  %312 = vmatpush1.msra.mxu0 %v206
  %313 = vmatprep.subr.mxu0 0.0
  %314 = vmatpush1.msra.mxu0 0.0
  %315 = vmatprep.subr.mxu0 0.0
  %316 = vmatpush1.msra.mxu0 0.0
  %317 = vmatprep.subr.mxu0 0.0
  %318 = vmatpush1.msra.mxu0 0.0
  %319 = vmatprep.subr.mxu0 0.0
  %320 = vmatpush1.msra.mxu0 0.0
  %321 = vmatprep.subr.mxu0 0.0
  %322 = vmatpush1.msra.mxu0 0.0
  %323 = vmatprep.subr.mxu0 0.0
  %324 = vmatpush1.msra.mxu0 0.0
  %325 = vmatprep.subr.mxu0 0.0
  %326 = vmatpush1.msra.mxu0 0.0
  %327 = vmatprep.subr.mxu0 0.0
  %328 = vmatpush1.msra.mxu0 0.0
  %329 = vmatprep.subr.mxu0 0.0
  %330 = vmatpush1.msra.mxu0 0.0
  %331 = vmatprep.subr.mxu0 0.0
  %332 = vmatpush1.msra.mxu0 0.0
  %333 = vmatprep.subr.mxu0 0.0
  %334 = vmatpush1.msra.mxu0 0.0
  %335 = vmatprep.subr.mxu0 0.0
  %336 = vmatpush1.msra.mxu0 0.0
  %337 = vmatprep.subr.mxu0 0.0
  %338 = vmatpush1.msra.mxu0 0.0
  %339 = vmatprep.subr.mxu0 0.0
  %340 = vmatpush1.msra.mxu0 0.0
  %341 = vmatprep.subr.mxu0 0.0
  %342 = vmatpush1.msra.mxu0 0.0
  %343 = vmatprep.subr.mxu0 0.0
  %344 = vmatpush1.msra.mxu0 0.0
  %345 = vmatprep.subr.mxu0 0.0
  %346 = vmatpush1.msra.mxu0 0.0
  %347 = vmatprep.subr.mxu0 0.0
  %348 = vmatpush1.msra.mxu0 0.0
  %349 = vmatprep.subr.mxu0 0.0
  %350 = vmatpush1.msra.mxu0 0.0
  %351 = vmatprep.subr.mxu0 0.0
  %352 = vmatpush1.msra.mxu0 0.0
  %353 = vmatprep.subr.mxu0 0.0
  %354 = vmatpush1.msra.mxu0 0.0
  %355 = vmatprep.subr.mxu0 0.0
  %356 = vmatpush1.msra.mxu0 0.0
  %357 = vmatprep.subr.mxu0 0.0
  %358 = vmatpush1.msra.mxu0 0.0
  %359 = vmatprep.subr.mxu0 0.0
  %360 = vmatpush1.msra.mxu0 0.0
  %361 = vmatprep.subr.mxu0 0.0
  %362 = vmatpush1.msra.mxu0 0.0
  %363 = vmatprep.subr.mxu0 0.0
  %364 = vmatpush1.msra.mxu0 0.0
  %365 = vmatprep.subr.mxu0 0.0
  %366 = vmatpush1.msra.mxu0 0.0
  %367 = vmatprep.subr.mxu0 0.0
  %368 = vmatpush1.msra.mxu0 0.0
  %369 = vmatprep.mubr.f32.mxu0 0.0
  %370 = vmatmul.mubr.f32.gmra.mrb[0].mxu0 %v232
  %v371 = vpop.f32.mrb[0].mxu0
  %v372 = vadd.f32 %v226, %v371
  %v373 = vpop.f32.mrb[0].mxu0
  %374 = vdwg.mxu0
  %v375 = vadd.f32 %v211, %v301
  %v376 = vadd.f32 %v212, %v303
  %v377 = vxor.u32 %v375, 2147483648
  %v378 = vxor.u32 %v376, 2147483648
  %v379 = vmul.f32 %v377, 1.442695
  %v380 = vpow.pop %v379
  %v381 = vmul.f32 %v378, 1.442695
  %v382 = vpow.pop %v381
  %v383 = vadd.f32 %v380, 1.0
  %v384 = vadd.f32 %v382, 1.0
  %v385 = vrcp.pop %v383
  %v386 = vmul.f32 1.0, %v385
  %v387 = vrcp.pop %v384
  %v388 = vmul.f32 1.0, %v387
  %v389 = vmul.f32 %v386, %v372
  %v390 = vadd.f32 %v213, %v389
  %v391 = vtanh.pop %v390
  %v392 = vsub.f32 0.0, %v391
  %v393 = vmul.f32 %v388, %v392
  %v394 = vadd.f32 %v391, %v393
  %395 = vst.msk [vmem:[#allocation3] sm:$0xff] %vm230, %v394
  %s396 = smul.u32 1, 3
  %s397 = smul.addr %s396, 8
  %s398 = scalar_lea.vmem [#allocation2], %s397
  %v399 = vld [vmem:[%s398] sm:$0xff]
  %v400 = vld [vmem:[%s398 + $0x8] sm:$0xff]
  %v401 = vld [vmem:[%s398 + $0x10] sm:$0xff]
  %v403 = vsel %vm230, %v394, 0
  %405 = vmatprep.subr.mxu0 %v196
  %406 = vmatpush1.msra.mxu0 %v195
  %407 = vmatprep.subr.mxu0 %v199
  %408 = vmatpush1.msra.mxu0 %v198
  %409 = vmatprep.subr.mxu0 %v202
  %410 = vmatpush1.msra.mxu0 %v201
  %411 = vmatprep.subr.mxu0 %v205
  %412 = vmatpush1.msra.mxu0 %v204
  %413 = vmatprep.subr.mxu0 0.0
  %414 = vmatpush1.msra.mxu0 0.0
  %415 = vmatprep.subr.mxu0 0.0
  %416 = vmatpush1.msra.mxu0 0.0
  %417 = vmatprep.subr.mxu0 0.0
  %418 = vmatpush1.msra.mxu0 0.0
  %419 = vmatprep.subr.mxu0 0.0
  %420 = vmatpush1.msra.mxu0 0.0
  %421 = vmatprep.subr.mxu0 0.0
  %422 = vmatpush1.msra.mxu0 0.0
  %423 = vmatprep.subr.mxu0 0.0
  %424 = vmatpush1.msra.mxu0 0.0
  %425 = vmatprep.subr.mxu0 0.0
  %426 = vmatpush1.msra.mxu0 0.0
  %427 = vmatprep.subr.mxu0 0.0
  %428 = vmatpush1.msra.mxu0 0.0
  %429 = vmatprep.subr.mxu0 0.0
  %430 = vmatpush1.msra.mxu0 0.0
  %431 = vmatprep.subr.mxu0 0.0
  %432 = vmatpush1.msra.mxu0 0.0
  %433 = vmatprep.subr.mxu0 0.0
  %434 = vmatpush1.msra.mxu0 0.0
  %435 = vmatprep.subr.mxu0 0.0
  %436 = vmatpush1.msra.mxu0 0.0
  %437 = vmatprep.subr.mxu0 0.0
  %438 = vmatpush1.msra.mxu0 0.0
  %439 = vmatprep.subr.mxu0 0.0
  %440 = vmatpush1.msra.mxu0 0.0
  %441 = vmatprep.subr.mxu0 0.0
  %442 = vmatpush1.msra.mxu0 0.0
  %443 = vmatprep.subr.mxu0 0.0
  %444 = vmatpush1.msra.mxu0 0.0
  %445 = vmatprep.subr.mxu0 0.0
  %446 = vmatpush1.msra.mxu0 0.0
  %447 = vmatprep.subr.mxu0 0.0
  %448 = vmatpush1.msra.mxu0 0.0
  %449 = vmatprep.subr.mxu0 0.0
  %450 = vmatpush1.msra.mxu0 0.0
  %451 = vmatprep.subr.mxu0 0.0
  %452 = vmatpush1.msra.mxu0 0.0
  %453 = vmatprep.subr.mxu0 0.0
  %454 = vmatpush1.msra.mxu0 0.0
  %455 = vmatprep.subr.mxu0 0.0
  %456 = vmatpush1.msra.mxu0 0.0
  %457 = vmatprep.subr.mxu0 0.0
  %458 = vmatpush1.msra.mxu0 0.0
  %459 = vmatprep.subr.mxu0 0.0
  %460 = vmatpush1.msra.mxu0 0.0
  %461 = vmatprep.subr.mxu0 0.0
  %462 = vmatpush1.msra.mxu0 0.0
  %463 = vmatprep.subr.mxu0 0.0
  %464 = vmatpush1.msra.mxu0 0.0
  %465 = vmatprep.subr.mxu0 0.0
  %466 = vmatpush1.msra.mxu0 0.0
  %467 = vmatprep.subr.mxu0 0.0
  %468 = vmatpush1.msra.mxu0 0.0
  %469 = vmatprep.mubr.f32.mxu0 0.0
  %470 = vmatmul.mubr.f32.gmra.mrb[0].mxu0 %v403
  %v471 = vpop.f32.mrb[0].mxu0
  %v472 = vadd.f32 %v218, %v471
  %v473 = vpop.f32.mrb[0].mxu0
  %v474 = vadd.f32 %v222, %v473
  %475 = vdwg.mxu0
  %476 = vmatprep.subr.mxu0 0.0
  %477 = vmatpush1.msra.mxu0 %v197
  %478 = vmatprep.subr.mxu0 0.0
  %479 = vmatpush1.msra.mxu0 %v200
  %480 = vmatprep.subr.mxu0 0.0
  %481 = vmatpush1.msra.mxu0 %v203
  %482 = vmatprep.subr.mxu0 0.0
  %483 = vmatpush1.msra.mxu0 %v206
  %484 = vmatprep.subr.mxu0 0.0
  %485 = vmatpush1.msra.mxu0 0.0
  %486 = vmatprep.subr.mxu0 0.0
  %487 = vmatpush1.msra.mxu0 0.0
  %488 = vmatprep.subr.mxu0 0.0
  %489 = vmatpush1.msra.mxu0 0.0
  %490 = vmatprep.subr.mxu0 0.0
  %491 = vmatpush1.msra.mxu0 0.0
  %492 = vmatprep.subr.mxu0 0.0
  %493 = vmatpush1.msra.mxu0 0.0
  %494 = vmatprep.subr.mxu0 0.0
  %495 = vmatpush1.msra.mxu0 0.0
  %496 = vmatprep.subr.mxu0 0.0
  %497 = vmatpush1.msra.mxu0 0.0
  %498 = vmatprep.subr.mxu0 0.0
  %499 = vmatpush1.msra.mxu0 0.0
  %500 = vmatprep.subr.mxu0 0.0
  %501 = vmatpush1.msra.mxu0 0.0
  %502 = vmatprep.subr.mxu0 0.0
  %503 = vmatpush1.msra.mxu0 0.0
  %504 = vmatprep.subr.mxu0 0.0
  %505 = vmatpush1.msra.mxu0 0.0
  %506 = vmatprep.subr.mxu0 0.0
  %507 = vmatpush1.msra.mxu0 0.0
  %508 = vmatprep.subr.mxu0 0.0
  %509 = vmatpush1.msra.mxu0 0.0
  %510 = vmatprep.subr.mxu0 0.0
  %511 = vmatpush1.msra.mxu0 0.0
  %512 = vmatprep.subr.mxu0 0.0
  %513 = vmatpush1.msra.mxu0 0.0
  %514 = vmatprep.subr.mxu0 0.0
  %515 = vmatpush1.msra.mxu0 0.0
  %516 = vmatprep.subr.mxu0 0.0
  %517 = vmatpush1.msra.mxu0 0.0
  %518 = vmatprep.subr.mxu0 0.0
  %519 = vmatpush1.msra.mxu0 0.0
  %520 = vmatprep.subr.mxu0 0.0
  %521 = vmatpush1.msra.mxu0 0.0
  %522 = vmatprep.subr.mxu0 0.0
  %523 = vmatpush1.msra.mxu0 0.0
  %524 = vmatprep.subr.mxu0 0.0
  %525 = vmatpush1.msra.mxu0 0.0
  %526 = vmatprep.subr.mxu0 0.0
  %527 = vmatpush1.msra.mxu0 0.0
  %528 = vmatprep.subr.mxu0 0.0
  %529 = vmatpush1.msra.mxu0 0.0
  %530 = vmatprep.subr.mxu0 0.0
  %531 = vmatpush1.msra.mxu0 0.0
  %532 = vmatprep.subr.mxu0 0.0
  %533 = vmatpush1.msra.mxu0 0.0
  %534 = vmatprep.subr.mxu0 0.0
  %535 = vmatpush1.msra.mxu0 0.0
  %536 = vmatprep.subr.mxu0 0.0
  %537 = vmatpush1.msra.mxu0 0.0
  %538 = vmatprep.subr.mxu0 0.0
  %539 = vmatpush1.msra.mxu0 0.0
  %540 = vmatprep.mubr.f32.mxu0 0.0
  %541 = vmatmul.mubr.f32.gmra.mrb[0].mxu0 %v403
  %v542 = vpop.f32.mrb[0].mxu0
  %v543 = vadd.f32 %v226, %v542
  %v544 = vpop.f32.mrb[0].mxu0
  %545 = vdwg.mxu0
  %v546 = vadd.f32 %v399, %v472
  %v547 = vadd.f32 %v400, %v474
  %v548 = vxor.u32 %v546, 2147483648
  %v549 = vxor.u32 %v547, 2147483648
  %v550 = vmul.f32 %v548, 1.442695
  %v551 = vpow.pop %v550
  %v552 = vmul.f32 %v549, 1.442695
  %v553 = vpow.pop %v552
  %v554 = vadd.f32 %v551, 1.0
  %v555 = vadd.f32 %v553, 1.0
  %v556 = vrcp.pop %v554
  %v557 = vmul.f32 1.0, %v556
  %v558 = vrcp.pop %v555
  %v559 = vmul.f32 1.0, %v558
  %v560 = vmul.f32 %v557, %v543
  %v561 = vadd.f32 %v401, %v560
  %v562 = vtanh.pop %v561
  %v563 = vsub.f32 %v394, %v562
  %v564 = vmul.f32 %v559, %v563
  %v565 = vadd.f32 %v562, %v564
  %s566 = scalar_lea.vmem [#allocation3], 8
  %567 = vst.msk [vmem:[%s566] sm:$0xff] %vm230, %v565
  %s568 = smul.u32 2, 3
  %s569 = smul.addr %s568, 8
  %s570 = scalar_lea.vmem [#allocation2], %s569
  %v571 = vld [vmem:[%s570] sm:$0xff]
  %v572 = vld [vmem:[%s570 + $0x8] sm:$0xff]
  %v573 = vld [vmem:[%s570 + $0x10] sm:$0xff]
  %v575 = vsel %vm230, %v565, 0
  %577 = vmatprep.subr.mxu0 %v196
  %578 = vmatpush1.msra.mxu0 %v195
  %579 = vmatprep.subr.mxu0 %v199
  %580 = vmatpush1.msra.mxu0 %v198
  %581 = vmatprep.subr.mxu0 %v202
  %582 = vmatpush1.msra.mxu0 %v201
  %583 = vmatprep.subr.mxu0 %v205
  %584 = vmatpush1.msra.mxu0 %v204
  %585 = vmatprep.subr.mxu0 0.0
  %586 = vmatpush1.msra.mxu0 0.0
  %587 = vmatprep.subr.mxu0 0.0
  %588 = vmatpush1.msra.mxu0 0.0
  %589 = vmatprep.subr.mxu0 0.0
  %590 = vmatpush1.msra.mxu0 0.0
  %591 = vmatprep.subr.mxu0 0.0
  %592 = vmatpush1.msra.mxu0 0.0
  %593 = vmatprep.subr.mxu0 0.0
  %594 = vmatpush1.msra.mxu0 0.0
  %595 = vmatprep.subr.mxu0 0.0
  %596 = vmatpush1.msra.mxu0 0.0
  %597 = vmatprep.subr.mxu0 0.0
  %598 = vmatpush1.msra.mxu0 0.0
  %599 = vmatprep.subr.mxu0 0.0
  %600 = vmatpush1.msra.mxu0 0.0
  %601 = vmatprep.subr.mxu0 0.0
  %602 = vmatpush1.msra.mxu0 0.0
  %603 = vmatprep.subr.mxu0 0.0
  %604 = vmatpush1.msra.mxu0 0.0
  %605 = vmatprep.subr.mxu0 0.0
  %606 = vmatpush1.msra.mxu0 0.0
  %607 = vmatprep.subr.mxu0 0.0
  %608 = vmatpush1.msra.mxu0 0.0
  %609 = vmatprep.subr.mxu0 0.0
  %610 = vmatpush1.msra.mxu0 0.0
  %611 = vmatprep.subr.mxu0 0.0
  %612 = vmatpush1.msra.mxu0 0.0
  %613 = vmatprep.subr.mxu0 0.0
  %614 = vmatpush1.msra.mxu0 0.0
  %615 = vmatprep.subr.mxu0 0.0
  %616 = vmatpush1.msra.mxu0 0.0
  %617 = vmatprep.subr.mxu0 0.0
  %618 = vmatpush1.msra.mxu0 0.0
  %619 = vmatprep.subr.mxu0 0.0
  %620 = vmatpush1.msra.mxu0 0.0
  %621 = vmatprep.subr.mxu0 0.0
  %622 = vmatpush1.msra.mxu0 0.0
  %623 = vmatprep.subr.mxu0 0.0
  %624 = vmatpush1.msra.mxu0 0.0
  %625 = vmatprep.subr.mxu0 0.0
  %626 = vmatpush1.msra.mxu0 0.0
  %627 = vmatprep.subr.mxu0 0.0
  %628 = vmatpush1.msra.mxu0 0.0
  %629 = vmatprep.subr.mxu0 0.0
  %630 = vmatpush1.msra.mxu0 0.0
  %631 = vmatprep.subr.mxu0 0.0
  %632 = vmatpush1.msra.mxu0 0.0
  %633 = vmatprep.subr.mxu0 0.0
  %634 = vmatpush1.msra.mxu0 0.0
  %635 = vmatprep.subr.mxu0 0.0
  %636 = vmatpush1.msra.mxu0 0.0
  %637 = vmatprep.subr.mxu0 0.0
  %638 = vmatpush1.msra.mxu0 0.0
  %639 = vmatprep.subr.mxu0 0.0
  %640 = vmatpush1.msra.mxu0 0.0
  %641 = vmatprep.mubr.f32.mxu0 0.0
  %642 = vmatmul.mubr.f32.gmra.mrb[0].mxu0 %v575
  %v643 = vpop.f32.mrb[0].mxu0
  %v644 = vadd.f32 %v218, %v643
  %v645 = vpop.f32.mrb[0].mxu0
  %v646 = vadd.f32 %v222, %v645
  %647 = vdwg.mxu0
  %648 = vmatprep.subr.mxu0 0.0
  %649 = vmatpush1.msra.mxu0 %v197
  %650 = vmatprep.subr.mxu0 0.0
  %651 = vmatpush1.msra.mxu0 %v200
  %652 = vmatprep.subr.mxu0 0.0
  %653 = vmatpush1.msra.mxu0 %v203
  %654 = vmatprep.subr.mxu0 0.0
  %655 = vmatpush1.msra.mxu0 %v206
  %656 = vmatprep.subr.mxu0 0.0
  %657 = vmatpush1.msra.mxu0 0.0
  %658 = vmatprep.subr.mxu0 0.0
  %659 = vmatpush1.msra.mxu0 0.0
  %660 = vmatprep.subr.mxu0 0.0
  %661 = vmatpush1.msra.mxu0 0.0
  %662 = vmatprep.subr.mxu0 0.0
  %663 = vmatpush1.msra.mxu0 0.0
  %664 = vmatprep.subr.mxu0 0.0
  %665 = vmatpush1.msra.mxu0 0.0
  %666 = vmatprep.subr.mxu0 0.0
  %667 = vmatpush1.msra.mxu0 0.0
  %668 = vmatprep.subr.mxu0 0.0
  %669 = vmatpush1.msra.mxu0 0.0
  %670 = vmatprep.subr.mxu0 0.0
  %671 = vmatpush1.msra.mxu0 0.0
  %672 = vmatprep.subr.mxu0 0.0
  %673 = vmatpush1.msra.mxu0 0.0
  %674 = vmatprep.subr.mxu0 0.0
  %675 = vmatpush1.msra.mxu0 0.0
  %676 = vmatprep.subr.mxu0 0.0
  %677 = vmatpush1.msra.mxu0 0.0
  %678 = vmatprep.subr.mxu0 0.0
  %679 = vmatpush1.msra.mxu0 0.0
  %680 = vmatprep.subr.mxu0 0.0
  %681 = vmatpush1.msra.mxu0 0.0
  %682 = vmatprep.subr.mxu0 0.0
  %683 = vmatpush1.msra.mxu0 0.0
  %684 = vmatprep.subr.mxu0 0.0
  %685 = vmatpush1.msra.mxu0 0.0
  %686 = vmatprep.subr.mxu0 0.0
  %687 = vmatpush1.msra.mxu0 0.0
  %688 = vmatprep.subr.mxu0 0.0
  %689 = vmatpush1.msra.mxu0 0.0
  %690 = vmatprep.subr.mxu0 0.0
  %691 = vmatpush1.msra.mxu0 0.0
  %692 = vmatprep.subr.mxu0 0.0
  %693 = vmatpush1.msra.mxu0 0.0
  %694 = vmatprep.subr.mxu0 0.0
  %695 = vmatpush1.msra.mxu0 0.0
  %696 = vmatprep.subr.mxu0 0.0
  %697 = vmatpush1.msra.mxu0 0.0
  %698 = vmatprep.subr.mxu0 0.0
  %699 = vmatpush1.msra.mxu0 0.0
  %700 = vmatprep.subr.mxu0 0.0
  %701 = vmatpush1.msra.mxu0 0.0
  %702 = vmatprep.subr.mxu0 0.0
  %703 = vmatpush1.msra.mxu0 0.0
  %704 = vmatprep.subr.mxu0 0.0
  %705 = vmatpush1.msra.mxu0 0.0
  %706 = vmatprep.subr.mxu0 0.0
  %707 = vmatpush1.msra.mxu0 0.0
  %708 = vmatprep.subr.mxu0 0.0
  %709 = vmatpush1.msra.mxu0 0.0
  %710 = vmatprep.subr.mxu0 0.0
  %711 = vmatpush1.msra.mxu0 0.0
  %712 = vmatprep.mubr.f32.mxu0 0.0
  %713 = vmatmul.mubr.f32.gmra.mrb[0].mxu0 %v575
  %v714 = vpop.f32.mrb[0].mxu0
  %v715 = vadd.f32 %v226, %v714
  %v716 = vpop.f32.mrb[0].mxu0
  %717 = vdwg.mxu0
  %v718 = vadd.f32 %v571, %v644
  %v719 = vadd.f32 %v572, %v646
  %v720 = vxor.u32 %v718, 2147483648
  %v721 = vxor.u32 %v719, 2147483648
  %v722 = vmul.f32 %v720, 1.442695
  %v723 = vpow.pop %v722
  %v724 = vmul.f32 %v721, 1.442695
  %v725 = vpow.pop %v724
  %v726 = vadd.f32 %v723, 1.0
  %v727 = vadd.f32 %v725, 1.0
  %v728 = vrcp.pop %v726
  %v729 = vmul.f32 1.0, %v728
  %v730 = vrcp.pop %v727
  %v731 = vmul.f32 1.0, %v730
  %v732 = vmul.f32 %v729, %v715
  %v733 = vadd.f32 %v573, %v732
  %v734 = vtanh.pop %v733
  %v735 = vsub.f32 %v565, %v734
  %v736 = vmul.f32 %v731, %v735
  %v737 = vadd.f32 %v734, %v736
  %s738 = scalar_lea.vmem [#allocation3], 16
  %739 = vst.msk [vmem:[%s738] sm:$0xff] %vm230, %v737
  %s740 = smul.u32 3, 3
  %s741 = smul.addr %s740, 8
  %s742 = scalar_lea.vmem [#allocation2], %s741
  %v743 = vld [vmem:[%s742] sm:$0xff]
  %v744 = vld [vmem:[%s742 + $0x8] sm:$0xff]
  %v745 = vld [vmem:[%s742 + $0x10] sm:$0xff]
  %v747 = vsel %vm230, %v737, 0
  %749 = vmatprep.subr.mxu0 %v196
  %750 = vmatpush1.msra.mxu0 %v195
  %751 = vmatprep.subr.mxu0 %v199
  %752 = vmatpush1.msra.mxu0 %v198
  %753 = vmatprep.subr.mxu0 %v202
  %754 = vmatpush1.msra.mxu0 %v201
  %755 = vmatprep.subr.mxu0 %v205
  %756 = vmatpush1.msra.mxu0 %v204
  %757 = vmatprep.subr.mxu0 0.0
  %758 = vmatpush1.msra.mxu0 0.0
  %759 = vmatprep.subr.mxu0 0.0
  %760 = vmatpush1.msra.mxu0 0.0
  %761 = vmatprep.subr.mxu0 0.0
  %762 = vmatpush1.msra.mxu0 0.0
  %763 = vmatprep.subr.mxu0 0.0
  %764 = vmatpush1.msra.mxu0 0.0
  %765 = vmatprep.subr.mxu0 0.0
  %766 = vmatpush1.msra.mxu0 0.0
  %767 = vmatprep.subr.mxu0 0.0
  %768 = vmatpush1.msra.mxu0 0.0
  %769 = vmatprep.subr.mxu0 0.0
  %770 = vmatpush1.msra.mxu0 0.0
  %771 = vmatprep.subr.mxu0 0.0
  %772 = vmatpush1.msra.mxu0 0.0
  %773 = vmatprep.subr.mxu0 0.0
  %774 = vmatpush1.msra.mxu0 0.0
  %775 = vmatprep.subr.mxu0 0.0
  %776 = vmatpush1.msra.mxu0 0.0
  %777 = vmatprep.subr.mxu0 0.0
  %778 = vmatpush1.msra.mxu0 0.0
  %779 = vmatprep.subr.mxu0 0.0
  %780 = vmatpush1.msra.mxu0 0.0
  %781 = vmatprep.subr.mxu0 0.0
  %782 = vmatpush1.msra.mxu0 0.0
  %783 = vmatprep.subr.mxu0 0.0
  %784 = vmatpush1.msra.mxu0 0.0
  %785 = vmatprep.subr.mxu0 0.0
  %786 = vmatpush1.msra.mxu0 0.0
  %787 = vmatprep.subr.mxu0 0.0
  %788 = vmatpush1.msra.mxu0 0.0
  %789 = vmatprep.subr.mxu0 0.0
  %790 = vmatpush1.msra.mxu0 0.0
  %791 = vmatprep.subr.mxu0 0.0
  %792 = vmatpush1.msra.mxu0 0.0
  %793 = vmatprep.subr.mxu0 0.0
  %794 = vmatpush1.msra.mxu0 0.0
  %795 = vmatprep.subr.mxu0 0.0
  %796 = vmatpush1.msra.mxu0 0.0
  %797 = vmatprep.subr.mxu0 0.0
  %798 = vmatpush1.msra.mxu0 0.0
  %799 = vmatprep.subr.mxu0 0.0
  %800 = vmatpush1.msra.mxu0 0.0
  %801 = vmatprep.subr.mxu0 0.0
  %802 = vmatpush1.msra.mxu0 0.0
  %803 = vmatprep.subr.mxu0 0.0
  %804 = vmatpush1.msra.mxu0 0.0
  %805 = vmatprep.subr.mxu0 0.0
  %806 = vmatpush1.msra.mxu0 0.0
  %807 = vmatprep.subr.mxu0 0.0
  %808 = vmatpush1.msra.mxu0 0.0
  %809 = vmatprep.subr.mxu0 0.0
  %810 = vmatpush1.msra.mxu0 0.0
  %811 = vmatprep.subr.mxu0 0.0
  %812 = vmatpush1.msra.mxu0 0.0
  %813 = vmatprep.mubr.f32.mxu0 0.0
  %814 = vmatmul.mubr.f32.gmra.mrb[0].mxu0 %v747
  %v815 = vpop.f32.mrb[0].mxu0
  %v816 = vadd.f32 %v218, %v815
  %v817 = vpop.f32.mrb[0].mxu0
  %v818 = vadd.f32 %v222, %v817
  %819 = vdwg.mxu0
  %820 = vmatprep.subr.mxu0 0.0
  %821 = vmatpush1.msra.mxu0 %v197
  %822 = vmatprep.subr.mxu0 0.0
  %823 = vmatpush1.msra.mxu0 %v200
  %824 = vmatprep.subr.mxu0 0.0
  %825 = vmatpush1.msra.mxu0 %v203
  %826 = vmatprep.subr.mxu0 0.0
  %827 = vmatpush1.msra.mxu0 %v206
  %828 = vmatprep.subr.mxu0 0.0
  %829 = vmatpush1.msra.mxu0 0.0
  %830 = vmatprep.subr.mxu0 0.0
  %831 = vmatpush1.msra.mxu0 0.0
  %832 = vmatprep.subr.mxu0 0.0
  %833 = vmatpush1.msra.mxu0 0.0
  %834 = vmatprep.subr.mxu0 0.0
  %835 = vmatpush1.msra.mxu0 0.0
  %836 = vmatprep.subr.mxu0 0.0
  %837 = vmatpush1.msra.mxu0 0.0
  %838 = vmatprep.subr.mxu0 0.0
  %839 = vmatpush1.msra.mxu0 0.0
  %840 = vmatprep.subr.mxu0 0.0
  %841 = vmatpush1.msra.mxu0 0.0
  %842 = vmatprep.subr.mxu0 0.0
  %843 = vmatpush1.msra.mxu0 0.0
  %844 = vmatprep.subr.mxu0 0.0
  %845 = vmatpush1.msra.mxu0 0.0
  %846 = vmatprep.subr.mxu0 0.0
  %847 = vmatpush1.msra.mxu0 0.0
  %848 = vmatprep.subr.mxu0 0.0
  %849 = vmatpush1.msra.mxu0 0.0
  %850 = vmatprep.subr.mxu0 0.0
  %851 = vmatpush1.msra.mxu0 0.0
  %852 = vmatprep.subr.mxu0 0.0
  %853 = vmatpush1.msra.mxu0 0.0
  %854 = vmatprep.subr.mxu0 0.0
  %855 = vmatpush1.msra.mxu0 0.0
  %856 = vmatprep.subr.mxu0 0.0
  %857 = vmatpush1.msra.mxu0 0.0
  %858 = vmatprep.subr.mxu0 0.0
  %859 = vmatpush1.msra.mxu0 0.0
  %860 = vmatprep.subr.mxu0 0.0
  %861 = vmatpush1.msra.mxu0 0.0
  %862 = vmatprep.subr.mxu0 0.0
  %863 = vmatpush1.msra.mxu0 0.0
  %864 = vmatprep.subr.mxu0 0.0
  %865 = vmatpush1.msra.mxu0 0.0
  %866 = vmatprep.subr.mxu0 0.0
  %867 = vmatpush1.msra.mxu0 0.0
  %868 = vmatprep.subr.mxu0 0.0
  %869 = vmatpush1.msra.mxu0 0.0
  %870 = vmatprep.subr.mxu0 0.0
  %871 = vmatpush1.msra.mxu0 0.0
  %872 = vmatprep.subr.mxu0 0.0
  %873 = vmatpush1.msra.mxu0 0.0
  %874 = vmatprep.subr.mxu0 0.0
  %875 = vmatpush1.msra.mxu0 0.0
  %876 = vmatprep.subr.mxu0 0.0
  %877 = vmatpush1.msra.mxu0 0.0
  %878 = vmatprep.subr.mxu0 0.0
  %879 = vmatpush1.msra.mxu0 0.0
  %880 = vmatprep.subr.mxu0 0.0
  %881 = vmatpush1.msra.mxu0 0.0
  %882 = vmatprep.subr.mxu0 0.0
  %883 = vmatpush1.msra.mxu0 0.0
  %884 = vmatprep.mubr.f32.mxu0 0.0
  %885 = vmatmul.mubr.f32.gmra.mrb[0].mxu0 %v747
  %v886 = vpop.f32.mrb[0].mxu0
  %v887 = vadd.f32 %v226, %v886
  %v888 = vpop.f32.mrb[0].mxu0
  %889 = vdwg.mxu0
  %v890 = vadd.f32 %v743, %v816
  %v891 = vadd.f32 %v744, %v818
  %v892 = vxor.u32 %v890, 2147483648
  %v893 = vxor.u32 %v891, 2147483648
  %v894 = vmul.f32 %v892, 1.442695
  %v895 = vpow.pop %v894
  %v896 = vmul.f32 %v893, 1.442695
  %v897 = vpow.pop %v896
  %v898 = vadd.f32 %v895, 1.0
  %v899 = vadd.f32 %v897, 1.0
  %v900 = vrcp.pop %v898
  %v901 = vmul.f32 1.0, %v900
  %v902 = vrcp.pop %v899
  %v903 = vmul.f32 1.0, %v902
  %v904 = vmul.f32 %v901, %v887
  %v905 = vadd.f32 %v745, %v904
  %v906 = vtanh.pop %v905
  %v907 = vsub.f32 %v737, %v906
  %v908 = vmul.f32 %v903, %v907
  %v909 = vadd.f32 %v906, %v908
  %s910 = scalar_lea.vmem [#allocation3], 24
  %911 = vst.msk [vmem:[%s910] sm:$0xff] %vm230, %v909
  %s912 = smul.u32 4, 3
  %s913 = smul.addr %s912, 8
  %s914 = scalar_lea.vmem [#allocation2], %s913
  %v915 = vld [vmem:[%s914] sm:$0xff]
  %v916 = vld [vmem:[%s914 + $0x8] sm:$0xff]
  %v917 = vld [vmem:[%s914 + $0x10] sm:$0xff]
  %v919 = vsel %vm230, %v909, 0
  %921 = vmatprep.subr.mxu0 %v196
  %922 = vmatpush1.msra.mxu0 %v195
  %923 = vmatprep.subr.mxu0 %v199
  %924 = vmatpush1.msra.mxu0 %v198
  %925 = vmatprep.subr.mxu0 %v202
  %926 = vmatpush1.msra.mxu0 %v201
  %927 = vmatprep.subr.mxu0 %v205
  %928 = vmatpush1.msra.mxu0 %v204
  %929 = vmatprep.subr.mxu0 0.0
  %930 = vmatpush1.msra.mxu0 0.0
  %931 = vmatprep.subr.mxu0 0.0
  %932 = vmatpush1.msra.mxu0 0.0
  %933 = vmatprep.subr.mxu0 0.0
  %934 = vmatpush1.msra.mxu0 0.0
  %935 = vmatprep.subr.mxu0 0.0
  %936 = vmatpush1.msra.mxu0 0.0
  %937 = vmatprep.subr.mxu0 0.0
  %938 = vmatpush1.msra.mxu0 0.0
  %939 = vmatprep.subr.mxu0 0.0
  %940 = vmatpush1.msra.mxu0 0.0
  %941 = vmatprep.subr.mxu0 0.0
  %942 = vmatpush1.msra.mxu0 0.0
  %943 = vmatprep.subr.mxu0 0.0
  %944 = vmatpush1.msra.mxu0 0.0
  %945 = vmatprep.subr.mxu0 0.0
  %946 = vmatpush1.msra.mxu0 0.0
  %947 = vmatprep.subr.mxu0 0.0
  %948 = vmatpush1.msra.mxu0 0.0
  %949 = vmatprep.subr.mxu0 0.0
  %950 = vmatpush1.msra.mxu0 0.0
  %951 = vmatprep.subr.mxu0 0.0
  %952 = vmatpush1.msra.mxu0 0.0
  %953 = vmatprep.subr.mxu0 0.0
  %954 = vmatpush1.msra.mxu0 0.0
  %955 = vmatprep.subr.mxu0 0.0
  %956 = vmatpush1.msra.mxu0 0.0
  %957 = vmatprep.subr.mxu0 0.0
  %958 = vmatpush1.msra.mxu0 0.0
  %959 = vmatprep.subr.mxu0 0.0
  %960 = vmatpush1.msra.mxu0 0.0
  %961 = vmatprep.subr.mxu0 0.0
  %962 = vmatpush1.msra.mxu0 0.0
  %963 = vmatprep.subr.mxu0 0.0
  %964 = vmatpush1.msra.mxu0 0.0
  %965 = vmatprep.subr.mxu0 0.0
  %966 = vmatpush1.msra.mxu0 0.0
  %967 = vmatprep.subr.mxu0 0.0
  %968 = vmatpush1.msra.mxu0 0.0
  %969 = vmatprep.subr.mxu0 0.0
  %970 = vmatpush1.msra.mxu0 0.0
  %971 = vmatprep.subr.mxu0 0.0
  %972 = vmatpush1.msra.mxu0 0.0
  %973 = vmatprep.subr.mxu0 0.0
  %974 = vmatpush1.msra.mxu0 0.0
  %975 = vmatprep.subr.mxu0 0.0
  %976 = vmatpush1.msra.mxu0 0.0
  %977 = vmatprep.subr.mxu0 0.0
  %978 = vmatpush1.msra.mxu0 0.0
  %979 = vmatprep.subr.mxu0 0.0
  %980 = vmatpush1.msra.mxu0 0.0
  %981 = vmatprep.subr.mxu0 0.0
  %982 = vmatpush1.msra.mxu0 0.0
  %983 = vmatprep.subr.mxu0 0.0
  %984 = vmatpush1.msra.mxu0 0.0
  %985 = vmatprep.mubr.f32.mxu0 0.0
  %986 = vmatmul.mubr.f32.gmra.mrb[0].mxu0 %v919
  %v987 = vpop.f32.mrb[0].mxu0
  %v988 = vadd.f32 %v218, %v987
  %v989 = vpop.f32.mrb[0].mxu0
  %v990 = vadd.f32 %v222, %v989
  %991 = vdwg.mxu0
  %992 = vmatprep.subr.mxu0 0.0
  %993 = vmatpush1.msra.mxu0 %v197
  %994 = vmatprep.subr.mxu0 0.0
  %995 = vmatpush1.msra.mxu0 %v200
  %996 = vmatprep.subr.mxu0 0.0
  %997 = vmatpush1.msra.mxu0 %v203
  %998 = vmatprep.subr.mxu0 0.0
  %999 = vmatpush1.msra.mxu0 %v206
  %1000 = vmatprep.subr.mxu0 0.0
  %1001 = vmatpush1.msra.mxu0 0.0
  %1002 = vmatprep.subr.mxu0 0.0
  %1003 = vmatpush1.msra.mxu0 0.0
  %1004 = vmatprep.subr.mxu0 0.0
  %1005 = vmatpush1.msra.mxu0 0.0
  %1006 = vmatprep.subr.mxu0 0.0
  %1007 = vmatpush1.msra.mxu0 0.0
  %1008 = vmatprep.subr.mxu0 0.0
  %1009 = vmatpush1.msra.mxu0 0.0
  %1010 = vmatprep.subr.mxu0 0.0
  %1011 = vmatpush1.msra.mxu0 0.0
  %1012 = vmatprep.subr.mxu0 0.0
  %1013 = vmatpush1.msra.mxu0 0.0
  %1014 = vmatprep.subr.mxu0 0.0
  %1015 = vmatpush1.msra.mxu0 0.0
  %1016 = vmatprep.subr.mxu0 0.0
  %1017 = vmatpush1.msra.mxu0 0.0
  %1018 = vmatprep.subr.mxu0 0.0
  %1019 = vmatpush1.msra.mxu0 0.0
  %1020 = vmatprep.subr.mxu0 0.0
  %1021 = vmatpush1.msra.mxu0 0.0
  %1022 = vmatprep.subr.mxu0 0.0
  %1023 = vmatpush1.msra.mxu0 0.0
  %1024 = vmatprep.subr.mxu0 0.0
  %1025 = vmatpush1.msra.mxu0 0.0
  %1026 = vmatprep.subr.mxu0 0.0
  %1027 = vmatpush1.msra.mxu0 0.0
  %1028 = vmatprep.subr.mxu0 0.0
  %1029 = vmatpush1.msra.mxu0 0.0
  %1030 = vmatprep.subr.mxu0 0.0
  %1031 = vmatpush1.msra.mxu0 0.0
  %1032 = vmatprep.subr.mxu0 0.0
  %1033 = vmatpush1.msra.mxu0 0.0
  %1034 = vmatprep.subr.mxu0 0.0
  %1035 = vmatpush1.msra.mxu0 0.0
  %1036 = vmatprep.subr.mxu0 0.0
  %1037 = vmatpush1.msra.mxu0 0.0
  %1038 = vmatprep.subr.mxu0 0.0
  %1039 = vmatpush1.msra.mxu0 0.0
  %1040 = vmatprep.subr.mxu0 0.0
  %1041 = vmatpush1.msra.mxu0 0.0
  %1042 = vmatprep.subr.mxu0 0.0
  %1043 = vmatpush1.msra.mxu0 0.0
  %1044 = vmatprep.subr.mxu0 0.0
  %1045 = vmatpush1.msra.mxu0 0.0
  %1046 = vmatprep.subr.mxu0 0.0
  %1047 = vmatpush1.msra.mxu0 0.0
  %1048 = vmatprep.subr.mxu0 0.0
  %1049 = vmatpush1.msra.mxu0 0.0
  %1050 = vmatprep.subr.mxu0 0.0
  %1051 = vmatpush1.msra.mxu0 0.0
  %1052 = vmatprep.subr.mxu0 0.0
  %1053 = vmatpush1.msra.mxu0 0.0
  %1054 = vmatprep.subr.mxu0 0.0
  %1055 = vmatpush1.msra.mxu0 0.0
  %1056 = vmatprep.mubr.f32.mxu0 0.0
  %1057 = vmatmul.mubr.f32.gmra.mrb[0].mxu0 %v919
  %v1058 = vpop.f32.mrb[0].mxu0
  %v1059 = vadd.f32 %v226, %v1058
  %v1060 = vpop.f32.mrb[0].mxu0
  %1061 = vdwg.mxu0
  %v1062 = vadd.f32 %v915, %v988
  %v1063 = vadd.f32 %v916, %v990
  %v1064 = vxor.u32 %v1062, 2147483648
  %v1065 = vxor.u32 %v1063, 2147483648
  %v1066 = vmul.f32 %v1064, 1.442695
  %v1067 = vpow.pop %v1066
  %v1068 = vmul.f32 %v1065, 1.442695
  %v1069 = vpow.pop %v1068
  %v1070 = vadd.f32 %v1067, 1.0
  %v1071 = vadd.f32 %v1069, 1.0
  %v1072 = vrcp.pop %v1070
  %v1073 = vmul.f32 1.0, %v1072
  %v1074 = vrcp.pop %v1071
  %v1075 = vmul.f32 1.0, %v1074
  %v1076 = vmul.f32 %v1073, %v1059
  %v1077 = vadd.f32 %v917, %v1076
  %v1078 = vtanh.pop %v1077
  %v1079 = vsub.f32 %v909, %v1078
  %v1080 = vmul.f32 %v1075, %v1079
  %v1081 = vadd.f32 %v1078, %v1080
  %s1082 = scalar_lea.vmem [#allocation3], 32
  %1083 = vst.msk [vmem:[%s1082] sm:$0xff] %vm230, %v1081
  %s1084 = smul.u32 5, 3
  %s1085 = smul.addr %s1084, 8
  %s1086 = scalar_lea.vmem [#allocation2], %s1085
  %v1087 = vld [vmem:[%s1086] sm:$0xff]
  %v1088 = vld [vmem:[%s1086 + $0x8] sm:$0xff]
  %v1089 = vld [vmem:[%s1086 + $0x10] sm:$0xff]
  %v1091 = vsel %vm230, %v1081, 0
  %1093 = vmatprep.subr.mxu0 %v196
  %1094 = vmatpush1.msra.mxu0 %v195
  %1095 = vmatprep.subr.mxu0 %v199
  %1096 = vmatpush1.msra.mxu0 %v198
  %1097 = vmatprep.subr.mxu0 %v202
  %1098 = vmatpush1.msra.mxu0 %v201
  %1099 = vmatprep.subr.mxu0 %v205
  %1100 = vmatpush1.msra.mxu0 %v204
  %1101 = vmatprep.subr.mxu0 0.0
  %1102 = vmatpush1.msra.mxu0 0.0
  %1103 = vmatprep.subr.mxu0 0.0
  %1104 = vmatpush1.msra.mxu0 0.0
  %1105 = vmatprep.subr.mxu0 0.0
  %1106 = vmatpush1.msra.mxu0 0.0
  %1107 = vmatprep.subr.mxu0 0.0
  %1108 = vmatpush1.msra.mxu0 0.0
  %1109 = vmatprep.subr.mxu0 0.0
  %1110 = vmatpush1.msra.mxu0 0.0
  %1111 = vmatprep.subr.mxu0 0.0
  %1112 = vmatpush1.msra.mxu0 0.0
  %1113 = vmatprep.subr.mxu0 0.0
  %1114 = vmatpush1.msra.mxu0 0.0
  %1115 = vmatprep.subr.mxu0 0.0
  %1116 = vmatpush1.msra.mxu0 0.0
  %1117 = vmatprep.subr.mxu0 0.0
  %1118 = vmatpush1.msra.mxu0 0.0
  %1119 = vmatprep.subr.mxu0 0.0
  %1120 = vmatpush1.msra.mxu0 0.0
  %1121 = vmatprep.subr.mxu0 0.0
  %1122 = vmatpush1.msra.mxu0 0.0
  %1123 = vmatprep.subr.mxu0 0.0
  %1124 = vmatpush1.msra.mxu0 0.0
  %1125 = vmatprep.subr.mxu0 0.0
  %1126 = vmatpush1.msra.mxu0 0.0
  %1127 = vmatprep.subr.mxu0 0.0
  %1128 = vmatpush1.msra.mxu0 0.0
  %1129 = vmatprep.subr.mxu0 0.0
  %1130 = vmatpush1.msra.mxu0 0.0
  %1131 = vmatprep.subr.mxu0 0.0
  %1132 = vmatpush1.msra.mxu0 0.0
  %1133 = vmatprep.subr.mxu0 0.0
  %1134 = vmatpush1.msra.mxu0 0.0
  %1135 = vmatprep.subr.mxu0 0.0
  %1136 = vmatpush1.msra.mxu0 0.0
  %1137 = vmatprep.subr.mxu0 0.0
  %1138 = vmatpush1.msra.mxu0 0.0
  %1139 = vmatprep.subr.mxu0 0.0
  %1140 = vmatpush1.msra.mxu0 0.0
  %1141 = vmatprep.subr.mxu0 0.0
  %1142 = vmatpush1.msra.mxu0 0.0
  %1143 = vmatprep.subr.mxu0 0.0
  %1144 = vmatpush1.msra.mxu0 0.0
  %1145 = vmatprep.subr.mxu0 0.0
  %1146 = vmatpush1.msra.mxu0 0.0
  %1147 = vmatprep.subr.mxu0 0.0
  %1148 = vmatpush1.msra.mxu0 0.0
  %1149 = vmatprep.subr.mxu0 0.0
  %1150 = vmatpush1.msra.mxu0 0.0
  %1151 = vmatprep.subr.mxu0 0.0
  %1152 = vmatpush1.msra.mxu0 0.0
  %1153 = vmatprep.subr.mxu0 0.0
  %1154 = vmatpush1.msra.mxu0 0.0
  %1155 = vmatprep.subr.mxu0 0.0
  %1156 = vmatpush1.msra.mxu0 0.0
  %1157 = vmatprep.mubr.f32.mxu0 0.0
  %1158 = vmatmul.mubr.f32.gmra.mrb[0].mxu0 %v1091
  %v1159 = vpop.f32.mrb[0].mxu0
  %v1160 = vadd.f32 %v218, %v1159
  %v1161 = vpop.f32.mrb[0].mxu0
  %v1162 = vadd.f32 %v222, %v1161
  %1163 = vdwg.mxu0
  %1164 = vmatprep.subr.mxu0 0.0
  %1165 = vmatpush1.msra.mxu0 %v197
  %1166 = vmatprep.subr.mxu0 0.0
  %1167 = vmatpush1.msra.mxu0 %v200
  %1168 = vmatprep.subr.mxu0 0.0
  %1169 = vmatpush1.msra.mxu0 %v203
  %1170 = vmatprep.subr.mxu0 0.0
  %1171 = vmatpush1.msra.mxu0 %v206
  %1172 = vmatprep.subr.mxu0 0.0
  %1173 = vmatpush1.msra.mxu0 0.0
  %1174 = vmatprep.subr.mxu0 0.0
  %1175 = vmatpush1.msra.mxu0 0.0
  %1176 = vmatprep.subr.mxu0 0.0
  %1177 = vmatpush1.msra.mxu0 0.0
  %1178 = vmatprep.subr.mxu0 0.0
  %1179 = vmatpush1.msra.mxu0 0.0
  %1180 = vmatprep.subr.mxu0 0.0
  %1181 = vmatpush1.msra.mxu0 0.0
  %1182 = vmatprep.subr.mxu0 0.0
  %1183 = vmatpush1.msra.mxu0 0.0
  %1184 = vmatprep.subr.mxu0 0.0
  %1185 = vmatpush1.msra.mxu0 0.0
  %1186 = vmatprep.subr.mxu0 0.0
  %1187 = vmatpush1.msra.mxu0 0.0
  %1188 = vmatprep.subr.mxu0 0.0
  %1189 = vmatpush1.msra.mxu0 0.0
  %1190 = vmatprep.subr.mxu0 0.0
  %1191 = vmatpush1.msra.mxu0 0.0
  %1192 = vmatprep.subr.mxu0 0.0
  %1193 = vmatpush1.msra.mxu0 0.0
  %1194 = vmatprep.subr.mxu0 0.0
  %1195 = vmatpush1.msra.mxu0 0.0
  %1196 = vmatprep.subr.mxu0 0.0
  %1197 = vmatpush1.msra.mxu0 0.0
  %1198 = vmatprep.subr.mxu0 0.0
  %1199 = vmatpush1.msra.mxu0 0.0
  %1200 = vmatprep.subr.mxu0 0.0
  %1201 = vmatpush1.msra.mxu0 0.0
  %1202 = vmatprep.subr.mxu0 0.0
  %1203 = vmatpush1.msra.mxu0 0.0
  %1204 = vmatprep.subr.mxu0 0.0
  %1205 = vmatpush1.msra.mxu0 0.0
  %1206 = vmatprep.subr.mxu0 0.0
  %1207 = vmatpush1.msra.mxu0 0.0
  %1208 = vmatprep.subr.mxu0 0.0
  %1209 = vmatpush1.msra.mxu0 0.0
  %1210 = vmatprep.subr.mxu0 0.0
  %1211 = vmatpush1.msra.mxu0 0.0
  %1212 = vmatprep.subr.mxu0 0.0
  %1213 = vmatpush1.msra.mxu0 0.0
  %1214 = vmatprep.subr.mxu0 0.0
  %1215 = vmatpush1.msra.mxu0 0.0
  %1216 = vmatprep.subr.mxu0 0.0
  %1217 = vmatpush1.msra.mxu0 0.0
  %1218 = vmatprep.subr.mxu0 0.0
  %1219 = vmatpush1.msra.mxu0 0.0
  %1220 = vmatprep.subr.mxu0 0.0
  %1221 = vmatpush1.msra.mxu0 0.0
  %1222 = vmatprep.subr.mxu0 0.0
  %1223 = vmatpush1.msra.mxu0 0.0
  %1224 = vmatprep.subr.mxu0 0.0
  %1225 = vmatpush1.msra.mxu0 0.0
  %1226 = vmatprep.subr.mxu0 0.0
  %1227 = vmatpush1.msra.mxu0 0.0
  %1228 = vmatprep.mubr.f32.mxu0 0.0
  %1229 = vmatmul.mubr.f32.gmra.mrb[0].mxu0 %v1091
  %v1230 = vpop.f32.mrb[0].mxu0
  %v1231 = vadd.f32 %v226, %v1230
  %v1232 = vpop.f32.mrb[0].mxu0
  %1233 = vdwg.mxu0
  %v1234 = vadd.f32 %v1087, %v1160
  %v1235 = vadd.f32 %v1088, %v1162
  %v1236 = vxor.u32 %v1234, 2147483648
  %v1237 = vxor.u32 %v1235, 2147483648
  %v1238 = vmul.f32 %v1236, 1.442695
  %v1239 = vpow.pop %v1238
  %v1240 = vmul.f32 %v1237, 1.442695
  %v1241 = vpow.pop %v1240
  %v1242 = vadd.f32 %v1239, 1.0
  %v1243 = vadd.f32 %v1241, 1.0
  %v1244 = vrcp.pop %v1242
  %v1245 = vmul.f32 1.0, %v1244
  %v1246 = vrcp.pop %v1243
  %v1247 = vmul.f32 1.0, %v1246
  %v1248 = vmul.f32 %v1245, %v1231
  %v1249 = vadd.f32 %v1089, %v1248
  %v1250 = vtanh.pop %v1249
  %v1251 = vsub.f32 %v1081, %v1250
  %v1252 = vmul.f32 %v1247, %v1251
  %v1253 = vadd.f32 %v1250, %v1252
  %s1254 = scalar_lea.vmem [#allocation3], 40
  %1255 = vst.msk [vmem:[%s1254] sm:$0xff] %vm230, %v1253
  %s1256 = smul.u32 6, 3
  %s1257 = smul.addr %s1256, 8
  %s1258 = scalar_lea.vmem [#allocation2], %s1257
  %v1259 = vld [vmem:[%s1258] sm:$0xff]
  %v1260 = vld [vmem:[%s1258 + $0x8] sm:$0xff]
  %v1261 = vld [vmem:[%s1258 + $0x10] sm:$0xff]
  %v1263 = vsel %vm230, %v1253, 0
  %1265 = vmatprep.subr.mxu0 %v196
  %1266 = vmatpush1.msra.mxu0 %v195
  %1267 = vmatprep.subr.mxu0 %v199
  %1268 = vmatpush1.msra.mxu0 %v198
  %1269 = vmatprep.subr.mxu0 %v202
  %1270 = vmatpush1.msra.mxu0 %v201
  %1271 = vmatprep.subr.mxu0 %v205
  %1272 = vmatpush1.msra.mxu0 %v204
  %1273 = vmatprep.subr.mxu0 0.0
  %1274 = vmatpush1.msra.mxu0 0.0
  %1275 = vmatprep.subr.mxu0 0.0
  %1276 = vmatpush1.msra.mxu0 0.0
  %1277 = vmatprep.subr.mxu0 0.0
  %1278 = vmatpush1.msra.mxu0 0.0
  %1279 = vmatprep.subr.mxu0 0.0
  %1280 = vmatpush1.msra.mxu0 0.0
  %1281 = vmatprep.subr.mxu0 0.0
  %1282 = vmatpush1.msra.mxu0 0.0
  %1283 = vmatprep.subr.mxu0 0.0
  %1284 = vmatpush1.msra.mxu0 0.0
  %1285 = vmatprep.subr.mxu0 0.0
  %1286 = vmatpush1.msra.mxu0 0.0
  %1287 = vmatprep.subr.mxu0 0.0
  %1288 = vmatpush1.msra.mxu0 0.0
  %1289 = vmatprep.subr.mxu0 0.0
  %1290 = vmatpush1.msra.mxu0 0.0
  %1291 = vmatprep.subr.mxu0 0.0
  %1292 = vmatpush1.msra.mxu0 0.0
  %1293 = vmatprep.subr.mxu0 0.0
  %1294 = vmatpush1.msra.mxu0 0.0
  %1295 = vmatprep.subr.mxu0 0.0
  %1296 = vmatpush1.msra.mxu0 0.0
  %1297 = vmatprep.subr.mxu0 0.0
  %1298 = vmatpush1.msra.mxu0 0.0
  %1299 = vmatprep.subr.mxu0 0.0
  %1300 = vmatpush1.msra.mxu0 0.0
  %1301 = vmatprep.subr.mxu0 0.0
  %1302 = vmatpush1.msra.mxu0 0.0
  %1303 = vmatprep.subr.mxu0 0.0
  %1304 = vmatpush1.msra.mxu0 0.0
  %1305 = vmatprep.subr.mxu0 0.0
  %1306 = vmatpush1.msra.mxu0 0.0
  %1307 = vmatprep.subr.mxu0 0.0
  %1308 = vmatpush1.msra.mxu0 0.0
  %1309 = vmatprep.subr.mxu0 0.0
  %1310 = vmatpush1.msra.mxu0 0.0
  %1311 = vmatprep.subr.mxu0 0.0
  %1312 = vmatpush1.msra.mxu0 0.0
  %1313 = vmatprep.subr.mxu0 0.0
  %1314 = vmatpush1.msra.mxu0 0.0
  %1315 = vmatprep.subr.mxu0 0.0
  %1316 = vmatpush1.msra.mxu0 0.0
  %1317 = vmatprep.subr.mxu0 0.0
  %1318 = vmatpush1.msra.mxu0 0.0
  %1319 = vmatprep.subr.mxu0 0.0
  %1320 = vmatpush1.msra.mxu0 0.0
  %1321 = vmatprep.subr.mxu0 0.0
  %1322 = vmatpush1.msra.mxu0 0.0
  %1323 = vmatprep.subr.mxu0 0.0
  %1324 = vmatpush1.msra.mxu0 0.0
  %1325 = vmatprep.subr.mxu0 0.0
  %1326 = vmatpush1.msra.mxu0 0.0
  %1327 = vmatprep.subr.mxu0 0.0
  %1328 = vmatpush1.msra.mxu0 0.0
  %1329 = vmatprep.mubr.f32.mxu0 0.0
  %1330 = vmatmul.mubr.f32.gmra.mrb[0].mxu0 %v1263
  %v1331 = vpop.f32.mrb[0].mxu0
  %v1332 = vadd.f32 %v218, %v1331
  %v1333 = vpop.f32.mrb[0].mxu0
  %v1334 = vadd.f32 %v222, %v1333
  %1335 = vdwg.mxu0
  %1336 = vmatprep.subr.mxu0 0.0
  %1337 = vmatpush1.msra.mxu0 %v197
  %1338 = vmatprep.subr.mxu0 0.0
  %1339 = vmatpush1.msra.mxu0 %v200
  %1340 = vmatprep.subr.mxu0 0.0
  %1341 = vmatpush1.msra.mxu0 %v203
  %1342 = vmatprep.subr.mxu0 0.0
  %1343 = vmatpush1.msra.mxu0 %v206
  %1344 = vmatprep.subr.mxu0 0.0
  %1345 = vmatpush1.msra.mxu0 0.0
  %1346 = vmatprep.subr.mxu0 0.0
  %1347 = vmatpush1.msra.mxu0 0.0
  %1348 = vmatprep.subr.mxu0 0.0
  %1349 = vmatpush1.msra.mxu0 0.0
  %1350 = vmatprep.subr.mxu0 0.0
  %1351 = vmatpush1.msra.mxu0 0.0
  %1352 = vmatprep.subr.mxu0 0.0
  %1353 = vmatpush1.msra.mxu0 0.0
  %1354 = vmatprep.subr.mxu0 0.0
  %1355 = vmatpush1.msra.mxu0 0.0
  %1356 = vmatprep.subr.mxu0 0.0
  %1357 = vmatpush1.msra.mxu0 0.0
  %1358 = vmatprep.subr.mxu0 0.0
  %1359 = vmatpush1.msra.mxu0 0.0
  %1360 = vmatprep.subr.mxu0 0.0
  %1361 = vmatpush1.msra.mxu0 0.0
  %1362 = vmatprep.subr.mxu0 0.0
  %1363 = vmatpush1.msra.mxu0 0.0
  %1364 = vmatprep.subr.mxu0 0.0
  %1365 = vmatpush1.msra.mxu0 0.0
  %1366 = vmatprep.subr.mxu0 0.0
  %1367 = vmatpush1.msra.mxu0 0.0
  %1368 = vmatprep.subr.mxu0 0.0
  %1369 = vmatpush1.msra.mxu0 0.0
  %1370 = vmatprep.subr.mxu0 0.0
  %1371 = vmatpush1.msra.mxu0 0.0
  %1372 = vmatprep.subr.mxu0 0.0
  %1373 = vmatpush1.msra.mxu0 0.0
  %1374 = vmatprep.subr.mxu0 0.0
  %1375 = vmatpush1.msra.mxu0 0.0
  %1376 = vmatprep.subr.mxu0 0.0
  %1377 = vmatpush1.msra.mxu0 0.0
  %1378 = vmatprep.subr.mxu0 0.0
  %1379 = vmatpush1.msra.mxu0 0.0
  %1380 = vmatprep.subr.mxu0 0.0
  %1381 = vmatpush1.msra.mxu0 0.0
  %1382 = vmatprep.subr.mxu0 0.0
  %1383 = vmatpush1.msra.mxu0 0.0
  %1384 = vmatprep.subr.mxu0 0.0
  %1385 = vmatpush1.msra.mxu0 0.0
  %1386 = vmatprep.subr.mxu0 0.0
  %1387 = vmatpush1.msra.mxu0 0.0
  %1388 = vmatprep.subr.mxu0 0.0
  %1389 = vmatpush1.msra.mxu0 0.0
  %1390 = vmatprep.subr.mxu0 0.0
  %1391 = vmatpush1.msra.mxu0 0.0
  %1392 = vmatprep.subr.mxu0 0.0
  %1393 = vmatpush1.msra.mxu0 0.0
  %1394 = vmatprep.subr.mxu0 0.0
  %1395 = vmatpush1.msra.mxu0 0.0
  %1396 = vmatprep.subr.mxu0 0.0
  %1397 = vmatpush1.msra.mxu0 0.0
  %1398 = vmatprep.subr.mxu0 0.0
  %1399 = vmatpush1.msra.mxu0 0.0
  %1400 = vmatprep.mubr.f32.mxu0 0.0
  %1401 = vmatmul.mubr.f32.gmra.mrb[0].mxu0 %v1263
  %v1402 = vpop.f32.mrb[0].mxu0
  %v1403 = vadd.f32 %v226, %v1402
  %v1404 = vpop.f32.mrb[0].mxu0
  %1405 = vdwg.mxu0
  %v1406 = vadd.f32 %v1259, %v1332
  %v1407 = vadd.f32 %v1260, %v1334
  %v1408 = vxor.u32 %v1406, 2147483648
  %v1409 = vxor.u32 %v1407, 2147483648
  %v1410 = vmul.f32 %v1408, 1.442695
  %v1411 = vpow.pop %v1410
  %v1412 = vmul.f32 %v1409, 1.442695
  %v1413 = vpow.pop %v1412
  %v1414 = vadd.f32 %v1411, 1.0
  %v1415 = vadd.f32 %v1413, 1.0
  %v1416 = vrcp.pop %v1414
  %v1417 = vmul.f32 1.0, %v1416
  %v1418 = vrcp.pop %v1415
  %v1419 = vmul.f32 1.0, %v1418
  %v1420 = vmul.f32 %v1417, %v1403
  %v1421 = vadd.f32 %v1261, %v1420
  %v1422 = vtanh.pop %v1421
  %v1423 = vsub.f32 %v1253, %v1422
  %v1424 = vmul.f32 %v1419, %v1423
  %v1425 = vadd.f32 %v1422, %v1424
  %s1426 = scalar_lea.vmem [#allocation3], 48
  %1427 = vst.msk [vmem:[%s1426] sm:$0xff] %vm230, %v1425
  %s1428 = smul.u32 7, 3
  %s1429 = smul.addr %s1428, 8
  %s1430 = scalar_lea.vmem [#allocation2], %s1429
  %v1431 = vld [vmem:[%s1430] sm:$0xff]
  %v1432 = vld [vmem:[%s1430 + $0x8] sm:$0xff]
  %v1433 = vld [vmem:[%s1430 + $0x10] sm:$0xff]
  %v1435 = vsel %vm230, %v1425, 0
  %1437 = vmatprep.subr.mxu0 %v196
  %1438 = vmatpush1.msra.mxu0 %v195
  %1439 = vmatprep.subr.mxu0 %v199
  %1440 = vmatpush1.msra.mxu0 %v198
  %1441 = vmatprep.subr.mxu0 %v202
  %1442 = vmatpush1.msra.mxu0 %v201
  %1443 = vmatprep.subr.mxu0 %v205
  %1444 = vmatpush1.msra.mxu0 %v204
  %1445 = vmatprep.subr.mxu0 0.0
  %1446 = vmatpush1.msra.mxu0 0.0
  %1447 = vmatprep.subr.mxu0 0.0
  %1448 = vmatpush1.msra.mxu0 0.0
  %1449 = vmatprep.subr.mxu0 0.0
  %1450 = vmatpush1.msra.mxu0 0.0
  %1451 = vmatprep.subr.mxu0 0.0
  %1452 = vmatpush1.msra.mxu0 0.0
  %1453 = vmatprep.subr.mxu0 0.0
  %1454 = vmatpush1.msra.mxu0 0.0
  %1455 = vmatprep.subr.mxu0 0.0
  %1456 = vmatpush1.msra.mxu0 0.0
  %1457 = vmatprep.subr.mxu0 0.0
  %1458 = vmatpush1.msra.mxu0 0.0
  %1459 = vmatprep.subr.mxu0 0.0
  %1460 = vmatpush1.msra.mxu0 0.0
  %1461 = vmatprep.subr.mxu0 0.0
  %1462 = vmatpush1.msra.mxu0 0.0
  %1463 = vmatprep.subr.mxu0 0.0
  %1464 = vmatpush1.msra.mxu0 0.0
  %1465 = vmatprep.subr.mxu0 0.0
  %1466 = vmatpush1.msra.mxu0 0.0
  %1467 = vmatprep.subr.mxu0 0.0
  %1468 = vmatpush1.msra.mxu0 0.0
  %1469 = vmatprep.subr.mxu0 0.0
  %1470 = vmatpush1.msra.mxu0 0.0
  %1471 = vmatprep.subr.mxu0 0.0
  %1472 = vmatpush1.msra.mxu0 0.0
  %1473 = vmatprep.subr.mxu0 0.0
  %1474 = vmatpush1.msra.mxu0 0.0
  %1475 = vmatprep.subr.mxu0 0.0
  %1476 = vmatpush1.msra.mxu0 0.0
  %1477 = vmatprep.subr.mxu0 0.0
  %1478 = vmatpush1.msra.mxu0 0.0
  %1479 = vmatprep.subr.mxu0 0.0
  %1480 = vmatpush1.msra.mxu0 0.0
  %1481 = vmatprep.subr.mxu0 0.0
  %1482 = vmatpush1.msra.mxu0 0.0
  %1483 = vmatprep.subr.mxu0 0.0
  %1484 = vmatpush1.msra.mxu0 0.0
  %1485 = vmatprep.subr.mxu0 0.0
  %1486 = vmatpush1.msra.mxu0 0.0
  %1487 = vmatprep.subr.mxu0 0.0
  %1488 = vmatpush1.msra.mxu0 0.0
  %1489 = vmatprep.subr.mxu0 0.0
  %1490 = vmatpush1.msra.mxu0 0.0
  %1491 = vmatprep.subr.mxu0 0.0
  %1492 = vmatpush1.msra.mxu0 0.0
  %1493 = vmatprep.subr.mxu0 0.0
  %1494 = vmatpush1.msra.mxu0 0.0
  %1495 = vmatprep.subr.mxu0 0.0
  %1496 = vmatpush1.msra.mxu0 0.0
  %1497 = vmatprep.subr.mxu0 0.0
  %1498 = vmatpush1.msra.mxu0 0.0
  %1499 = vmatprep.subr.mxu0 0.0
  %1500 = vmatpush1.msra.mxu0 0.0
  %1501 = vmatprep.mubr.f32.mxu0 0.0
  %1502 = vmatmul.mubr.f32.gmra.mrb[0].mxu0 %v1435
  %v1503 = vpop.f32.mrb[0].mxu0
  %v1504 = vadd.f32 %v218, %v1503
  %v1505 = vpop.f32.mrb[0].mxu0
  %v1506 = vadd.f32 %v222, %v1505
  %1507 = vdwg.mxu0
  %1508 = vmatprep.subr.mxu0 0.0
  %1509 = vmatpush1.msra.mxu0 %v197
  %1510 = vmatprep.subr.mxu0 0.0
  %1511 = vmatpush1.msra.mxu0 %v200
  %1512 = vmatprep.subr.mxu0 0.0
  %1513 = vmatpush1.msra.mxu0 %v203
  %1514 = vmatprep.subr.mxu0 0.0
  %1515 = vmatpush1.msra.mxu0 %v206
  %1516 = vmatprep.subr.mxu0 0.0
  %1517 = vmatpush1.msra.mxu0 0.0
  %1518 = vmatprep.subr.mxu0 0.0
  %1519 = vmatpush1.msra.mxu0 0.0
  %1520 = vmatprep.subr.mxu0 0.0
  %1521 = vmatpush1.msra.mxu0 0.0
  %1522 = vmatprep.subr.mxu0 0.0
  %1523 = vmatpush1.msra.mxu0 0.0
  %1524 = vmatprep.subr.mxu0 0.0
  %1525 = vmatpush1.msra.mxu0 0.0
  %1526 = vmatprep.subr.mxu0 0.0
  %1527 = vmatpush1.msra.mxu0 0.0
  %1528 = vmatprep.subr.mxu0 0.0
  %1529 = vmatpush1.msra.mxu0 0.0
  %1530 = vmatprep.subr.mxu0 0.0
  %1531 = vmatpush1.msra.mxu0 0.0
  %1532 = vmatprep.subr.mxu0 0.0
  %1533 = vmatpush1.msra.mxu0 0.0
  %1534 = vmatprep.subr.mxu0 0.0
  %1535 = vmatpush1.msra.mxu0 0.0
  %1536 = vmatprep.subr.mxu0 0.0
  %1537 = vmatpush1.msra.mxu0 0.0
  %1538 = vmatprep.subr.mxu0 0.0
  %1539 = vmatpush1.msra.mxu0 0.0
  %1540 = vmatprep.subr.mxu0 0.0
  %1541 = vmatpush1.msra.mxu0 0.0
  %1542 = vmatprep.subr.mxu0 0.0
  %1543 = vmatpush1.msra.mxu0 0.0
  %1544 = vmatprep.subr.mxu0 0.0
  %1545 = vmatpush1.msra.mxu0 0.0
  %1546 = vmatprep.subr.mxu0 0.0
  %1547 = vmatpush1.msra.mxu0 0.0
  %1548 = vmatprep.subr.mxu0 0.0
  %1549 = vmatpush1.msra.mxu0 0.0
  %1550 = vmatprep.subr.mxu0 0.0
  %1551 = vmatpush1.msra.mxu0 0.0
  %1552 = vmatprep.subr.mxu0 0.0
  %1553 = vmatpush1.msra.mxu0 0.0
  %1554 = vmatprep.subr.mxu0 0.0
  %1555 = vmatpush1.msra.mxu0 0.0
  %1556 = vmatprep.subr.mxu0 0.0
  %1557 = vmatpush1.msra.mxu0 0.0
  %1558 = vmatprep.subr.mxu0 0.0
  %1559 = vmatpush1.msra.mxu0 0.0
  %1560 = vmatprep.subr.mxu0 0.0
  %1561 = vmatpush1.msra.mxu0 0.0
  %1562 = vmatprep.subr.mxu0 0.0
  %1563 = vmatpush1.msra.mxu0 0.0
  %1564 = vmatprep.subr.mxu0 0.0
  %1565 = vmatpush1.msra.mxu0 0.0
  %1566 = vmatprep.subr.mxu0 0.0
  %1567 = vmatpush1.msra.mxu0 0.0
  %1568 = vmatprep.subr.mxu0 0.0
  %1569 = vmatpush1.msra.mxu0 0.0
  %1570 = vmatprep.subr.mxu0 0.0
  %1571 = vmatpush1.msra.mxu0 0.0
  %1572 = vmatprep.mubr.f32.mxu0 0.0
  %1573 = vmatmul.mubr.f32.gmra.mrb[0].mxu0 %v1435
  %v1574 = vpop.f32.mrb[0].mxu0
  %v1575 = vadd.f32 %v226, %v1574
  %v1576 = vpop.f32.mrb[0].mxu0
  %1577 = vdwg.mxu0
  %v1578 = vadd.f32 %v1431, %v1504
  %v1579 = vadd.f32 %v1432, %v1506
  %v1580 = vxor.u32 %v1578, 2147483648
  %v1581 = vxor.u32 %v1579, 2147483648
  %v1582 = vmul.f32 %v1580, 1.442695
  %v1583 = vpow.pop %v1582
  %v1584 = vmul.f32 %v1581, 1.442695
  %v1585 = vpow.pop %v1584
  %v1586 = vadd.f32 %v1583, 1.0
  %v1587 = vadd.f32 %v1585, 1.0
  %v1588 = vrcp.pop %v1586
  %v1589 = vmul.f32 1.0, %v1588
  %v1590 = vrcp.pop %v1587
  %v1591 = vmul.f32 1.0, %v1590
  %v1592 = vmul.f32 %v1589, %v1575
  %v1593 = vadd.f32 %v1433, %v1592
  %v1594 = vtanh.pop %v1593
  %v1595 = vsub.f32 %v1425, %v1594
  %v1596 = vmul.f32 %v1591, %v1595
  %v1597 = vadd.f32 %v1594, %v1596
  %s1598 = scalar_lea.vmem [#allocation3], 56
  %1599 = vst.msk [vmem:[%s1598] sm:$0xff] %vm230, %v1597
  %v1600 = vld [vmem:[#allocation3] sm:$0xff]
  %v1601 = vld [vmem:[#allocation3 + $0x8] sm:$0xff]
  %v1602 = vld [vmem:[#allocation3 + $0x10] sm:$0xff]
  %v1603 = vld [vmem:[#allocation3 + $0x18] sm:$0xff]
  %v1604 = vld [vmem:[#allocation3 + $0x20] sm:$0xff]
  %v1605 = vld [vmem:[#allocation3 + $0x28] sm:$0xff]
  %v1606 = vld [vmem:[#allocation3 + $0x30] sm:$0xff]
  %v1607 = vld [vmem:[#allocation3 + $0x38] sm:$0xff]
  %v1608 = vld [vmem:[%s6] sm:$0xff]
  %v1609 = vld [vmem:[%s6 + $0x8] sm:$0xff]
  %v1610 = vld [vmem:[%s6 + $0x10] sm:$0xff]
  %v1611 = vld [vmem:[%s6 + $0x18] sm:$0xff]
  %v1612 = vld [vmem:[%s6 + $0x20] sm:$0xff]
  %v1613 = vld [vmem:[%s6 + $0x28] sm:$0xff]
  %v1614 = vld [vmem:[%s6 + $0x30] sm:$0xff]
  %v1615 = vld [vmem:[%s6 + $0x38] sm:$0xff]
  %v1616 = vld [vmem:[%s6 + $0x40] sm:$0xff]
  %v1617 = vld [vmem:[%s6 + $0x48] sm:$0xff]
  %v1618 = vld [vmem:[%s6 + $0x50] sm:$0xff]
  %v1619 = vld [vmem:[%s6 + $0x58] sm:$0xff]
  %v1620 = vld [vmem:[%s8] sm:$0x7]
  %v1622 = vlaneseq
  %v1623 = vshrl.u32 %v1622, 7
  %v1624 = vsub.s32 0, %v1623
  %v1625 = vrot.slane %v1620, %v1624
  %v1626 = vlaneseq
  %v1627 = vshrl.u32 %v1626, 7
  %v1628 = vsub.s32 1, %v1627
  %v1629 = vrot.slane %v1620, %v1628
  %v1630 = vlaneseq
  %v1631 = vshrl.u32 %v1630, 7
  %v1632 = vsub.s32 2, %v1631
  %v1633 = vrot.slane %v1620, %v1632
  %v1638 = vsel %vm230, %v1600, 0
  %v1641 = vsel %vm230, %v1601, 0
  %v1644 = vsel %vm230, %v1602, 0
  %v1647 = vsel %vm230, %v1603, 0
  %v1650 = vsel %vm230, %v1604, 0
  %v1653 = vsel %vm230, %v1605, 0
  %v1656 = vsel %vm230, %v1606, 0
  %v1659 = vsel %vm230, %v1607, 0
  %1661 = vmatprep.subr.mxu0 %v1609
  %1662 = vmatpush1.msra.mxu0 %v1608
  %1663 = vmatprep.subr.mxu0 %v1612
  %1664 = vmatpush1.msra.mxu0 %v1611
  %1665 = vmatprep.subr.mxu0 %v1615
  %1666 = vmatpush1.msra.mxu0 %v1614
  %1667 = vmatprep.subr.mxu0 %v1618
  %1668 = vmatpush1.msra.mxu0 %v1617
  %1669 = vmatprep.subr.mxu0 0.0
  %1670 = vmatpush1.msra.mxu0 0.0
  %1671 = vmatprep.subr.mxu0 0.0
  %1672 = vmatpush1.msra.mxu0 0.0
  %1673 = vmatprep.subr.mxu0 0.0
  %1674 = vmatpush1.msra.mxu0 0.0
  %1675 = vmatprep.subr.mxu0 0.0
  %1676 = vmatpush1.msra.mxu0 0.0
  %1677 = vmatprep.subr.mxu0 0.0
  %1678 = vmatpush1.msra.mxu0 0.0
  %1679 = vmatprep.subr.mxu0 0.0
  %1680 = vmatpush1.msra.mxu0 0.0
  %1681 = vmatprep.subr.mxu0 0.0
  %1682 = vmatpush1.msra.mxu0 0.0
  %1683 = vmatprep.subr.mxu0 0.0
  %1684 = vmatpush1.msra.mxu0 0.0
  %1685 = vmatprep.subr.mxu0 0.0
  %1686 = vmatpush1.msra.mxu0 0.0
  %1687 = vmatprep.subr.mxu0 0.0
  %1688 = vmatpush1.msra.mxu0 0.0
  %1689 = vmatprep.subr.mxu0 0.0
  %1690 = vmatpush1.msra.mxu0 0.0
  %1691 = vmatprep.subr.mxu0 0.0
  %1692 = vmatpush1.msra.mxu0 0.0
  %1693 = vmatprep.subr.mxu0 0.0
  %1694 = vmatpush1.msra.mxu0 0.0
  %1695 = vmatprep.subr.mxu0 0.0
  %1696 = vmatpush1.msra.mxu0 0.0
  %1697 = vmatprep.subr.mxu0 0.0
  %1698 = vmatpush1.msra.mxu0 0.0
  %1699 = vmatprep.subr.mxu0 0.0
  %1700 = vmatpush1.msra.mxu0 0.0
  %1701 = vmatprep.subr.mxu0 0.0
  %1702 = vmatpush1.msra.mxu0 0.0
  %1703 = vmatprep.subr.mxu0 0.0
  %1704 = vmatpush1.msra.mxu0 0.0
  %1705 = vmatprep.subr.mxu0 0.0
  %1706 = vmatpush1.msra.mxu0 0.0
  %1707 = vmatprep.subr.mxu0 0.0
  %1708 = vmatpush1.msra.mxu0 0.0
  %1709 = vmatprep.subr.mxu0 0.0
  %1710 = vmatpush1.msra.mxu0 0.0
  %1711 = vmatprep.subr.mxu0 0.0
  %1712 = vmatpush1.msra.mxu0 0.0
  %1713 = vmatprep.subr.mxu0 0.0
  %1714 = vmatpush1.msra.mxu0 0.0
  %1715 = vmatprep.subr.mxu0 0.0
  %1716 = vmatpush1.msra.mxu0 0.0
  %1717 = vmatprep.subr.mxu0 0.0
  %1718 = vmatpush1.msra.mxu0 0.0
  %1719 = vmatprep.subr.mxu0 0.0
  %1720 = vmatpush1.msra.mxu0 0.0
  %1721 = vmatprep.subr.mxu0 0.0
  %1722 = vmatpush1.msra.mxu0 0.0
  %1723 = vmatprep.subr.mxu0 0.0
  %1724 = vmatpush1.msra.mxu0 0.0
  %1725 = vmatprep.mubr.f32.mxu0 0.0
  %1726 = vmatmul.mubr.f32.gmra.mrb[0].mxu0 %v1638
  %v1727 = vpop.f32.mrb[0].mxu0
  %v1728 = vadd.f32 %v1625, %v1727
  %v1729 = vpop.f32.mrb[0].mxu0
  %v1730 = vadd.f32 %v1629, %v1729
  %1731 = vmatprep.mubr.f32.mxu0 0.0
  %1732 = vmatmul.mubr.f32.gmra.mrb[0].mxu0 %v1641
  %v1733 = vpop.f32.mrb[0].mxu0
  %v1734 = vadd.f32 %v1625, %v1733
  %v1735 = vpop.f32.mrb[0].mxu0
  %v1736 = vadd.f32 %v1629, %v1735
  %1737 = vmatprep.mubr.f32.mxu0 0.0
  %1738 = vmatmul.mubr.f32.gmra.mrb[0].mxu0 %v1644
  %v1739 = vpop.f32.mrb[0].mxu0
  %v1740 = vadd.f32 %v1625, %v1739
  %v1741 = vpop.f32.mrb[0].mxu0
  %v1742 = vadd.f32 %v1629, %v1741
  %1743 = vmatprep.mubr.f32.mxu0 0.0
  %1744 = vmatmul.mubr.f32.gmra.mrb[0].mxu0 %v1647
  %v1745 = vpop.f32.mrb[0].mxu0
  %v1746 = vadd.f32 %v1625, %v1745
  %v1747 = vpop.f32.mrb[0].mxu0
  %v1748 = vadd.f32 %v1629, %v1747
  %1749 = vmatprep.mubr.f32.mxu0 0.0
  %1750 = vmatmul.mubr.f32.gmra.mrb[0].mxu0 %v1650
  %v1751 = vpop.f32.mrb[0].mxu0
  %v1752 = vadd.f32 %v1625, %v1751
  %v1753 = vpop.f32.mrb[0].mxu0
  %v1754 = vadd.f32 %v1629, %v1753
  %1755 = vmatprep.mubr.f32.mxu0 0.0
  %1756 = vmatmul.mubr.f32.gmra.mrb[0].mxu0 %v1653
  %v1757 = vpop.f32.mrb[0].mxu0
  %v1758 = vadd.f32 %v1625, %v1757
  %v1759 = vpop.f32.mrb[0].mxu0
  %v1760 = vadd.f32 %v1629, %v1759
  %1761 = vmatprep.mubr.f32.mxu0 0.0
  %1762 = vmatmul.mubr.f32.gmra.mrb[0].mxu0 %v1656
  %v1763 = vpop.f32.mrb[0].mxu0
  %v1764 = vadd.f32 %v1625, %v1763
  %v1765 = vpop.f32.mrb[0].mxu0
  %v1766 = vadd.f32 %v1629, %v1765
  %1767 = vmatprep.mubr.f32.mxu0 0.0
  %1768 = vmatmul.mubr.f32.gmra.mrb[0].mxu0 %v1659
  %v1769 = vpop.f32.mrb[0].mxu0
  %v1770 = vadd.f32 %v1625, %v1769
  %v1771 = vpop.f32.mrb[0].mxu0
  %v1772 = vadd.f32 %v1629, %v1771
  %1773 = vdwg.mxu0
  %1774 = vmatprep.subr.mxu0 0.0
  %1775 = vmatpush1.msra.mxu0 %v1610
  %1776 = vmatprep.subr.mxu0 0.0
  %1777 = vmatpush1.msra.mxu0 %v1613
  %1778 = vmatprep.subr.mxu0 0.0
  %1779 = vmatpush1.msra.mxu0 %v1616
  %1780 = vmatprep.subr.mxu0 0.0
  %1781 = vmatpush1.msra.mxu0 %v1619
  %1782 = vmatprep.subr.mxu0 0.0
  %1783 = vmatpush1.msra.mxu0 0.0
  %1784 = vmatprep.subr.mxu0 0.0
  %1785 = vmatpush1.msra.mxu0 0.0
  %1786 = vmatprep.subr.mxu0 0.0
  %1787 = vmatpush1.msra.mxu0 0.0
  %1788 = vmatprep.subr.mxu0 0.0
  %1789 = vmatpush1.msra.mxu0 0.0
  %1790 = vmatprep.subr.mxu0 0.0
  %1791 = vmatpush1.msra.mxu0 0.0
  %1792 = vmatprep.subr.mxu0 0.0
  %1793 = vmatpush1.msra.mxu0 0.0
  %1794 = vmatprep.subr.mxu0 0.0
  %1795 = vmatpush1.msra.mxu0 0.0
  %1796 = vmatprep.subr.mxu0 0.0
  %1797 = vmatpush1.msra.mxu0 0.0
  %1798 = vmatprep.subr.mxu0 0.0
  %1799 = vmatpush1.msra.mxu0 0.0
  %1800 = vmatprep.subr.mxu0 0.0
  %1801 = vmatpush1.msra.mxu0 0.0
  %1802 = vmatprep.subr.mxu0 0.0
  %1803 = vmatpush1.msra.mxu0 0.0
  %1804 = vmatprep.subr.mxu0 0.0
  %1805 = vmatpush1.msra.mxu0 0.0
  %1806 = vmatprep.subr.mxu0 0.0
  %1807 = vmatpush1.msra.mxu0 0.0
  %1808 = vmatprep.subr.mxu0 0.0
  %1809 = vmatpush1.msra.mxu0 0.0
  %1810 = vmatprep.subr.mxu0 0.0
  %1811 = vmatpush1.msra.mxu0 0.0
  %1812 = vmatprep.subr.mxu0 0.0
  %1813 = vmatpush1.msra.mxu0 0.0
  %1814 = vmatprep.subr.mxu0 0.0
  %1815 = vmatpush1.msra.mxu0 0.0
  %1816 = vmatprep.subr.mxu0 0.0
  %1817 = vmatpush1.msra.mxu0 0.0
  %1818 = vmatprep.subr.mxu0 0.0
  %1819 = vmatpush1.msra.mxu0 0.0
  %1820 = vmatprep.subr.mxu0 0.0
  %1821 = vmatpush1.msra.mxu0 0.0
  %1822 = vmatprep.subr.mxu0 0.0
  %1823 = vmatpush1.msra.mxu0 0.0
  %1824 = vmatprep.subr.mxu0 0.0
  %1825 = vmatpush1.msra.mxu0 0.0
  %1826 = vmatprep.subr.mxu0 0.0
  %1827 = vmatpush1.msra.mxu0 0.0
  %1828 = vmatprep.subr.mxu0 0.0
  %1829 = vmatpush1.msra.mxu0 0.0
  %1830 = vmatprep.subr.mxu0 0.0
  %1831 = vmatpush1.msra.mxu0 0.0
  %1832 = vmatprep.subr.mxu0 0.0
  %1833 = vmatpush1.msra.mxu0 0.0
  %1834 = vmatprep.subr.mxu0 0.0
  %1835 = vmatpush1.msra.mxu0 0.0
  %1836 = vmatprep.subr.mxu0 0.0
  %1837 = vmatpush1.msra.mxu0 0.0
  %1838 = vmatprep.mubr.f32.mxu0 0.0
  %1839 = vmatmul.mubr.f32.gmra.mrb[0].mxu0 %v1638
  %v1840 = vpop.f32.mrb[0].mxu0
  %v1841 = vadd.f32 %v1633, %v1840
  %v1842 = vpop.f32.mrb[0].mxu0
  %1843 = vmatprep.mubr.f32.mxu0 0.0
  %1844 = vmatmul.mubr.f32.gmra.mrb[0].mxu0 %v1641
  %v1845 = vpop.f32.mrb[0].mxu0
  %v1846 = vadd.f32 %v1633, %v1845
  %v1847 = vpop.f32.mrb[0].mxu0
  %1848 = vmatprep.mubr.f32.mxu0 0.0
  %1849 = vmatmul.mubr.f32.gmra.mrb[0].mxu0 %v1644
  %v1850 = vpop.f32.mrb[0].mxu0
  %v1851 = vadd.f32 %v1633, %v1850
  %v1852 = vpop.f32.mrb[0].mxu0
  %1853 = vmatprep.mubr.f32.mxu0 0.0
  %1854 = vmatmul.mubr.f32.gmra.mrb[0].mxu0 %v1647
  %v1855 = vpop.f32.mrb[0].mxu0
  %v1856 = vadd.f32 %v1633, %v1855
  %v1857 = vpop.f32.mrb[0].mxu0
  %1858 = vmatprep.mubr.f32.mxu0 0.0
  %1859 = vmatmul.mubr.f32.gmra.mrb[0].mxu0 %v1650
  %v1860 = vpop.f32.mrb[0].mxu0
  %v1861 = vadd.f32 %v1633, %v1860
  %v1862 = vpop.f32.mrb[0].mxu0
  %1863 = vmatprep.mubr.f32.mxu0 0.0
  %1864 = vmatmul.mubr.f32.gmra.mrb[0].mxu0 %v1653
  %v1865 = vpop.f32.mrb[0].mxu0
  %v1866 = vadd.f32 %v1633, %v1865
  %v1867 = vpop.f32.mrb[0].mxu0
  %1868 = vmatprep.mubr.f32.mxu0 0.0
  %1869 = vmatmul.mubr.f32.gmra.mrb[0].mxu0 %v1656
  %v1870 = vpop.f32.mrb[0].mxu0
  %v1871 = vadd.f32 %v1633, %v1870
  %v1872 = vpop.f32.mrb[0].mxu0
  %1873 = vmatprep.mubr.f32.mxu0 0.0
  %1874 = vmatmul.mubr.f32.gmra.mrb[0].mxu0 %v1659
  %v1875 = vpop.f32.mrb[0].mxu0
  %v1876 = vadd.f32 %v1633, %v1875
  %v1877 = vpop.f32.mrb[0].mxu0
  %1878 = vdwg.mxu0
  %1879 = vst [vmem:[#allocation2] sm:$0xff] %v1728
  %1880 = vst [vmem:[#allocation2 + $0x8] sm:$0xff] %v1730
  %1881 = vst [vmem:[#allocation2 + $0x10] sm:$0xff] %v1841
  %1882 = vst [vmem:[#allocation2 + $0x18] sm:$0xff] %v1734
  %1883 = vst [vmem:[#allocation2 + $0x20] sm:$0xff] %v1736
  %1884 = vst [vmem:[#allocation2 + $0x28] sm:$0xff] %v1846
  %1885 = vst [vmem:[#allocation2 + $0x30] sm:$0xff] %v1740
  %1886 = vst [vmem:[#allocation2 + $0x38] sm:$0xff] %v1742
  %1887 = vst [vmem:[#allocation2 + $0x40] sm:$0xff] %v1851
  %1888 = vst [vmem:[#allocation2 + $0x48] sm:$0xff] %v1746
  %1889 = vst [vmem:[#allocation2 + $0x50] sm:$0xff] %v1748
  %1890 = vst [vmem:[#allocation2 + $0x58] sm:$0xff] %v1856
  %1891 = vst [vmem:[#allocation2 + $0x60] sm:$0xff] %v1752
  %1892 = vst [vmem:[#allocation2 + $0x68] sm:$0xff] %v1754
  %1893 = vst [vmem:[#allocation2 + $0x70] sm:$0xff] %v1861
  %1894 = vst [vmem:[#allocation2 + $0x78] sm:$0xff] %v1758
  %1895 = vst [vmem:[#allocation2 + $0x80] sm:$0xff] %v1760
  %1896 = vst [vmem:[#allocation2 + $0x88] sm:$0xff] %v1866
  %1897 = vst [vmem:[#allocation2 + $0x90] sm:$0xff] %v1764
  %1898 = vst [vmem:[#allocation2 + $0x98] sm:$0xff] %v1766
  %1899 = vst [vmem:[#allocation2 + $0xa0] sm:$0xff] %v1871
  %1900 = vst [vmem:[#allocation2 + $0xa8] sm:$0xff] %v1770
  %1901 = vst [vmem:[#allocation2 + $0xb0] sm:$0xff] %v1772
  %1902 = vst [vmem:[#allocation2 + $0xb8] sm:$0xff] %v1876
  %v1903 = vld [vmem:[%s7] sm:$0xff]
  %v1904 = vld [vmem:[%s7 + $0x8] sm:$0xff]
  %v1905 = vld [vmem:[%s7 + $0x10] sm:$0xff]
  %v1906 = vld [vmem:[%s7 + $0x18] sm:$0xff]
  %v1907 = vld [vmem:[%s7 + $0x20] sm:$0xff]
  %v1908 = vld [vmem:[%s7 + $0x28] sm:$0xff]
  %v1909 = vld [vmem:[%s7 + $0x30] sm:$0xff]
  %v1910 = vld [vmem:[%s7 + $0x38] sm:$0xff]
  %v1911 = vld [vmem:[%s7 + $0x40] sm:$0xff]
  %v1912 = vld [vmem:[%s7 + $0x48] sm:$0xff]
  %v1913 = vld [vmem:[%s7 + $0x50] sm:$0xff]
  %v1914 = vld [vmem:[%s7 + $0x58] sm:$0xff]
  %v1915 = vld [vmem:[%s9] sm:$0x7]
  %v1916 = vld [vmem:[%s210] sm:$0xff]
  %v1917 = vld [vmem:[%s210 + $0x8] sm:$0xff]
  %v1918 = vld [vmem:[%s210 + $0x10] sm:$0xff]
  %v1920 = vlaneseq
  %v1921 = vshrl.u32 %v1920, 7
  %v1922 = vsub.s32 0, %v1921
  %v1923 = vrot.slane %v1915, %v1922
  %v1924 = vlaneseq
  %v1925 = vshrl.u32 %v1924, 7
  %v1926 = vsub.s32 1, %v1925
  %v1927 = vrot.slane %v1915, %v1926
  %v1928 = vlaneseq
  %v1929 = vshrl.u32 %v1928, 7
  %v1930 = vsub.s32 2, %v1929
  %v1931 = vrot.slane %v1915, %v1930
  %1935 = vmatprep.subr.mxu0 %v1904
  %1936 = vmatpush1.msra.mxu0 %v1903
  %1937 = vmatprep.subr.mxu0 %v1907
  %1938 = vmatpush1.msra.mxu0 %v1906
  %1939 = vmatprep.subr.mxu0 %v1910
  %1940 = vmatpush1.msra.mxu0 %v1909
  %1941 = vmatprep.subr.mxu0 %v1913
  %1942 = vmatpush1.msra.mxu0 %v1912
  %1943 = vmatprep.subr.mxu0 0.0
  %1944 = vmatpush1.msra.mxu0 0.0
  %1945 = vmatprep.subr.mxu0 0.0
  %1946 = vmatpush1.msra.mxu0 0.0
  %1947 = vmatprep.subr.mxu0 0.0
  %1948 = vmatpush1.msra.mxu0 0.0
  %1949 = vmatprep.subr.mxu0 0.0
  %1950 = vmatpush1.msra.mxu0 0.0
  %1951 = vmatprep.subr.mxu0 0.0
  %1952 = vmatpush1.msra.mxu0 0.0
  %1953 = vmatprep.subr.mxu0 0.0
  %1954 = vmatpush1.msra.mxu0 0.0
  %1955 = vmatprep.subr.mxu0 0.0
  %1956 = vmatpush1.msra.mxu0 0.0
  %1957 = vmatprep.subr.mxu0 0.0
  %1958 = vmatpush1.msra.mxu0 0.0
  %1959 = vmatprep.subr.mxu0 0.0
  %1960 = vmatpush1.msra.mxu0 0.0
  %1961 = vmatprep.subr.mxu0 0.0
  %1962 = vmatpush1.msra.mxu0 0.0
  %1963 = vmatprep.subr.mxu0 0.0
  %1964 = vmatpush1.msra.mxu0 0.0
  %1965 = vmatprep.subr.mxu0 0.0
  %1966 = vmatpush1.msra.mxu0 0.0
  %1967 = vmatprep.subr.mxu0 0.0
  %1968 = vmatpush1.msra.mxu0 0.0
  %1969 = vmatprep.subr.mxu0 0.0
  %1970 = vmatpush1.msra.mxu0 0.0
  %1971 = vmatprep.subr.mxu0 0.0
  %1972 = vmatpush1.msra.mxu0 0.0
  %1973 = vmatprep.subr.mxu0 0.0
  %1974 = vmatpush1.msra.mxu0 0.0
  %1975 = vmatprep.subr.mxu0 0.0
  %1976 = vmatpush1.msra.mxu0 0.0
  %1977 = vmatprep.subr.mxu0 0.0
  %1978 = vmatpush1.msra.mxu0 0.0
  %1979 = vmatprep.subr.mxu0 0.0
  %1980 = vmatpush1.msra.mxu0 0.0
  %1981 = vmatprep.subr.mxu0 0.0
  %1982 = vmatpush1.msra.mxu0 0.0
  %1983 = vmatprep.subr.mxu0 0.0
  %1984 = vmatpush1.msra.mxu0 0.0
  %1985 = vmatprep.subr.mxu0 0.0
  %1986 = vmatpush1.msra.mxu0 0.0
  %1987 = vmatprep.subr.mxu0 0.0
  %1988 = vmatpush1.msra.mxu0 0.0
  %1989 = vmatprep.subr.mxu0 0.0
  %1990 = vmatpush1.msra.mxu0 0.0
  %1991 = vmatprep.subr.mxu0 0.0
  %1992 = vmatpush1.msra.mxu0 0.0
  %1993 = vmatprep.subr.mxu0 0.0
  %1994 = vmatpush1.msra.mxu0 0.0
  %1995 = vmatprep.subr.mxu0 0.0
  %1996 = vmatpush1.msra.mxu0 0.0
  %1997 = vmatprep.subr.mxu0 0.0
  %1998 = vmatpush1.msra.mxu0 0.0
  %1999 = vmatprep.mubr.f32.mxu0 0.0
  %2000 = vmatmul.mubr.f32.gmra.mrb[0].mxu0 %v232
  %v2001 = vpop.f32.mrb[0].mxu0
  %v2002 = vadd.f32 %v1923, %v2001
  %v2003 = vpop.f32.mrb[0].mxu0
  %v2004 = vadd.f32 %v1927, %v2003
  %2005 = vdwg.mxu0
  %2006 = vmatprep.subr.mxu0 0.0
  %2007 = vmatpush1.msra.mxu0 %v1905
  %2008 = vmatprep.subr.mxu0 0.0
  %2009 = vmatpush1.msra.mxu0 %v1908
  %2010 = vmatprep.subr.mxu0 0.0
  %2011 = vmatpush1.msra.mxu0 %v1911
  %2012 = vmatprep.subr.mxu0 0.0
  %2013 = vmatpush1.msra.mxu0 %v1914
  %2014 = vmatprep.subr.mxu0 0.0
  %2015 = vmatpush1.msra.mxu0 0.0
  %2016 = vmatprep.subr.mxu0 0.0
  %2017 = vmatpush1.msra.mxu0 0.0
  %2018 = vmatprep.subr.mxu0 0.0
  %2019 = vmatpush1.msra.mxu0 0.0
  %2020 = vmatprep.subr.mxu0 0.0
  %2021 = vmatpush1.msra.mxu0 0.0
  %2022 = vmatprep.subr.mxu0 0.0
  %2023 = vmatpush1.msra.mxu0 0.0
  %2024 = vmatprep.subr.mxu0 0.0
  %2025 = vmatpush1.msra.mxu0 0.0
  %2026 = vmatprep.subr.mxu0 0.0
  %2027 = vmatpush1.msra.mxu0 0.0
  %2028 = vmatprep.subr.mxu0 0.0
  %2029 = vmatpush1.msra.mxu0 0.0
  %2030 = vmatprep.subr.mxu0 0.0
  %2031 = vmatpush1.msra.mxu0 0.0
  %2032 = vmatprep.subr.mxu0 0.0
  %2033 = vmatpush1.msra.mxu0 0.0
  %2034 = vmatprep.subr.mxu0 0.0
  %2035 = vmatpush1.msra.mxu0 0.0
  %2036 = vmatprep.subr.mxu0 0.0
  %2037 = vmatpush1.msra.mxu0 0.0
  %2038 = vmatprep.subr.mxu0 0.0
  %2039 = vmatpush1.msra.mxu0 0.0
  %2040 = vmatprep.subr.mxu0 0.0
  %2041 = vmatpush1.msra.mxu0 0.0
  %2042 = vmatprep.subr.mxu0 0.0
  %2043 = vmatpush1.msra.mxu0 0.0
  %2044 = vmatprep.subr.mxu0 0.0
  %2045 = vmatpush1.msra.mxu0 0.0
  %2046 = vmatprep.subr.mxu0 0.0
  %2047 = vmatpush1.msra.mxu0 0.0
  %2048 = vmatprep.subr.mxu0 0.0
  %2049 = vmatpush1.msra.mxu0 0.0
  %2050 = vmatprep.subr.mxu0 0.0
  %2051 = vmatpush1.msra.mxu0 0.0
  %2052 = vmatprep.subr.mxu0 0.0
  %2053 = vmatpush1.msra.mxu0 0.0
  %2054 = vmatprep.subr.mxu0 0.0
  %2055 = vmatpush1.msra.mxu0 0.0
  %2056 = vmatprep.subr.mxu0 0.0
  %2057 = vmatpush1.msra.mxu0 0.0
  %2058 = vmatprep.subr.mxu0 0.0
  %2059 = vmatpush1.msra.mxu0 0.0
  %2060 = vmatprep.subr.mxu0 0.0
  %2061 = vmatpush1.msra.mxu0 0.0
  %2062 = vmatprep.subr.mxu0 0.0
  %2063 = vmatpush1.msra.mxu0 0.0
  %2064 = vmatprep.subr.mxu0 0.0
  %2065 = vmatpush1.msra.mxu0 0.0
  %2066 = vmatprep.subr.mxu0 0.0
  %2067 = vmatpush1.msra.mxu0 0.0
  %2068 = vmatprep.subr.mxu0 0.0
  %2069 = vmatpush1.msra.mxu0 0.0
  %2070 = vmatprep.mubr.f32.mxu0 0.0
  %2071 = vmatmul.mubr.f32.gmra.mrb[0].mxu0 %v232
  %v2072 = vpop.f32.mrb[0].mxu0
  %v2073 = vadd.f32 %v1931, %v2072
  %v2074 = vpop.f32.mrb[0].mxu0
  %2075 = vdwg.mxu0
  %v2076 = vadd.f32 %v1916, %v2002
  %v2077 = vadd.f32 %v1917, %v2004
  %v2078 = vxor.u32 %v2076, 2147483648
  %v2079 = vxor.u32 %v2077, 2147483648
  %v2080 = vmul.f32 %v2078, 1.442695
  %v2081 = vpow.pop %v2080
  %v2082 = vmul.f32 %v2079, 1.442695
  %v2083 = vpow.pop %v2082
  %v2084 = vadd.f32 %v2081, 1.0
  %v2085 = vadd.f32 %v2083, 1.0
  %v2086 = vrcp.pop %v2084
  %v2087 = vmul.f32 1.0, %v2086
  %v2088 = vrcp.pop %v2085
  %v2089 = vmul.f32 1.0, %v2088
  %v2090 = vmul.f32 %v2087, %v2073
  %v2091 = vadd.f32 %v1918, %v2090
  %v2092 = vtanh.pop %v2091
  %v2093 = vsub.f32 0.0, %v2092
  %v2094 = vmul.f32 %v2089, %v2093
  %v2095 = vadd.f32 %v2092, %v2094
  %2096 = vst.msk [vmem:[#allocation3] sm:$0xff] %vm230, %v2095
  %v2097 = vld [vmem:[%s398] sm:$0xff]
  %v2098 = vld [vmem:[%s398 + $0x8] sm:$0xff]
  %v2099 = vld [vmem:[%s398 + $0x10] sm:$0xff]
  %v2101 = vsel %vm230, %v2095, 0
  %2103 = vmatprep.subr.mxu0 %v1904
  %2104 = vmatpush1.msra.mxu0 %v1903
  %2105 = vmatprep.subr.mxu0 %v1907
  %2106 = vmatpush1.msra.mxu0 %v1906
  %2107 = vmatprep.subr.mxu0 %v1910
  %2108 = vmatpush1.msra.mxu0 %v1909
  %2109 = vmatprep.subr.mxu0 %v1913
  %2110 = vmatpush1.msra.mxu0 %v1912
  %2111 = vmatprep.subr.mxu0 0.0
  %2112 = vmatpush1.msra.mxu0 0.0
  %2113 = vmatprep.subr.mxu0 0.0
  %2114 = vmatpush1.msra.mxu0 0.0
  %2115 = vmatprep.subr.mxu0 0.0
  %2116 = vmatpush1.msra.mxu0 0.0
  %2117 = vmatprep.subr.mxu0 0.0
  %2118 = vmatpush1.msra.mxu0 0.0
  %2119 = vmatprep.subr.mxu0 0.0
  %2120 = vmatpush1.msra.mxu0 0.0
  %2121 = vmatprep.subr.mxu0 0.0
  %2122 = vmatpush1.msra.mxu0 0.0
  %2123 = vmatprep.subr.mxu0 0.0
  %2124 = vmatpush1.msra.mxu0 0.0
  %2125 = vmatprep.subr.mxu0 0.0
  %2126 = vmatpush1.msra.mxu0 0.0
  %2127 = vmatprep.subr.mxu0 0.0
  %2128 = vmatpush1.msra.mxu0 0.0
  %2129 = vmatprep.subr.mxu0 0.0
  %2130 = vmatpush1.msra.mxu0 0.0
  %2131 = vmatprep.subr.mxu0 0.0
  %2132 = vmatpush1.msra.mxu0 0.0
  %2133 = vmatprep.subr.mxu0 0.0
  %2134 = vmatpush1.msra.mxu0 0.0
  %2135 = vmatprep.subr.mxu0 0.0
  %2136 = vmatpush1.msra.mxu0 0.0
  %2137 = vmatprep.subr.mxu0 0.0
  %2138 = vmatpush1.msra.mxu0 0.0
  %2139 = vmatprep.subr.mxu0 0.0
  %2140 = vmatpush1.msra.mxu0 0.0
  %2141 = vmatprep.subr.mxu0 0.0
  %2142 = vmatpush1.msra.mxu0 0.0
  %2143 = vmatprep.subr.mxu0 0.0
  %2144 = vmatpush1.msra.mxu0 0.0
  %2145 = vmatprep.subr.mxu0 0.0
  %2146 = vmatpush1.msra.mxu0 0.0
  %2147 = vmatprep.subr.mxu0 0.0
  %2148 = vmatpush1.msra.mxu0 0.0
  %2149 = vmatprep.subr.mxu0 0.0
  %2150 = vmatpush1.msra.mxu0 0.0
  %2151 = vmatprep.subr.mxu0 0.0
  %2152 = vmatpush1.msra.mxu0 0.0
  %2153 = vmatprep.subr.mxu0 0.0
  %2154 = vmatpush1.msra.mxu0 0.0
  %2155 = vmatprep.subr.mxu0 0.0
  %2156 = vmatpush1.msra.mxu0 0.0
  %2157 = vmatprep.subr.mxu0 0.0
  %2158 = vmatpush1.msra.mxu0 0.0
  %2159 = vmatprep.subr.mxu0 0.0
  %2160 = vmatpush1.msra.mxu0 0.0
  %2161 = vmatprep.subr.mxu0 0.0
  %2162 = vmatpush1.msra.mxu0 0.0
  %2163 = vmatprep.subr.mxu0 0.0
  %2164 = vmatpush1.msra.mxu0 0.0
  %2165 = vmatprep.subr.mxu0 0.0
  %2166 = vmatpush1.msra.mxu0 0.0
  %2167 = vmatprep.mubr.f32.mxu0 0.0
  %2168 = vmatmul.mubr.f32.gmra.mrb[0].mxu0 %v2101
  %v2169 = vpop.f32.mrb[0].mxu0
  %v2170 = vadd.f32 %v1923, %v2169
  %v2171 = vpop.f32.mrb[0].mxu0
  %v2172 = vadd.f32 %v1927, %v2171
  %2173 = vdwg.mxu0
  %2174 = vmatprep.subr.mxu0 0.0
  %2175 = vmatpush1.msra.mxu0 %v1905
  %2176 = vmatprep.subr.mxu0 0.0
  %2177 = vmatpush1.msra.mxu0 %v1908
  %2178 = vmatprep.subr.mxu0 0.0
  %2179 = vmatpush1.msra.mxu0 %v1911
  %2180 = vmatprep.subr.mxu0 0.0
  %2181 = vmatpush1.msra.mxu0 %v1914
  %2182 = vmatprep.subr.mxu0 0.0
  %2183 = vmatpush1.msra.mxu0 0.0
  %2184 = vmatprep.subr.mxu0 0.0
  %2185 = vmatpush1.msra.mxu0 0.0
  %2186 = vmatprep.subr.mxu0 0.0
  %2187 = vmatpush1.msra.mxu0 0.0
  %2188 = vmatprep.subr.mxu0 0.0
  %2189 = vmatpush1.msra.mxu0 0.0
  %2190 = vmatprep.subr.mxu0 0.0
  %2191 = vmatpush1.msra.mxu0 0.0
  %2192 = vmatprep.subr.mxu0 0.0
  %2193 = vmatpush1.msra.mxu0 0.0
  %2194 = vmatprep.subr.mxu0 0.0
  %2195 = vmatpush1.msra.mxu0 0.0
  %2196 = vmatprep.subr.mxu0 0.0
  %2197 = vmatpush1.msra.mxu0 0.0
  %2198 = vmatprep.subr.mxu0 0.0
  %2199 = vmatpush1.msra.mxu0 0.0
  %2200 = vmatprep.subr.mxu0 0.0
  %2201 = vmatpush1.msra.mxu0 0.0
  %2202 = vmatprep.subr.mxu0 0.0
  %2203 = vmatpush1.msra.mxu0 0.0
  %2204 = vmatprep.subr.mxu0 0.0
  %2205 = vmatpush1.msra.mxu0 0.0
  %2206 = vmatprep.subr.mxu0 0.0
  %2207 = vmatpush1.msra.mxu0 0.0
  %2208 = vmatprep.subr.mxu0 0.0
  %2209 = vmatpush1.msra.mxu0 0.0
  %2210 = vmatprep.subr.mxu0 0.0
  %2211 = vmatpush1.msra.mxu0 0.0
  %2212 = vmatprep.subr.mxu0 0.0
  %2213 = vmatpush1.msra.mxu0 0.0
  %2214 = vmatprep.subr.mxu0 0.0
  %2215 = vmatpush1.msra.mxu0 0.0
  %2216 = vmatprep.subr.mxu0 0.0
  %2217 = vmatpush1.msra.mxu0 0.0
  %2218 = vmatprep.subr.mxu0 0.0
  %2219 = vmatpush1.msra.mxu0 0.0
  %2220 = vmatprep.subr.mxu0 0.0
  %2221 = vmatpush1.msra.mxu0 0.0
  %2222 = vmatprep.subr.mxu0 0.0
  %2223 = vmatpush1.msra.mxu0 0.0
  %2224 = vmatprep.subr.mxu0 0.0
  %2225 = vmatpush1.msra.mxu0 0.0
  %2226 = vmatprep.subr.mxu0 0.0
  %2227 = vmatpush1.msra.mxu0 0.0
  %2228 = vmatprep.subr.mxu0 0.0
  %2229 = vmatpush1.msra.mxu0 0.0
  %2230 = vmatprep.subr.mxu0 0.0
  %2231 = vmatpush1.msra.mxu0 0.0
  %2232 = vmatprep.subr.mxu0 0.0
  %2233 = vmatpush1.msra.mxu0 0.0
  %2234 = vmatprep.subr.mxu0 0.0
  %2235 = vmatpush1.msra.mxu0 0.0
  %2236 = vmatprep.subr.mxu0 0.0
  %2237 = vmatpush1.msra.mxu0 0.0
  %2238 = vmatprep.mubr.f32.mxu0 0.0
  %2239 = vmatmul.mubr.f32.gmra.mrb[0].mxu0 %v2101
  %v2240 = vpop.f32.mrb[0].mxu0
  %v2241 = vadd.f32 %v1931, %v2240
  %v2242 = vpop.f32.mrb[0].mxu0
  %2243 = vdwg.mxu0
  %v2244 = vadd.f32 %v2097, %v2170
  %v2245 = vadd.f32 %v2098, %v2172
  %v2246 = vxor.u32 %v2244, 2147483648
  %v2247 = vxor.u32 %v2245, 2147483648
  %v2248 = vmul.f32 %v2246, 1.442695
  %v2249 = vpow.pop %v2248
  %v2250 = vmul.f32 %v2247, 1.442695
  %v2251 = vpow.pop %v2250
  %v2252 = vadd.f32 %v2249, 1.0
  %v2253 = vadd.f32 %v2251, 1.0
  %v2254 = vrcp.pop %v2252
  %v2255 = vmul.f32 1.0, %v2254
  %v2256 = vrcp.pop %v2253
  %v2257 = vmul.f32 1.0, %v2256
  %v2258 = vmul.f32 %v2255, %v2241
  %v2259 = vadd.f32 %v2099, %v2258
  %v2260 = vtanh.pop %v2259
  %v2261 = vsub.f32 %v2095, %v2260
  %v2262 = vmul.f32 %v2257, %v2261
  %v2263 = vadd.f32 %v2260, %v2262
  %2264 = vst.msk [vmem:[%s566] sm:$0xff] %vm230, %v2263
  %v2265 = vld [vmem:[%s570] sm:$0xff]
  %v2266 = vld [vmem:[%s570 + $0x8] sm:$0xff]
  %v2267 = vld [vmem:[%s570 + $0x10] sm:$0xff]
  %v2269 = vsel %vm230, %v2263, 0
  %2271 = vmatprep.subr.mxu0 %v1904
  %2272 = vmatpush1.msra.mxu0 %v1903
  %2273 = vmatprep.subr.mxu0 %v1907
  %2274 = vmatpush1.msra.mxu0 %v1906
  %2275 = vmatprep.subr.mxu0 %v1910
  %2276 = vmatpush1.msra.mxu0 %v1909
  %2277 = vmatprep.subr.mxu0 %v1913
  %2278 = vmatpush1.msra.mxu0 %v1912
  %2279 = vmatprep.subr.mxu0 0.0
  %2280 = vmatpush1.msra.mxu0 0.0
  %2281 = vmatprep.subr.mxu0 0.0
  %2282 = vmatpush1.msra.mxu0 0.0
  %2283 = vmatprep.subr.mxu0 0.0
  %2284 = vmatpush1.msra.mxu0 0.0
  %2285 = vmatprep.subr.mxu0 0.0
  %2286 = vmatpush1.msra.mxu0 0.0
  %2287 = vmatprep.subr.mxu0 0.0
  %2288 = vmatpush1.msra.mxu0 0.0
  %2289 = vmatprep.subr.mxu0 0.0
  %2290 = vmatpush1.msra.mxu0 0.0
  %2291 = vmatprep.subr.mxu0 0.0
  %2292 = vmatpush1.msra.mxu0 0.0
  %2293 = vmatprep.subr.mxu0 0.0
  %2294 = vmatpush1.msra.mxu0 0.0
  %2295 = vmatprep.subr.mxu0 0.0
  %2296 = vmatpush1.msra.mxu0 0.0
  %2297 = vmatprep.subr.mxu0 0.0
  %2298 = vmatpush1.msra.mxu0 0.0
  %2299 = vmatprep.subr.mxu0 0.0
  %2300 = vmatpush1.msra.mxu0 0.0
  %2301 = vmatprep.subr.mxu0 0.0
  %2302 = vmatpush1.msra.mxu0 0.0
  %2303 = vmatprep.subr.mxu0 0.0
  %2304 = vmatpush1.msra.mxu0 0.0
  %2305 = vmatprep.subr.mxu0 0.0
  %2306 = vmatpush1.msra.mxu0 0.0
  %2307 = vmatprep.subr.mxu0 0.0
  %2308 = vmatpush1.msra.mxu0 0.0
  %2309 = vmatprep.subr.mxu0 0.0
  %2310 = vmatpush1.msra.mxu0 0.0
  %2311 = vmatprep.subr.mxu0 0.0
  %2312 = vmatpush1.msra.mxu0 0.0
  %2313 = vmatprep.subr.mxu0 0.0
  %2314 = vmatpush1.msra.mxu0 0.0
  %2315 = vmatprep.subr.mxu0 0.0
  %2316 = vmatpush1.msra.mxu0 0.0
  %2317 = vmatprep.subr.mxu0 0.0
  %2318 = vmatpush1.msra.mxu0 0.0
  %2319 = vmatprep.subr.mxu0 0.0
  %2320 = vmatpush1.msra.mxu0 0.0
  %2321 = vmatprep.subr.mxu0 0.0
  %2322 = vmatpush1.msra.mxu0 0.0
  %2323 = vmatprep.subr.mxu0 0.0
  %2324 = vmatpush1.msra.mxu0 0.0
  %2325 = vmatprep.subr.mxu0 0.0
  %2326 = vmatpush1.msra.mxu0 0.0
  %2327 = vmatprep.subr.mxu0 0.0
  %2328 = vmatpush1.msra.mxu0 0.0
  %2329 = vmatprep.subr.mxu0 0.0
  %2330 = vmatpush1.msra.mxu0 0.0
  %2331 = vmatprep.subr.mxu0 0.0
  %2332 = vmatpush1.msra.mxu0 0.0
  %2333 = vmatprep.subr.mxu0 0.0
  %2334 = vmatpush1.msra.mxu0 0.0
  %2335 = vmatprep.mubr.f32.mxu0 0.0
  %2336 = vmatmul.mubr.f32.gmra.mrb[0].mxu0 %v2269
  %v2337 = vpop.f32.mrb[0].mxu0
  %v2338 = vadd.f32 %v1923, %v2337
  %v2339 = vpop.f32.mrb[0].mxu0
  %v2340 = vadd.f32 %v1927, %v2339
  %2341 = vdwg.mxu0
  %2342 = vmatprep.subr.mxu0 0.0
  %2343 = vmatpush1.msra.mxu0 %v1905
  %2344 = vmatprep.subr.mxu0 0.0
  %2345 = vmatpush1.msra.mxu0 %v1908
  %2346 = vmatprep.subr.mxu0 0.0
  %2347 = vmatpush1.msra.mxu0 %v1911
  %2348 = vmatprep.subr.mxu0 0.0
  %2349 = vmatpush1.msra.mxu0 %v1914
  %2350 = vmatprep.subr.mxu0 0.0
  %2351 = vmatpush1.msra.mxu0 0.0
  %2352 = vmatprep.subr.mxu0 0.0
  %2353 = vmatpush1.msra.mxu0 0.0
  %2354 = vmatprep.subr.mxu0 0.0
  %2355 = vmatpush1.msra.mxu0 0.0
  %2356 = vmatprep.subr.mxu0 0.0
  %2357 = vmatpush1.msra.mxu0 0.0
  %2358 = vmatprep.subr.mxu0 0.0
  %2359 = vmatpush1.msra.mxu0 0.0
  %2360 = vmatprep.subr.mxu0 0.0
  %2361 = vmatpush1.msra.mxu0 0.0
  %2362 = vmatprep.subr.mxu0 0.0
  %2363 = vmatpush1.msra.mxu0 0.0
  %2364 = vmatprep.subr.mxu0 0.0
  %2365 = vmatpush1.msra.mxu0 0.0
  %2366 = vmatprep.subr.mxu0 0.0
  %2367 = vmatpush1.msra.mxu0 0.0
  %2368 = vmatprep.subr.mxu0 0.0
  %2369 = vmatpush1.msra.mxu0 0.0
  %2370 = vmatprep.subr.mxu0 0.0
  %2371 = vmatpush1.msra.mxu0 0.0
  %2372 = vmatprep.subr.mxu0 0.0
  %2373 = vmatpush1.msra.mxu0 0.0
  %2374 = vmatprep.subr.mxu0 0.0
  %2375 = vmatpush1.msra.mxu0 0.0
  %2376 = vmatprep.subr.mxu0 0.0
  %2377 = vmatpush1.msra.mxu0 0.0
  %2378 = vmatprep.subr.mxu0 0.0
  %2379 = vmatpush1.msra.mxu0 0.0
  %2380 = vmatprep.subr.mxu0 0.0
  %2381 = vmatpush1.msra.mxu0 0.0
  %2382 = vmatprep.subr.mxu0 0.0
  %2383 = vmatpush1.msra.mxu0 0.0
  %2384 = vmatprep.subr.mxu0 0.0
  %2385 = vmatpush1.msra.mxu0 0.0
  %2386 = vmatprep.subr.mxu0 0.0
  %2387 = vmatpush1.msra.mxu0 0.0
  %2388 = vmatprep.subr.mxu0 0.0
  %2389 = vmatpush1.msra.mxu0 0.0
  %2390 = vmatprep.subr.mxu0 0.0
  %2391 = vmatpush1.msra.mxu0 0.0
  %2392 = vmatprep.subr.mxu0 0.0
  %2393 = vmatpush1.msra.mxu0 0.0
  %2394 = vmatprep.subr.mxu0 0.0
  %2395 = vmatpush1.msra.mxu0 0.0
  %2396 = vmatprep.subr.mxu0 0.0
  %2397 = vmatpush1.msra.mxu0 0.0
  %2398 = vmatprep.subr.mxu0 0.0
  %2399 = vmatpush1.msra.mxu0 0.0
  %2400 = vmatprep.subr.mxu0 0.0
  %2401 = vmatpush1.msra.mxu0 0.0
  %2402 = vmatprep.subr.mxu0 0.0
  %2403 = vmatpush1.msra.mxu0 0.0
  %2404 = vmatprep.subr.mxu0 0.0
  %2405 = vmatpush1.msra.mxu0 0.0
  %2406 = vmatprep.mubr.f32.mxu0 0.0
  %2407 = vmatmul.mubr.f32.gmra.mrb[0].mxu0 %v2269
  %v2408 = vpop.f32.mrb[0].mxu0
  %v2409 = vadd.f32 %v1931, %v2408
  %v2410 = vpop.f32.mrb[0].mxu0
  %2411 = vdwg.mxu0
  %v2412 = vadd.f32 %v2265, %v2338
  %v2413 = vadd.f32 %v2266, %v2340
  %v2414 = vxor.u32 %v2412, 2147483648
  %v2415 = vxor.u32 %v2413, 2147483648
  %v2416 = vmul.f32 %v2414, 1.442695
  %v2417 = vpow.pop %v2416
  %v2418 = vmul.f32 %v2415, 1.442695
  %v2419 = vpow.pop %v2418
  %v2420 = vadd.f32 %v2417, 1.0
  %v2421 = vadd.f32 %v2419, 1.0
  %v2422 = vrcp.pop %v2420
  %v2423 = vmul.f32 1.0, %v2422
  %v2424 = vrcp.pop %v2421
  %v2425 = vmul.f32 1.0, %v2424
  %v2426 = vmul.f32 %v2423, %v2409
  %v2427 = vadd.f32 %v2267, %v2426
  %v2428 = vtanh.pop %v2427
  %v2429 = vsub.f32 %v2263, %v2428
  %v2430 = vmul.f32 %v2425, %v2429
  %v2431 = vadd.f32 %v2428, %v2430
  %2432 = vst.msk [vmem:[%s738] sm:$0xff] %vm230, %v2431
  %v2433 = vld [vmem:[%s742] sm:$0xff]
  %v2434 = vld [vmem:[%s742 + $0x8] sm:$0xff]
  %v2435 = vld [vmem:[%s742 + $0x10] sm:$0xff]
  %v2437 = vsel %vm230, %v2431, 0
  %2439 = vmatprep.subr.mxu0 %v1904
  %2440 = vmatpush1.msra.mxu0 %v1903
  %2441 = vmatprep.subr.mxu0 %v1907
  %2442 = vmatpush1.msra.mxu0 %v1906
  %2443 = vmatprep.subr.mxu0 %v1910
  %2444 = vmatpush1.msra.mxu0 %v1909
  %2445 = vmatprep.subr.mxu0 %v1913
  %2446 = vmatpush1.msra.mxu0 %v1912
  %2447 = vmatprep.subr.mxu0 0.0
  %2448 = vmatpush1.msra.mxu0 0.0
  %2449 = vmatprep.subr.mxu0 0.0
  %2450 = vmatpush1.msra.mxu0 0.0
  %2451 = vmatprep.subr.mxu0 0.0
  %2452 = vmatpush1.msra.mxu0 0.0
  %2453 = vmatprep.subr.mxu0 0.0
  %2454 = vmatpush1.msra.mxu0 0.0
  %2455 = vmatprep.subr.mxu0 0.0
  %2456 = vmatpush1.msra.mxu0 0.0
  %2457 = vmatprep.subr.mxu0 0.0
  %2458 = vmatpush1.msra.mxu0 0.0
  %2459 = vmatprep.subr.mxu0 0.0
  %2460 = vmatpush1.msra.mxu0 0.0
  %2461 = vmatprep.subr.mxu0 0.0
  %2462 = vmatpush1.msra.mxu0 0.0
  %2463 = vmatprep.subr.mxu0 0.0
  %2464 = vmatpush1.msra.mxu0 0.0
  %2465 = vmatprep.subr.mxu0 0.0
  %2466 = vmatpush1.msra.mxu0 0.0
  %2467 = vmatprep.subr.mxu0 0.0
  %2468 = vmatpush1.msra.mxu0 0.0
  %2469 = vmatprep.subr.mxu0 0.0
  %2470 = vmatpush1.msra.mxu0 0.0
  %2471 = vmatprep.subr.mxu0 0.0
  %2472 = vmatpush1.msra.mxu0 0.0
  %2473 = vmatprep.subr.mxu0 0.0
  %2474 = vmatpush1.msra.mxu0 0.0
  %2475 = vmatprep.subr.mxu0 0.0
  %2476 = vmatpush1.msra.mxu0 0.0
  %2477 = vmatprep.subr.mxu0 0.0
  %2478 = vmatpush1.msra.mxu0 0.0
  %2479 = vmatprep.subr.mxu0 0.0
  %2480 = vmatpush1.msra.mxu0 0.0
  %2481 = vmatprep.subr.mxu0 0.0
  %2482 = vmatpush1.msra.mxu0 0.0
  %2483 = vmatprep.subr.mxu0 0.0
  %2484 = vmatpush1.msra.mxu0 0.0
  %2485 = vmatprep.subr.mxu0 0.0
  %2486 = vmatpush1.msra.mxu0 0.0
  %2487 = vmatprep.subr.mxu0 0.0
  %2488 = vmatpush1.msra.mxu0 0.0
  %2489 = vmatprep.subr.mxu0 0.0
  %2490 = vmatpush1.msra.mxu0 0.0
  %2491 = vmatprep.subr.mxu0 0.0
  %2492 = vmatpush1.msra.mxu0 0.0
  %2493 = vmatprep.subr.mxu0 0.0
  %2494 = vmatpush1.msra.mxu0 0.0
  %2495 = vmatprep.subr.mxu0 0.0
  %2496 = vmatpush1.msra.mxu0 0.0
  %2497 = vmatprep.subr.mxu0 0.0
  %2498 = vmatpush1.msra.mxu0 0.0
  %2499 = vmatprep.subr.mxu0 0.0
  %2500 = vmatpush1.msra.mxu0 0.0
  %2501 = vmatprep.subr.mxu0 0.0
  %2502 = vmatpush1.msra.mxu0 0.0
  %2503 = vmatprep.mubr.f32.mxu0 0.0
  %2504 = vmatmul.mubr.f32.gmra.mrb[0].mxu0 %v2437
  %v2505 = vpop.f32.mrb[0].mxu0
  %v2506 = vadd.f32 %v1923, %v2505
  %v2507 = vpop.f32.mrb[0].mxu0
  %v2508 = vadd.f32 %v1927, %v2507
  %2509 = vdwg.mxu0
  %2510 = vmatprep.subr.mxu0 0.0
  %2511 = vmatpush1.msra.mxu0 %v1905
  %2512 = vmatprep.subr.mxu0 0.0
  %2513 = vmatpush1.msra.mxu0 %v1908
  %2514 = vmatprep.subr.mxu0 0.0
  %2515 = vmatpush1.msra.mxu0 %v1911
  %2516 = vmatprep.subr.mxu0 0.0
  %2517 = vmatpush1.msra.mxu0 %v1914
  %2518 = vmatprep.subr.mxu0 0.0
  %2519 = vmatpush1.msra.mxu0 0.0
  %2520 = vmatprep.subr.mxu0 0.0
  %2521 = vmatpush1.msra.mxu0 0.0
  %2522 = vmatprep.subr.mxu0 0.0
  %2523 = vmatpush1.msra.mxu0 0.0
  %2524 = vmatprep.subr.mxu0 0.0
  %2525 = vmatpush1.msra.mxu0 0.0
  %2526 = vmatprep.subr.mxu0 0.0
  %2527 = vmatpush1.msra.mxu0 0.0
  %2528 = vmatprep.subr.mxu0 0.0
  %2529 = vmatpush1.msra.mxu0 0.0
  %2530 = vmatprep.subr.mxu0 0.0
  %2531 = vmatpush1.msra.mxu0 0.0
  %2532 = vmatprep.subr.mxu0 0.0
  %2533 = vmatpush1.msra.mxu0 0.0
  %2534 = vmatprep.subr.mxu0 0.0
  %2535 = vmatpush1.msra.mxu0 0.0
  %2536 = vmatprep.subr.mxu0 0.0
  %2537 = vmatpush1.msra.mxu0 0.0
  %2538 = vmatprep.subr.mxu0 0.0
  %2539 = vmatpush1.msra.mxu0 0.0
  %2540 = vmatprep.subr.mxu0 0.0
  %2541 = vmatpush1.msra.mxu0 0.0
  %2542 = vmatprep.subr.mxu0 0.0
  %2543 = vmatpush1.msra.mxu0 0.0
  %2544 = vmatprep.subr.mxu0 0.0
  %2545 = vmatpush1.msra.mxu0 0.0
  %2546 = vmatprep.subr.mxu0 0.0
  %2547 = vmatpush1.msra.mxu0 0.0
  %2548 = vmatprep.subr.mxu0 0.0
  %2549 = vmatpush1.msra.mxu0 0.0
  %2550 = vmatprep.subr.mxu0 0.0
  %2551 = vmatpush1.msra.mxu0 0.0
  %2552 = vmatprep.subr.mxu0 0.0
  %2553 = vmatpush1.msra.mxu0 0.0
  %2554 = vmatprep.subr.mxu0 0.0
  %2555 = vmatpush1.msra.mxu0 0.0
  %2556 = vmatprep.subr.mxu0 0.0
  %2557 = vmatpush1.msra.mxu0 0.0
  %2558 = vmatprep.subr.mxu0 0.0
  %2559 = vmatpush1.msra.mxu0 0.0
  %2560 = vmatprep.subr.mxu0 0.0
  %2561 = vmatpush1.msra.mxu0 0.0
  %2562 = vmatprep.subr.mxu0 0.0
  %2563 = vmatpush1.msra.mxu0 0.0
  %2564 = vmatprep.subr.mxu0 0.0
  %2565 = vmatpush1.msra.mxu0 0.0
  %2566 = vmatprep.subr.mxu0 0.0
  %2567 = vmatpush1.msra.mxu0 0.0
  %2568 = vmatprep.subr.mxu0 0.0
  %2569 = vmatpush1.msra.mxu0 0.0
  %2570 = vmatprep.subr.mxu0 0.0
  %2571 = vmatpush1.msra.mxu0 0.0
  %2572 = vmatprep.subr.mxu0 0.0
  %2573 = vmatpush1.msra.mxu0 0.0
  %2574 = vmatprep.mubr.f32.mxu0 0.0
  %2575 = vmatmul.mubr.f32.gmra.mrb[0].mxu0 %v2437
  %v2576 = vpop.f32.mrb[0].mxu0
  %v2577 = vadd.f32 %v1931, %v2576
  %v2578 = vpop.f32.mrb[0].mxu0
  %2579 = vdwg.mxu0
  %v2580 = vadd.f32 %v2433, %v2506
  %v2581 = vadd.f32 %v2434, %v2508
  %v2582 = vxor.u32 %v2580, 2147483648
  %v2583 = vxor.u32 %v2581, 2147483648
  %v2584 = vmul.f32 %v2582, 1.442695
  %v2585 = vpow.pop %v2584
  %v2586 = vmul.f32 %v2583, 1.442695
  %v2587 = vpow.pop %v2586
  %v2588 = vadd.f32 %v2585, 1.0
  %v2589 = vadd.f32 %v2587, 1.0
  %v2590 = vrcp.pop %v2588
  %v2591 = vmul.f32 1.0, %v2590
  %v2592 = vrcp.pop %v2589
  %v2593 = vmul.f32 1.0, %v2592
  %v2594 = vmul.f32 %v2591, %v2577
  %v2595 = vadd.f32 %v2435, %v2594
  %v2596 = vtanh.pop %v2595
  %v2597 = vsub.f32 %v2431, %v2596
  %v2598 = vmul.f32 %v2593, %v2597
  %v2599 = vadd.f32 %v2596, %v2598
  %2600 = vst.msk [vmem:[%s910] sm:$0xff] %vm230, %v2599
  %v2601 = vld [vmem:[%s914] sm:$0xff]
  %v2602 = vld [vmem:[%s914 + $0x8] sm:$0xff]
  %v2603 = vld [vmem:[%s914 + $0x10] sm:$0xff]
  %v2605 = vsel %vm230, %v2599, 0
  %2607 = vmatprep.subr.mxu0 %v1904
  %2608 = vmatpush1.msra.mxu0 %v1903
  %2609 = vmatprep.subr.mxu0 %v1907
  %2610 = vmatpush1.msra.mxu0 %v1906
  %2611 = vmatprep.subr.mxu0 %v1910
  %2612 = vmatpush1.msra.mxu0 %v1909
  %2613 = vmatprep.subr.mxu0 %v1913
  %2614 = vmatpush1.msra.mxu0 %v1912
  %2615 = vmatprep.subr.mxu0 0.0
  %2616 = vmatpush1.msra.mxu0 0.0
  %2617 = vmatprep.subr.mxu0 0.0
  %2618 = vmatpush1.msra.mxu0 0.0
  %2619 = vmatprep.subr.mxu0 0.0
  %2620 = vmatpush1.msra.mxu0 0.0
  %2621 = vmatprep.subr.mxu0 0.0
  %2622 = vmatpush1.msra.mxu0 0.0
  %2623 = vmatprep.subr.mxu0 0.0
  %2624 = vmatpush1.msra.mxu0 0.0
  %2625 = vmatprep.subr.mxu0 0.0
  %2626 = vmatpush1.msra.mxu0 0.0
  %2627 = vmatprep.subr.mxu0 0.0
  %2628 = vmatpush1.msra.mxu0 0.0
  %2629 = vmatprep.subr.mxu0 0.0
  %2630 = vmatpush1.msra.mxu0 0.0
  %2631 = vmatprep.subr.mxu0 0.0
  %2632 = vmatpush1.msra.mxu0 0.0
  %2633 = vmatprep.subr.mxu0 0.0
  %2634 = vmatpush1.msra.mxu0 0.0
  %2635 = vmatprep.subr.mxu0 0.0
  %2636 = vmatpush1.msra.mxu0 0.0
  %2637 = vmatprep.subr.mxu0 0.0
  %2638 = vmatpush1.msra.mxu0 0.0
  %2639 = vmatprep.subr.mxu0 0.0
  %2640 = vmatpush1.msra.mxu0 0.0
  %2641 = vmatprep.subr.mxu0 0.0
  %2642 = vmatpush1.msra.mxu0 0.0
  %2643 = vmatprep.subr.mxu0 0.0
  %2644 = vmatpush1.msra.mxu0 0.0
  %2645 = vmatprep.subr.mxu0 0.0
  %2646 = vmatpush1.msra.mxu0 0.0
  %2647 = vmatprep.subr.mxu0 0.0
  %2648 = vmatpush1.msra.mxu0 0.0
  %2649 = vmatprep.subr.mxu0 0.0
  %2650 = vmatpush1.msra.mxu0 0.0
  %2651 = vmatprep.subr.mxu0 0.0
  %2652 = vmatpush1.msra.mxu0 0.0
  %2653 = vmatprep.subr.mxu0 0.0
  %2654 = vmatpush1.msra.mxu0 0.0
  %2655 = vmatprep.subr.mxu0 0.0
  %2656 = vmatpush1.msra.mxu0 0.0
  %2657 = vmatprep.subr.mxu0 0.0
  %2658 = vmatpush1.msra.mxu0 0.0
  %2659 = vmatprep.subr.mxu0 0.0
  %2660 = vmatpush1.msra.mxu0 0.0
  %2661 = vmatprep.subr.mxu0 0.0
  %2662 = vmatpush1.msra.mxu0 0.0
  %2663 = vmatprep.subr.mxu0 0.0
  %2664 = vmatpush1.msra.mxu0 0.0
  %2665 = vmatprep.subr.mxu0 0.0
  %2666 = vmatpush1.msra.mxu0 0.0
  %2667 = vmatprep.subr.mxu0 0.0
  %2668 = vmatpush1.msra.mxu0 0.0
  %2669 = vmatprep.subr.mxu0 0.0
  %2670 = vmatpush1.msra.mxu0 0.0
  %2671 = vmatprep.mubr.f32.mxu0 0.0
  %2672 = vmatmul.mubr.f32.gmra.mrb[0].mxu0 %v2605
  %v2673 = vpop.f32.mrb[0].mxu0
  %v2674 = vadd.f32 %v1923, %v2673
  %v2675 = vpop.f32.mrb[0].mxu0
  %v2676 = vadd.f32 %v1927, %v2675
  %2677 = vdwg.mxu0
  %2678 = vmatprep.subr.mxu0 0.0
  %2679 = vmatpush1.msra.mxu0 %v1905
  %2680 = vmatprep.subr.mxu0 0.0
  %2681 = vmatpush1.msra.mxu0 %v1908
  %2682 = vmatprep.subr.mxu0 0.0
  %2683 = vmatpush1.msra.mxu0 %v1911
  %2684 = vmatprep.subr.mxu0 0.0
  %2685 = vmatpush1.msra.mxu0 %v1914
  %2686 = vmatprep.subr.mxu0 0.0
  %2687 = vmatpush1.msra.mxu0 0.0
  %2688 = vmatprep.subr.mxu0 0.0
  %2689 = vmatpush1.msra.mxu0 0.0
  %2690 = vmatprep.subr.mxu0 0.0
  %2691 = vmatpush1.msra.mxu0 0.0
  %2692 = vmatprep.subr.mxu0 0.0
  %2693 = vmatpush1.msra.mxu0 0.0
  %2694 = vmatprep.subr.mxu0 0.0
  %2695 = vmatpush1.msra.mxu0 0.0
  %2696 = vmatprep.subr.mxu0 0.0
  %2697 = vmatpush1.msra.mxu0 0.0
  %2698 = vmatprep.subr.mxu0 0.0
  %2699 = vmatpush1.msra.mxu0 0.0
  %2700 = vmatprep.subr.mxu0 0.0
  %2701 = vmatpush1.msra.mxu0 0.0
  %2702 = vmatprep.subr.mxu0 0.0
  %2703 = vmatpush1.msra.mxu0 0.0
  %2704 = vmatprep.subr.mxu0 0.0
  %2705 = vmatpush1.msra.mxu0 0.0
  %2706 = vmatprep.subr.mxu0 0.0
  %2707 = vmatpush1.msra.mxu0 0.0
  %2708 = vmatprep.subr.mxu0 0.0
  %2709 = vmatpush1.msra.mxu0 0.0
  %2710 = vmatprep.subr.mxu0 0.0
  %2711 = vmatpush1.msra.mxu0 0.0
  %2712 = vmatprep.subr.mxu0 0.0
  %2713 = vmatpush1.msra.mxu0 0.0
  %2714 = vmatprep.subr.mxu0 0.0
  %2715 = vmatpush1.msra.mxu0 0.0
  %2716 = vmatprep.subr.mxu0 0.0
  %2717 = vmatpush1.msra.mxu0 0.0
  %2718 = vmatprep.subr.mxu0 0.0
  %2719 = vmatpush1.msra.mxu0 0.0
  %2720 = vmatprep.subr.mxu0 0.0
  %2721 = vmatpush1.msra.mxu0 0.0
  %2722 = vmatprep.subr.mxu0 0.0
  %2723 = vmatpush1.msra.mxu0 0.0
  %2724 = vmatprep.subr.mxu0 0.0
  %2725 = vmatpush1.msra.mxu0 0.0
  %2726 = vmatprep.subr.mxu0 0.0
  %2727 = vmatpush1.msra.mxu0 0.0
  %2728 = vmatprep.subr.mxu0 0.0
  %2729 = vmatpush1.msra.mxu0 0.0
  %2730 = vmatprep.subr.mxu0 0.0
  %2731 = vmatpush1.msra.mxu0 0.0
  %2732 = vmatprep.subr.mxu0 0.0
  %2733 = vmatpush1.msra.mxu0 0.0
  %2734 = vmatprep.subr.mxu0 0.0
  %2735 = vmatpush1.msra.mxu0 0.0
  %2736 = vmatprep.subr.mxu0 0.0
  %2737 = vmatpush1.msra.mxu0 0.0
  %2738 = vmatprep.subr.mxu0 0.0
  %2739 = vmatpush1.msra.mxu0 0.0
  %2740 = vmatprep.subr.mxu0 0.0
  %2741 = vmatpush1.msra.mxu0 0.0
  %2742 = vmatprep.mubr.f32.mxu0 0.0
  %2743 = vmatmul.mubr.f32.gmra.mrb[0].mxu0 %v2605
  %v2744 = vpop.f32.mrb[0].mxu0
  %v2745 = vadd.f32 %v1931, %v2744
  %v2746 = vpop.f32.mrb[0].mxu0
  %2747 = vdwg.mxu0
  %v2748 = vadd.f32 %v2601, %v2674
  %v2749 = vadd.f32 %v2602, %v2676
  %v2750 = vxor.u32 %v2748, 2147483648
  %v2751 = vxor.u32 %v2749, 2147483648
  %v2752 = vmul.f32 %v2750, 1.442695
  %v2753 = vpow.pop %v2752
  %v2754 = vmul.f32 %v2751, 1.442695
  %v2755 = vpow.pop %v2754
  %v2756 = vadd.f32 %v2753, 1.0
  %v2757 = vadd.f32 %v2755, 1.0
  %v2758 = vrcp.pop %v2756
  %v2759 = vmul.f32 1.0, %v2758
  %v2760 = vrcp.pop %v2757
  %v2761 = vmul.f32 1.0, %v2760
  %v2762 = vmul.f32 %v2759, %v2745
  %v2763 = vadd.f32 %v2603, %v2762
  %v2764 = vtanh.pop %v2763
  %v2765 = vsub.f32 %v2599, %v2764
  %v2766 = vmul.f32 %v2761, %v2765
  %v2767 = vadd.f32 %v2764, %v2766
  %2768 = vst.msk [vmem:[%s1082] sm:$0xff] %vm230, %v2767
  %v2769 = vld [vmem:[%s1086] sm:$0xff]
  %v2770 = vld [vmem:[%s1086 + $0x8] sm:$0xff]
  %v2771 = vld [vmem:[%s1086 + $0x10] sm:$0xff]
  %v2773 = vsel %vm230, %v2767, 0
  %2775 = vmatprep.subr.mxu0 %v1904
  %2776 = vmatpush1.msra.mxu0 %v1903
  %2777 = vmatprep.subr.mxu0 %v1907
  %2778 = vmatpush1.msra.mxu0 %v1906
  %2779 = vmatprep.subr.mxu0 %v1910
  %2780 = vmatpush1.msra.mxu0 %v1909
  %2781 = vmatprep.subr.mxu0 %v1913
  %2782 = vmatpush1.msra.mxu0 %v1912
  %2783 = vmatprep.subr.mxu0 0.0
  %2784 = vmatpush1.msra.mxu0 0.0
  %2785 = vmatprep.subr.mxu0 0.0
  %2786 = vmatpush1.msra.mxu0 0.0
  %2787 = vmatprep.subr.mxu0 0.0
  %2788 = vmatpush1.msra.mxu0 0.0
  %2789 = vmatprep.subr.mxu0 0.0
  %2790 = vmatpush1.msra.mxu0 0.0
  %2791 = vmatprep.subr.mxu0 0.0
  %2792 = vmatpush1.msra.mxu0 0.0
  %2793 = vmatprep.subr.mxu0 0.0
  %2794 = vmatpush1.msra.mxu0 0.0
  %2795 = vmatprep.subr.mxu0 0.0
  %2796 = vmatpush1.msra.mxu0 0.0
  %2797 = vmatprep.subr.mxu0 0.0
  %2798 = vmatpush1.msra.mxu0 0.0
  %2799 = vmatprep.subr.mxu0 0.0
  %2800 = vmatpush1.msra.mxu0 0.0
  %2801 = vmatprep.subr.mxu0 0.0
  %2802 = vmatpush1.msra.mxu0 0.0
  %2803 = vmatprep.subr.mxu0 0.0
  %2804 = vmatpush1.msra.mxu0 0.0
  %2805 = vmatprep.subr.mxu0 0.0
  %2806 = vmatpush1.msra.mxu0 0.0
  %2807 = vmatprep.subr.mxu0 0.0
  %2808 = vmatpush1.msra.mxu0 0.0
  %2809 = vmatprep.subr.mxu0 0.0
  %2810 = vmatpush1.msra.mxu0 0.0
  %2811 = vmatprep.subr.mxu0 0.0
  %2812 = vmatpush1.msra.mxu0 0.0
  %2813 = vmatprep.subr.mxu0 0.0
  %2814 = vmatpush1.msra.mxu0 0.0
  %2815 = vmatprep.subr.mxu0 0.0
  %2816 = vmatpush1.msra.mxu0 0.0
  %2817 = vmatprep.subr.mxu0 0.0
  %2818 = vmatpush1.msra.mxu0 0.0
  %2819 = vmatprep.subr.mxu0 0.0
  %2820 = vmatpush1.msra.mxu0 0.0
  %2821 = vmatprep.subr.mxu0 0.0
  %2822 = vmatpush1.msra.mxu0 0.0
  %2823 = vmatprep.subr.mxu0 0.0
  %2824 = vmatpush1.msra.mxu0 0.0
  %2825 = vmatprep.subr.mxu0 0.0
  %2826 = vmatpush1.msra.mxu0 0.0
  %2827 = vmatprep.subr.mxu0 0.0
  %2828 = vmatpush1.msra.mxu0 0.0
  %2829 = vmatprep.subr.mxu0 0.0
  %2830 = vmatpush1.msra.mxu0 0.0
  %2831 = vmatprep.subr.mxu0 0.0
  %2832 = vmatpush1.msra.mxu0 0.0
  %2833 = vmatprep.subr.mxu0 0.0
  %2834 = vmatpush1.msra.mxu0 0.0
  %2835 = vmatprep.subr.mxu0 0.0
  %2836 = vmatpush1.msra.mxu0 0.0
  %2837 = vmatprep.subr.mxu0 0.0
  %2838 = vmatpush1.msra.mxu0 0.0
  %2839 = vmatprep.mubr.f32.mxu0 0.0
  %2840 = vmatmul.mubr.f32.gmra.mrb[0].mxu0 %v2773
  %v2841 = vpop.f32.mrb[0].mxu0
  %v2842 = vadd.f32 %v1923, %v2841
  %v2843 = vpop.f32.mrb[0].mxu0
  %v2844 = vadd.f32 %v1927, %v2843
  %2845 = vdwg.mxu0
  %2846 = vmatprep.subr.mxu0 0.0
  %2847 = vmatpush1.msra.mxu0 %v1905
  %2848 = vmatprep.subr.mxu0 0.0
  %2849 = vmatpush1.msra.mxu0 %v1908
  %2850 = vmatprep.subr.mxu0 0.0
  %2851 = vmatpush1.msra.mxu0 %v1911
  %2852 = vmatprep.subr.mxu0 0.0
  %2853 = vmatpush1.msra.mxu0 %v1914
  %2854 = vmatprep.subr.mxu0 0.0
  %2855 = vmatpush1.msra.mxu0 0.0
  %2856 = vmatprep.subr.mxu0 0.0
  %2857 = vmatpush1.msra.mxu0 0.0
  %2858 = vmatprep.subr.mxu0 0.0
  %2859 = vmatpush1.msra.mxu0 0.0
  %2860 = vmatprep.subr.mxu0 0.0
  %2861 = vmatpush1.msra.mxu0 0.0
  %2862 = vmatprep.subr.mxu0 0.0
  %2863 = vmatpush1.msra.mxu0 0.0
  %2864 = vmatprep.subr.mxu0 0.0
  %2865 = vmatpush1.msra.mxu0 0.0
  %2866 = vmatprep.subr.mxu0 0.0
  %2867 = vmatpush1.msra.mxu0 0.0
  %2868 = vmatprep.subr.mxu0 0.0
  %2869 = vmatpush1.msra.mxu0 0.0
  %2870 = vmatprep.subr.mxu0 0.0
  %2871 = vmatpush1.msra.mxu0 0.0
  %2872 = vmatprep.subr.mxu0 0.0
  %2873 = vmatpush1.msra.mxu0 0.0
  %2874 = vmatprep.subr.mxu0 0.0
  %2875 = vmatpush1.msra.mxu0 0.0
  %2876 = vmatprep.subr.mxu0 0.0
  %2877 = vmatpush1.msra.mxu0 0.0
  %2878 = vmatprep.subr.mxu0 0.0
  %2879 = vmatpush1.msra.mxu0 0.0
  %2880 = vmatprep.subr.mxu0 0.0
  %2881 = vmatpush1.msra.mxu0 0.0
  %2882 = vmatprep.subr.mxu0 0.0
  %2883 = vmatpush1.msra.mxu0 0.0
  %2884 = vmatprep.subr.mxu0 0.0
  %2885 = vmatpush1.msra.mxu0 0.0
  %2886 = vmatprep.subr.mxu0 0.0
  %2887 = vmatpush1.msra.mxu0 0.0
  %2888 = vmatprep.subr.mxu0 0.0
  %2889 = vmatpush1.msra.mxu0 0.0
  %2890 = vmatprep.subr.mxu0 0.0
  %2891 = vmatpush1.msra.mxu0 0.0
  %2892 = vmatprep.subr.mxu0 0.0
  %2893 = vmatpush1.msra.mxu0 0.0
  %2894 = vmatprep.subr.mxu0 0.0
  %2895 = vmatpush1.msra.mxu0 0.0
  %2896 = vmatprep.subr.mxu0 0.0
  %2897 = vmatpush1.msra.mxu0 0.0
  %2898 = vmatprep.subr.mxu0 0.0
  %2899 = vmatpush1.msra.mxu0 0.0
  %2900 = vmatprep.subr.mxu0 0.0
  %2901 = vmatpush1.msra.mxu0 0.0
  %2902 = vmatprep.subr.mxu0 0.0
  %2903 = vmatpush1.msra.mxu0 0.0
  %2904 = vmatprep.subr.mxu0 0.0
  %2905 = vmatpush1.msra.mxu0 0.0
  %2906 = vmatprep.subr.mxu0 0.0
  %2907 = vmatpush1.msra.mxu0 0.0
  %2908 = vmatprep.subr.mxu0 0.0
  %2909 = vmatpush1.msra.mxu0 0.0
  %2910 = vmatprep.mubr.f32.mxu0 0.0
  %2911 = vmatmul.mubr.f32.gmra.mrb[0].mxu0 %v2773
  %v2912 = vpop.f32.mrb[0].mxu0
  %v2913 = vadd.f32 %v1931, %v2912
  %v2914 = vpop.f32.mrb[0].mxu0
  %2915 = vdwg.mxu0
  %v2916 = vadd.f32 %v2769, %v2842
  %v2917 = vadd.f32 %v2770, %v2844
  %v2918 = vxor.u32 %v2916, 2147483648
  %v2919 = vxor.u32 %v2917, 2147483648
  %v2920 = vmul.f32 %v2918, 1.442695
  %v2921 = vpow.pop %v2920
  %v2922 = vmul.f32 %v2919, 1.442695
  %v2923 = vpow.pop %v2922
  %v2924 = vadd.f32 %v2921, 1.0
  %v2925 = vadd.f32 %v2923, 1.0
  %v2926 = vrcp.pop %v2924
  %v2927 = vmul.f32 1.0, %v2926
  %v2928 = vrcp.pop %v2925
  %v2929 = vmul.f32 1.0, %v2928
  %v2930 = vmul.f32 %v2927, %v2913
  %v2931 = vadd.f32 %v2771, %v2930
  %v2932 = vtanh.pop %v2931
  %v2933 = vsub.f32 %v2767, %v2932
  %v2934 = vmul.f32 %v2929, %v2933
  %v2935 = vadd.f32 %v2932, %v2934
  %2936 = vst.msk [vmem:[%s1254] sm:$0xff] %vm230, %v2935
  %v2937 = vld [vmem:[%s1258] sm:$0xff]
  %v2938 = vld [vmem:[%s1258 + $0x8] sm:$0xff]
  %v2939 = vld [vmem:[%s1258 + $0x10] sm:$0xff]
  %v2941 = vsel %vm230, %v2935, 0
  %2943 = vmatprep.subr.mxu0 %v1904
  %2944 = vmatpush1.msra.mxu0 %v1903
  %2945 = vmatprep.subr.mxu0 %v1907
  %2946 = vmatpush1.msra.mxu0 %v1906
  %2947 = vmatprep.subr.mxu0 %v1910
  %2948 = vmatpush1.msra.mxu0 %v1909
  %2949 = vmatprep.subr.mxu0 %v1913
  %2950 = vmatpush1.msra.mxu0 %v1912
  %2951 = vmatprep.subr.mxu0 0.0
  %2952 = vmatpush1.msra.mxu0 0.0
  %2953 = vmatprep.subr.mxu0 0.0
  %2954 = vmatpush1.msra.mxu0 0.0
  %2955 = vmatprep.subr.mxu0 0.0
  %2956 = vmatpush1.msra.mxu0 0.0
  %2957 = vmatprep.subr.mxu0 0.0
  %2958 = vmatpush1.msra.mxu0 0.0
  %2959 = vmatprep.subr.mxu0 0.0
  %2960 = vmatpush1.msra.mxu0 0.0
  %2961 = vmatprep.subr.mxu0 0.0
  %2962 = vmatpush1.msra.mxu0 0.0
  %2963 = vmatprep.subr.mxu0 0.0
  %2964 = vmatpush1.msra.mxu0 0.0
  %2965 = vmatprep.subr.mxu0 0.0
  %2966 = vmatpush1.msra.mxu0 0.0
  %2967 = vmatprep.subr.mxu0 0.0
  %2968 = vmatpush1.msra.mxu0 0.0
  %2969 = vmatprep.subr.mxu0 0.0
  %2970 = vmatpush1.msra.mxu0 0.0
  %2971 = vmatprep.subr.mxu0 0.0
  %2972 = vmatpush1.msra.mxu0 0.0
  %2973 = vmatprep.subr.mxu0 0.0
  %2974 = vmatpush1.msra.mxu0 0.0
  %2975 = vmatprep.subr.mxu0 0.0
  %2976 = vmatpush1.msra.mxu0 0.0
  %2977 = vmatprep.subr.mxu0 0.0
  %2978 = vmatpush1.msra.mxu0 0.0
  %2979 = vmatprep.subr.mxu0 0.0
  %2980 = vmatpush1.msra.mxu0 0.0
  %2981 = vmatprep.subr.mxu0 0.0
  %2982 = vmatpush1.msra.mxu0 0.0
  %2983 = vmatprep.subr.mxu0 0.0
  %2984 = vmatpush1.msra.mxu0 0.0
  %2985 = vmatprep.subr.mxu0 0.0
  %2986 = vmatpush1.msra.mxu0 0.0
  %2987 = vmatprep.subr.mxu0 0.0
  %2988 = vmatpush1.msra.mxu0 0.0
  %2989 = vmatprep.subr.mxu0 0.0
  %2990 = vmatpush1.msra.mxu0 0.0
  %2991 = vmatprep.subr.mxu0 0.0
  %2992 = vmatpush1.msra.mxu0 0.0
  %2993 = vmatprep.subr.mxu0 0.0
  %2994 = vmatpush1.msra.mxu0 0.0
  %2995 = vmatprep.subr.mxu0 0.0
  %2996 = vmatpush1.msra.mxu0 0.0
  %2997 = vmatprep.subr.mxu0 0.0
  %2998 = vmatpush1.msra.mxu0 0.0
  %2999 = vmatprep.subr.mxu0 0.0
  %3000 = vmatpush1.msra.mxu0 0.0
  %3001 = vmatprep.subr.mxu0 0.0
  %3002 = vmatpush1.msra.mxu0 0.0
  %3003 = vmatprep.subr.mxu0 0.0
  %3004 = vmatpush1.msra.mxu0 0.0
  %3005 = vmatprep.subr.mxu0 0.0
  %3006 = vmatpush1.msra.mxu0 0.0
  %3007 = vmatprep.mubr.f32.mxu0 0.0
  %3008 = vmatmul.mubr.f32.gmra.mrb[0].mxu0 %v2941
  %v3009 = vpop.f32.mrb[0].mxu0
  %v3010 = vadd.f32 %v1923, %v3009
  %v3011 = vpop.f32.mrb[0].mxu0
  %v3012 = vadd.f32 %v1927, %v3011
  %3013 = vdwg.mxu0
  %3014 = vmatprep.subr.mxu0 0.0
  %3015 = vmatpush1.msra.mxu0 %v1905
  %3016 = vmatprep.subr.mxu0 0.0
  %3017 = vmatpush1.msra.mxu0 %v1908
  %3018 = vmatprep.subr.mxu0 0.0
  %3019 = vmatpush1.msra.mxu0 %v1911
  %3020 = vmatprep.subr.mxu0 0.0
  %3021 = vmatpush1.msra.mxu0 %v1914
  %3022 = vmatprep.subr.mxu0 0.0
  %3023 = vmatpush1.msra.mxu0 0.0
  %3024 = vmatprep.subr.mxu0 0.0
  %3025 = vmatpush1.msra.mxu0 0.0
  %3026 = vmatprep.subr.mxu0 0.0
  %3027 = vmatpush1.msra.mxu0 0.0
  %3028 = vmatprep.subr.mxu0 0.0
  %3029 = vmatpush1.msra.mxu0 0.0
  %3030 = vmatprep.subr.mxu0 0.0
  %3031 = vmatpush1.msra.mxu0 0.0
  %3032 = vmatprep.subr.mxu0 0.0
  %3033 = vmatpush1.msra.mxu0 0.0
  %3034 = vmatprep.subr.mxu0 0.0
  %3035 = vmatpush1.msra.mxu0 0.0
  %3036 = vmatprep.subr.mxu0 0.0
  %3037 = vmatpush1.msra.mxu0 0.0
  %3038 = vmatprep.subr.mxu0 0.0
  %3039 = vmatpush1.msra.mxu0 0.0
  %3040 = vmatprep.subr.mxu0 0.0
  %3041 = vmatpush1.msra.mxu0 0.0
  %3042 = vmatprep.subr.mxu0 0.0
  %3043 = vmatpush1.msra.mxu0 0.0
  %3044 = vmatprep.subr.mxu0 0.0
  %3045 = vmatpush1.msra.mxu0 0.0
  %3046 = vmatprep.subr.mxu0 0.0
  %3047 = vmatpush1.msra.mxu0 0.0
  %3048 = vmatprep.subr.mxu0 0.0
  %3049 = vmatpush1.msra.mxu0 0.0
  %3050 = vmatprep.subr.mxu0 0.0
  %3051 = vmatpush1.msra.mxu0 0.0
  %3052 = vmatprep.subr.mxu0 0.0
  %3053 = vmatpush1.msra.mxu0 0.0
  %3054 = vmatprep.subr.mxu0 0.0
  %3055 = vmatpush1.msra.mxu0 0.0
  %3056 = vmatprep.subr.mxu0 0.0
  %3057 = vmatpush1.msra.mxu0 0.0
  %3058 = vmatprep.subr.mxu0 0.0
  %3059 = vmatpush1.msra.mxu0 0.0
  %3060 = vmatprep.subr.mxu0 0.0
  %3061 = vmatpush1.msra.mxu0 0.0
  %3062 = vmatprep.subr.mxu0 0.0
  %3063 = vmatpush1.msra.mxu0 0.0
  %3064 = vmatprep.subr.mxu0 0.0
  %3065 = vmatpush1.msra.mxu0 0.0
  %3066 = vmatprep.subr.mxu0 0.0
  %3067 = vmatpush1.msra.mxu0 0.0
  %3068 = vmatprep.subr.mxu0 0.0
  %3069 = vmatpush1.msra.mxu0 0.0
  %3070 = vmatprep.subr.mxu0 0.0
  %3071 = vmatpush1.msra.mxu0 0.0
  %3072 = vmatprep.subr.mxu0 0.0
  %3073 = vmatpush1.msra.mxu0 0.0
  %3074 = vmatprep.subr.mxu0 0.0
  %3075 = vmatpush1.msra.mxu0 0.0
  %3076 = vmatprep.subr.mxu0 0.0
  %3077 = vmatpush1.msra.mxu0 0.0
  %3078 = vmatprep.mubr.f32.mxu0 0.0
  %3079 = vmatmul.mubr.f32.gmra.mrb[0].mxu0 %v2941
  %v3080 = vpop.f32.mrb[0].mxu0
  %v3081 = vadd.f32 %v1931, %v3080
  %v3082 = vpop.f32.mrb[0].mxu0
  %3083 = vdwg.mxu0
  %v3084 = vadd.f32 %v2937, %v3010
  %v3085 = vadd.f32 %v2938, %v3012
  %v3086 = vxor.u32 %v3084, 2147483648
  %v3087 = vxor.u32 %v3085, 2147483648
  %v3088 = vmul.f32 %v3086, 1.442695
  %v3089 = vpow.pop %v3088
  %v3090 = vmul.f32 %v3087, 1.442695
  %v3091 = vpow.pop %v3090
  %v3092 = vadd.f32 %v3089, 1.0
  %v3093 = vadd.f32 %v3091, 1.0
  %v3094 = vrcp.pop %v3092
  %v3095 = vmul.f32 1.0, %v3094
  %v3096 = vrcp.pop %v3093
  %v3097 = vmul.f32 1.0, %v3096
  %v3098 = vmul.f32 %v3095, %v3081
  %v3099 = vadd.f32 %v2939, %v3098
  %v3100 = vtanh.pop %v3099
  %v3101 = vsub.f32 %v2935, %v3100
  %v3102 = vmul.f32 %v3097, %v3101
  %v3103 = vadd.f32 %v3100, %v3102
  %3104 = vst.msk [vmem:[%s1426] sm:$0xff] %vm230, %v3103
  %v3105 = vld [vmem:[%s1430] sm:$0xff]
  %v3106 = vld [vmem:[%s1430 + $0x8] sm:$0xff]
  %v3107 = vld [vmem:[%s1430 + $0x10] sm:$0xff]
  %v3109 = vsel %vm230, %v3103, 0
  %3111 = vmatprep.subr.mxu0 %v1904
  %3112 = vmatpush1.msra.mxu0 %v1903
  %3113 = vmatprep.subr.mxu0 %v1907
  %3114 = vmatpush1.msra.mxu0 %v1906
  %3115 = vmatprep.subr.mxu0 %v1910
  %3116 = vmatpush1.msra.mxu0 %v1909
  %3117 = vmatprep.subr.mxu0 %v1913
  %3118 = vmatpush1.msra.mxu0 %v1912
  %3119 = vmatprep.subr.mxu0 0.0
  %3120 = vmatpush1.msra.mxu0 0.0
  %3121 = vmatprep.subr.mxu0 0.0
  %3122 = vmatpush1.msra.mxu0 0.0
  %3123 = vmatprep.subr.mxu0 0.0
  %3124 = vmatpush1.msra.mxu0 0.0
  %3125 = vmatprep.subr.mxu0 0.0
  %3126 = vmatpush1.msra.mxu0 0.0
  %3127 = vmatprep.subr.mxu0 0.0
  %3128 = vmatpush1.msra.mxu0 0.0
  %3129 = vmatprep.subr.mxu0 0.0
  %3130 = vmatpush1.msra.mxu0 0.0
  %3131 = vmatprep.subr.mxu0 0.0
  %3132 = vmatpush1.msra.mxu0 0.0
  %3133 = vmatprep.subr.mxu0 0.0
  %3134 = vmatpush1.msra.mxu0 0.0
  %3135 = vmatprep.subr.mxu0 0.0
  %3136 = vmatpush1.msra.mxu0 0.0
  %3137 = vmatprep.subr.mxu0 0.0
  %3138 = vmatpush1.msra.mxu0 0.0
  %3139 = vmatprep.subr.mxu0 0.0
  %3140 = vmatpush1.msra.mxu0 0.0
  %3141 = vmatprep.subr.mxu0 0.0
  %3142 = vmatpush1.msra.mxu0 0.0
  %3143 = vmatprep.subr.mxu0 0.0
  %3144 = vmatpush1.msra.mxu0 0.0
  %3145 = vmatprep.subr.mxu0 0.0
  %3146 = vmatpush1.msra.mxu0 0.0
  %3147 = vmatprep.subr.mxu0 0.0
  %3148 = vmatpush1.msra.mxu0 0.0
  %3149 = vmatprep.subr.mxu0 0.0
  %3150 = vmatpush1.msra.mxu0 0.0
  %3151 = vmatprep.subr.mxu0 0.0
  %3152 = vmatpush1.msra.mxu0 0.0
  %3153 = vmatprep.subr.mxu0 0.0
  %3154 = vmatpush1.msra.mxu0 0.0
  %3155 = vmatprep.subr.mxu0 0.0
  %3156 = vmatpush1.msra.mxu0 0.0
  %3157 = vmatprep.subr.mxu0 0.0
  %3158 = vmatpush1.msra.mxu0 0.0
  %3159 = vmatprep.subr.mxu0 0.0
  %3160 = vmatpush1.msra.mxu0 0.0
  %3161 = vmatprep.subr.mxu0 0.0
  %3162 = vmatpush1.msra.mxu0 0.0
  %3163 = vmatprep.subr.mxu0 0.0
  %3164 = vmatpush1.msra.mxu0 0.0
  %3165 = vmatprep.subr.mxu0 0.0
  %3166 = vmatpush1.msra.mxu0 0.0
  %3167 = vmatprep.subr.mxu0 0.0
  %3168 = vmatpush1.msra.mxu0 0.0
  %3169 = vmatprep.subr.mxu0 0.0
  %3170 = vmatpush1.msra.mxu0 0.0
  %3171 = vmatprep.subr.mxu0 0.0
  %3172 = vmatpush1.msra.mxu0 0.0
  %3173 = vmatprep.subr.mxu0 0.0
  %3174 = vmatpush1.msra.mxu0 0.0
  %3175 = vmatprep.mubr.f32.mxu0 0.0
  %3176 = vmatmul.mubr.f32.gmra.mrb[0].mxu0 %v3109
  %v3177 = vpop.f32.mrb[0].mxu0
  %v3178 = vadd.f32 %v1923, %v3177
  %v3179 = vpop.f32.mrb[0].mxu0
  %v3180 = vadd.f32 %v1927, %v3179
  %3181 = vdwg.mxu0
  %3182 = vmatprep.subr.mxu0 0.0
  %3183 = vmatpush1.msra.mxu0 %v1905
  %3184 = vmatprep.subr.mxu0 0.0
  %3185 = vmatpush1.msra.mxu0 %v1908
  %3186 = vmatprep.subr.mxu0 0.0
  %3187 = vmatpush1.msra.mxu0 %v1911
  %3188 = vmatprep.subr.mxu0 0.0
  %3189 = vmatpush1.msra.mxu0 %v1914
  %3190 = vmatprep.subr.mxu0 0.0
  %3191 = vmatpush1.msra.mxu0 0.0
  %3192 = vmatprep.subr.mxu0 0.0
  %3193 = vmatpush1.msra.mxu0 0.0
  %3194 = vmatprep.subr.mxu0 0.0
  %3195 = vmatpush1.msra.mxu0 0.0
  %3196 = vmatprep.subr.mxu0 0.0
  %3197 = vmatpush1.msra.mxu0 0.0
  %3198 = vmatprep.subr.mxu0 0.0
  %3199 = vmatpush1.msra.mxu0 0.0
  %3200 = vmatprep.subr.mxu0 0.0
  %3201 = vmatpush1.msra.mxu0 0.0
  %3202 = vmatprep.subr.mxu0 0.0
  %3203 = vmatpush1.msra.mxu0 0.0
  %3204 = vmatprep.subr.mxu0 0.0
  %3205 = vmatpush1.msra.mxu0 0.0
  %3206 = vmatprep.subr.mxu0 0.0
  %3207 = vmatpush1.msra.mxu0 0.0
  %3208 = vmatprep.subr.mxu0 0.0
  %3209 = vmatpush1.msra.mxu0 0.0
  %3210 = vmatprep.subr.mxu0 0.0
  %3211 = vmatpush1.msra.mxu0 0.0
  %3212 = vmatprep.subr.mxu0 0.0
  %3213 = vmatpush1.msra.mxu0 0.0
  %3214 = vmatprep.subr.mxu0 0.0
  %3215 = vmatpush1.msra.mxu0 0.0
  %3216 = vmatprep.subr.mxu0 0.0
  %3217 = vmatpush1.msra.mxu0 0.0
  %3218 = vmatprep.subr.mxu0 0.0
  %3219 = vmatpush1.msra.mxu0 0.0
  %3220 = vmatprep.subr.mxu0 0.0
  %3221 = vmatpush1.msra.mxu0 0.0
  %3222 = vmatprep.subr.mxu0 0.0
  %3223 = vmatpush1.msra.mxu0 0.0
  %3224 = vmatprep.subr.mxu0 0.0
  %3225 = vmatpush1.msra.mxu0 0.0
  %3226 = vmatprep.subr.mxu0 0.0
  %3227 = vmatpush1.msra.mxu0 0.0
  %3228 = vmatprep.subr.mxu0 0.0
  %3229 = vmatpush1.msra.mxu0 0.0
  %3230 = vmatprep.subr.mxu0 0.0
  %3231 = vmatpush1.msra.mxu0 0.0
  %3232 = vmatprep.subr.mxu0 0.0
  %3233 = vmatpush1.msra.mxu0 0.0
  %3234 = vmatprep.subr.mxu0 0.0
  %3235 = vmatpush1.msra.mxu0 0.0
  %3236 = vmatprep.subr.mxu0 0.0
  %3237 = vmatpush1.msra.mxu0 0.0
  %3238 = vmatprep.subr.mxu0 0.0
  %3239 = vmatpush1.msra.mxu0 0.0
  %3240 = vmatprep.subr.mxu0 0.0
  %3241 = vmatpush1.msra.mxu0 0.0
  %3242 = vmatprep.subr.mxu0 0.0
  %3243 = vmatpush1.msra.mxu0 0.0
  %3244 = vmatprep.subr.mxu0 0.0
  %3245 = vmatpush1.msra.mxu0 0.0
  %3246 = vmatprep.mubr.f32.mxu0 0.0
  %3247 = vmatmul.mubr.f32.gmra.mrb[0].mxu0 %v3109
  %v3248 = vpop.f32.mrb[0].mxu0
  %v3249 = vadd.f32 %v1931, %v3248
  %v3250 = vpop.f32.mrb[0].mxu0
  %3251 = vdwg.mxu0
  %v3252 = vadd.f32 %v3105, %v3178
  %v3253 = vadd.f32 %v3106, %v3180
  %v3254 = vxor.u32 %v3252, 2147483648
  %v3255 = vxor.u32 %v3253, 2147483648
  %v3256 = vmul.f32 %v3254, 1.442695
  %v3257 = vpow.pop %v3256
  %v3258 = vmul.f32 %v3255, 1.442695
  %v3259 = vpow.pop %v3258
  %v3260 = vadd.f32 %v3257, 1.0
  %v3261 = vadd.f32 %v3259, 1.0
  %v3262 = vrcp.pop %v3260
  %v3263 = vmul.f32 1.0, %v3262
  %v3264 = vrcp.pop %v3261
  %v3265 = vmul.f32 1.0, %v3264
  %v3266 = vmul.f32 %v3263, %v3249
  %v3267 = vadd.f32 %v3107, %v3266
  %v3268 = vtanh.pop %v3267
  %v3269 = vsub.f32 %v3103, %v3268
  %v3270 = vmul.f32 %v3265, %v3269
  %v3271 = vadd.f32 %v3268, %v3270
  %3272 = vst.msk [vmem:[%s1598] sm:$0xff] %vm230, %v3271
  %v3273 = vld [vmem:[#allocation3] sm:$0xff]
  %v3274 = vld [vmem:[#allocation3 + $0x8] sm:$0xff]
  %v3275 = vld [vmem:[#allocation3 + $0x10] sm:$0xff]
  %v3276 = vld [vmem:[#allocation3 + $0x18] sm:$0xff]
  %v3277 = vld [vmem:[#allocation3 + $0x20] sm:$0xff]
  %v3278 = vld [vmem:[#allocation3 + $0x28] sm:$0xff]
  %v3279 = vld [vmem:[#allocation3 + $0x30] sm:$0xff]
  %v3280 = vld [vmem:[#allocation3 + $0x38] sm:$0xff]
  %v3281 = vld [vmem:[%s10] sm:$0xff]
  %v3282 = vld [vmem:[%s10 + $0x8] sm:$0xff]
  %v3283 = vld [vmem:[%s10 + $0x10] sm:$0xff]
  %v3284 = vld [vmem:[%s10 + $0x18] sm:$0xff]
  %v3285 = vld [vmem:[%s11] sm:$0x1]
  %v3287 = vlaneseq
  %v3288 = vshrl.u32 %v3287, 7
  %v3289 = vsub.s32 0, %v3288
  %v3290 = vrot.slane %v3285, %v3289
  %v3293 = vsel %vm230, %v3273, 0
  %v3296 = vsel %vm230, %v3274, 0
  %v3299 = vsel %vm230, %v3275, 0
  %v3302 = vsel %vm230, %v3276, 0
  %v3305 = vsel %vm230, %v3277, 0
  %v3308 = vsel %vm230, %v3278, 0
  %v3311 = vsel %vm230, %v3279, 0
  %v3314 = vsel %vm230, %v3280, 0
  %3316 = vmatprep.subr.mxu0 0.0
  %3317 = vmatpush1.msra.mxu0 %v3281
  %3318 = vmatprep.subr.mxu0 0.0
  %3319 = vmatpush1.msra.mxu0 %v3282
  %3320 = vmatprep.subr.mxu0 0.0
  %3321 = vmatpush1.msra.mxu0 %v3283
  %3322 = vmatprep.subr.mxu0 0.0
  %3323 = vmatpush1.msra.mxu0 %v3284
  %3324 = vmatprep.subr.mxu0 0.0
  %3325 = vmatpush1.msra.mxu0 0.0
  %3326 = vmatprep.subr.mxu0 0.0
  %3327 = vmatpush1.msra.mxu0 0.0
  %3328 = vmatprep.subr.mxu0 0.0
  %3329 = vmatpush1.msra.mxu0 0.0
  %3330 = vmatprep.subr.mxu0 0.0
  %3331 = vmatpush1.msra.mxu0 0.0
  %3332 = vmatprep.subr.mxu0 0.0
  %3333 = vmatpush1.msra.mxu0 0.0
  %3334 = vmatprep.subr.mxu0 0.0
  %3335 = vmatpush1.msra.mxu0 0.0
  %3336 = vmatprep.subr.mxu0 0.0
  %3337 = vmatpush1.msra.mxu0 0.0
  %3338 = vmatprep.subr.mxu0 0.0
  %3339 = vmatpush1.msra.mxu0 0.0
  %3340 = vmatprep.subr.mxu0 0.0
  %3341 = vmatpush1.msra.mxu0 0.0
  %3342 = vmatprep.subr.mxu0 0.0
  %3343 = vmatpush1.msra.mxu0 0.0
  %3344 = vmatprep.subr.mxu0 0.0
  %3345 = vmatpush1.msra.mxu0 0.0
  %3346 = vmatprep.subr.mxu0 0.0
  %3347 = vmatpush1.msra.mxu0 0.0
  %3348 = vmatprep.subr.mxu0 0.0
  %3349 = vmatpush1.msra.mxu0 0.0
  %3350 = vmatprep.subr.mxu0 0.0
  %3351 = vmatpush1.msra.mxu0 0.0
  %3352 = vmatprep.subr.mxu0 0.0
  %3353 = vmatpush1.msra.mxu0 0.0
  %3354 = vmatprep.subr.mxu0 0.0
  %3355 = vmatpush1.msra.mxu0 0.0
  %3356 = vmatprep.subr.mxu0 0.0
  %3357 = vmatpush1.msra.mxu0 0.0
  %3358 = vmatprep.subr.mxu0 0.0
  %3359 = vmatpush1.msra.mxu0 0.0
  %3360 = vmatprep.subr.mxu0 0.0
  %3361 = vmatpush1.msra.mxu0 0.0
  %3362 = vmatprep.subr.mxu0 0.0
  %3363 = vmatpush1.msra.mxu0 0.0
  %3364 = vmatprep.subr.mxu0 0.0
  %3365 = vmatpush1.msra.mxu0 0.0
  %3366 = vmatprep.subr.mxu0 0.0
  %3367 = vmatpush1.msra.mxu0 0.0
  %3368 = vmatprep.subr.mxu0 0.0
  %3369 = vmatpush1.msra.mxu0 0.0
  %3370 = vmatprep.subr.mxu0 0.0
  %3371 = vmatpush1.msra.mxu0 0.0
  %3372 = vmatprep.subr.mxu0 0.0
  %3373 = vmatpush1.msra.mxu0 0.0
  %3374 = vmatprep.subr.mxu0 0.0
  %3375 = vmatpush1.msra.mxu0 0.0
  %3376 = vmatprep.subr.mxu0 0.0
  %3377 = vmatpush1.msra.mxu0 0.0
  %3378 = vmatprep.subr.mxu0 0.0
  %3379 = vmatpush1.msra.mxu0 0.0
  %3380 = vmatprep.mubr.f32.mxu0 0.0
  %3381 = vmatmul.mubr.f32.gmra.mrb[0].mxu0 %v3293
  %v3382 = vpop.f32.mrb[0].mxu0
  %v3383 = vadd.f32 %v3290, %v3382
  %v3384 = vpop.f32.mrb[0].mxu0
  %3385 = vmatprep.mubr.f32.mxu0 0.0
  %3386 = vmatmul.mubr.f32.gmra.mrb[0].mxu0 %v3296
  %v3387 = vpop.f32.mrb[0].mxu0
  %v3388 = vadd.f32 %v3290, %v3387
  %v3389 = vpop.f32.mrb[0].mxu0
  %3390 = vmatprep.mubr.f32.mxu0 0.0
  %3391 = vmatmul.mubr.f32.gmra.mrb[0].mxu0 %v3299
  %v3392 = vpop.f32.mrb[0].mxu0
  %v3393 = vadd.f32 %v3290, %v3392
  %v3394 = vpop.f32.mrb[0].mxu0
  %3395 = vmatprep.mubr.f32.mxu0 0.0
  %3396 = vmatmul.mubr.f32.gmra.mrb[0].mxu0 %v3302
  %v3397 = vpop.f32.mrb[0].mxu0
  %v3398 = vadd.f32 %v3290, %v3397
  %v3399 = vpop.f32.mrb[0].mxu0
  %3400 = vmatprep.mubr.f32.mxu0 0.0
  %3401 = vmatmul.mubr.f32.gmra.mrb[0].mxu0 %v3305
  %v3402 = vpop.f32.mrb[0].mxu0
  %v3403 = vadd.f32 %v3290, %v3402
  %v3404 = vpop.f32.mrb[0].mxu0
  %3405 = vmatprep.mubr.f32.mxu0 0.0
  %3406 = vmatmul.mubr.f32.gmra.mrb[0].mxu0 %v3308
  %v3407 = vpop.f32.mrb[0].mxu0
  %v3408 = vadd.f32 %v3290, %v3407
  %v3409 = vpop.f32.mrb[0].mxu0
  %3410 = vmatprep.mubr.f32.mxu0 0.0
  %3411 = vmatmul.mubr.f32.gmra.mrb[0].mxu0 %v3311
  %v3412 = vpop.f32.mrb[0].mxu0
  %v3413 = vadd.f32 %v3290, %v3412
  %v3414 = vpop.f32.mrb[0].mxu0
  %3415 = vmatprep.mubr.f32.mxu0 0.0
  %3416 = vmatmul.mubr.f32.gmra.mrb[0].mxu0 %v3314
  %v3417 = vpop.f32.mrb[0].mxu0
  %v3418 = vadd.f32 %v3290, %v3417
  %v3419 = vpop.f32.mrb[0].mxu0
  %3420 = vdwg.mxu0
  %vm3421 = vcmp.gt.f32.partialorder %v3383, 0.0
  %vm3422 = vcmp.gt.f32.partialorder %v3388, 0.0
  %vm3423 = vcmp.gt.f32.partialorder %v3393, 0.0
  %vm3424 = vcmp.gt.f32.partialorder %v3398, 0.0
  %vm3425 = vcmp.gt.f32.partialorder %v3403, 0.0
  %vm3426 = vcmp.gt.f32.partialorder %v3408, 0.0
  %vm3427 = vcmp.gt.f32.partialorder %v3413, 0.0
  %vm3428 = vcmp.gt.f32.partialorder %v3418, 0.0
  %v3429 = vmin.f32 %v3383, 0.0
  %v3430 = vmin.f32 %v3388, 0.0
  %v3431 = vmin.f32 %v3393, 0.0
  %v3432 = vmin.f32 %v3398, 0.0
  %v3433 = vmin.f32 %v3403, 0.0
  %v3434 = vmin.f32 %v3408, 0.0
  %v3435 = vmin.f32 %v3413, 0.0
  %v3436 = vmin.f32 %v3418, 0.0
  %v3437 = vmul.f32 %v3429, 1.442695
  %v3438 = vpow.pop %v3437
  %v3439 = vmul.f32 %v3430, 1.442695
  %v3440 = vpow.pop %v3439
  %v3441 = vmul.f32 %v3431, 1.442695
  %v3442 = vpow.pop %v3441
  %v3443 = vmul.f32 %v3432, 1.442695
  %v3444 = vpow.pop %v3443
  %v3445 = vmul.f32 %v3433, 1.442695
  %v3446 = vpow.pop %v3445
  %v3447 = vmul.f32 %v3434, 1.442695
  %v3448 = vpow.pop %v3447
  %v3449 = vmul.f32 %v3435, 1.442695
  %v3450 = vpow.pop %v3449
  %v3451 = vmul.f32 %v3436, 1.442695
  %v3452 = vpow.pop %v3451
  %v3453 = vsub.f32 %v3438, 1.0
  %v3454 = vsub.f32 %v3440, 1.0
  %v3455 = vsub.f32 %v3442, 1.0
  %v3456 = vsub.f32 %v3444, 1.0
  %v3457 = vsub.f32 %v3446, 1.0
  %v3458 = vsub.f32 %v3448, 1.0
  %v3459 = vsub.f32 %v3450, 1.0
  %v3460 = vsub.f32 %v3452, 1.0
  %v3461 = vsel %vm3421, %v3383, %v3453
  %v3462 = vsel %vm3422, %v3388, %v3454
  %v3463 = vsel %vm3423, %v3393, %v3455
  %v3464 = vsel %vm3424, %v3398, %v3456
  %v3465 = vsel %vm3425, %v3403, %v3457
  %v3466 = vsel %vm3426, %v3408, %v3458
  %v3467 = vsel %vm3427, %v3413, %v3459
  %v3468 = vsel %vm3428, %v3418, %v3460
  %v3469 = vld [vmem:[%s1] sm:$0xff]
  %v3470 = vld [vmem:[%s1 + $0x8] sm:$0xff]
  %v3471 = vld [vmem:[%s1 + $0x10] sm:$0xff]
  %v3472 = vld [vmem:[%s1 + $0x18] sm:$0xff]
  %v3473 = vld [vmem:[%s1 + $0x20] sm:$0xff]
  %v3474 = vld [vmem:[%s1 + $0x28] sm:$0xff]
  %v3475 = vld [vmem:[%s1 + $0x30] sm:$0xff]
  %v3476 = vld [vmem:[%s1 + $0x38] sm:$0xff]
  %3478 = vset.pattern.permute.xlu0 0
  %3479 = vperm.xlu0 %3478, %v3469
  %v3480 = vpop.permute.xlu0 %3479
  %3483 = vset.pattern.permute.xlu0 0
  %3484 = vperm.xlu0 %3483, %v3470
  %v3485 = vpop.permute.xlu0 %3484
  %3488 = vset.pattern.permute.xlu0 0
  %3489 = vperm.xlu0 %3488, %v3471
  %v3490 = vpop.permute.xlu0 %3489
  %3493 = vset.pattern.permute.xlu0 0
  %3494 = vperm.xlu0 %3493, %v3472
  %v3495 = vpop.permute.xlu0 %3494
  %3498 = vset.pattern.permute.xlu0 0
  %3499 = vperm.xlu0 %3498, %v3473
  %v3500 = vpop.permute.xlu0 %3499
  %3503 = vset.pattern.permute.xlu0 0
  %3504 = vperm.xlu0 %3503, %v3474
  %v3505 = vpop.permute.xlu0 %3504
  %3508 = vset.pattern.permute.xlu0 0
  %3509 = vperm.xlu0 %3508, %v3475
  %v3510 = vpop.permute.xlu0 %3509
  %3513 = vset.pattern.permute.xlu0 0
  %3514 = vperm.xlu0 %3513, %v3476
  %v3515 = vpop.permute.xlu0 %3514
  %v3517 = vmul.f32 %v3461, %v3480
  %v3518 = vmul.f32 %v3462, %v3485
  %v3519 = vmul.f32 %v3463, %v3490
  %v3520 = vmul.f32 %v3464, %v3495
  %v3521 = vmul.f32 %v3465, %v3500
  %v3522 = vmul.f32 %v3466, %v3505
  %v3523 = vmul.f32 %v3467, %v3510
  %v3524 = vmul.f32 %v3468, %v3515
  %vm3525 = vcmask 15360
  %v3526 = vsel %vm3525, %v3517, 0.0
  %v3527 = vsel %vm3525, %v3518, 0.0
  %v3528 = vadd.f32 %v3526, %v3527
  %v3529 = vsel %vm3525, %v3519, 0.0
  %v3530 = vadd.f32 %v3528, %v3529
  %v3531 = vsel %vm3525, %v3520, 0.0
  %v3532 = vadd.f32 %v3530, %v3531
  %v3533 = vsel %vm3525, %v3521, 0.0
  %v3534 = vadd.f32 %v3532, %v3533
  %v3535 = vsel %vm3525, %v3522, 0.0
  %v3536 = vadd.f32 %v3534, %v3535
  %v3537 = vsel %vm3525, %v3523, 0.0
  %v3538 = vadd.f32 %v3536, %v3537
  %v3539 = vsel %vm3525, %v3524, 0.0
  %v3540 = vadd.f32 %v3538, %v3539
  %3541 = vadd.xlane.f32.xlu0 %v3540
  %v3542 = vpop.xlane.xlu0 %3541
  %v3543 = vrot.slane %v3542, 4
  %v3544 = vadd.f32 %v3542, %v3543
  %v3545 = vrot.slane %v3544, 2
  %v3546 = vadd.f32 %v3544, %v3545
  %v3547 = vrot.slane %v3546, 1
  %v3548 = vadd.f32 %v3546, %v3547
  %s3549 = vtos %v3548
  %v3550 = vrcp.pop 32.0
  %s3551 = vtos %v3550
  %s3552 = smul.f32 %s3549, %s3551
  %v3553 = vstv %s3552
  %v3554 = vsub.f32 %v3461, %v3553
  %v3555 = vsub.f32 %v3462, %v3553
  %v3556 = vsub.f32 %v3463, %v3553
  %v3557 = vsub.f32 %v3464, %v3553
  %v3558 = vsub.f32 %v3465, %v3553
  %v3559 = vsub.f32 %v3466, %v3553
  %v3560 = vsub.f32 %v3467, %v3553
  %v3561 = vsub.f32 %v3468, %v3553
  %v3562 = vmul.f32 %v3554, %v3554
  %v3563 = vmul.f32 %v3555, %v3555
  %v3564 = vmul.f32 %v3556, %v3556
  %v3565 = vmul.f32 %v3557, %v3557
  %v3566 = vmul.f32 %v3558, %v3558
  %v3567 = vmul.f32 %v3559, %v3559
  %v3568 = vmul.f32 %v3560, %v3560
  %v3569 = vmul.f32 %v3561, %v3561
  %v3570 = vmul.f32 %v3562, %v3480
  %v3571 = vmul.f32 %v3563, %v3485
  %v3572 = vmul.f32 %v3564, %v3490
  %v3573 = vmul.f32 %v3565, %v3495
  %v3574 = vmul.f32 %v3566, %v3500
  %v3575 = vmul.f32 %v3567, %v3505
  %v3576 = vmul.f32 %v3568, %v3510
  %v3577 = vmul.f32 %v3569, %v3515
  %v3578 = vsel %vm3525, %v3570, 0.0
  %v3579 = vsel %vm3525, %v3571, 0.0
  %v3580 = vadd.f32 %v3578, %v3579
  %v3581 = vsel %vm3525, %v3572, 0.0
  %v3582 = vadd.f32 %v3580, %v3581
  %v3583 = vsel %vm3525, %v3573, 0.0
  %v3584 = vadd.f32 %v3582, %v3583
  %v3585 = vsel %vm3525, %v3574, 0.0
  %v3586 = vadd.f32 %v3584, %v3585
  %v3587 = vsel %vm3525, %v3575, 0.0
  %v3588 = vadd.f32 %v3586, %v3587
  %v3589 = vsel %vm3525, %v3576, 0.0
  %v3590 = vadd.f32 %v3588, %v3589
  %v3591 = vsel %vm3525, %v3577, 0.0
  %v3592 = vadd.f32 %v3590, %v3591
  %3593 = vadd.xlane.f32.xlu0 %v3592
  %v3594 = vpop.xlane.xlu0 %3593
  %v3595 = vrot.slane %v3594, 4
  %v3596 = vadd.f32 %v3594, %v3595
  %v3597 = vrot.slane %v3596, 2
  %v3598 = vadd.f32 %v3596, %v3597
  %v3599 = vrot.slane %v3598, 1
  %v3600 = vadd.f32 %v3598, %v3599
  %s3601 = vtos %v3600
  %v3602 = vrcp.pop 31.0
  %s3603 = vtos %v3602
  %s3604 = smul.f32 %s3601, %s3603
  %v3605 = vstv %s3604
  %v3606 = vrsqrt.pop %v3605
  %s3607 = vtos %v3606
  %v3608 = vstv %s3607
  %v3609 = vmul.f32 %v3554, %v3608
  %v3610 = vmul.f32 %v3555, %v3608
  %v3611 = vmul.f32 %v3556, %v3608
  %v3612 = vmul.f32 %v3557, %v3608
  %v3613 = vmul.f32 %v3558, %v3608
  %v3614 = vmul.f32 %v3559, %v3608
  %v3615 = vmul.f32 %v3560, %v3608
  %v3616 = vmul.f32 %v3561, %v3608
  %3617 = vst.msk [vmem:[%s12] sm:$0xff] %vm3525, %v3609
  %3618 = vst.msk [vmem:[%s12 + $0x8] sm:$0xff] %vm3525, %v3610
  %3619 = vst.msk [vmem:[%s12 + $0x10] sm:$0xff] %vm3525, %v3611
  %3620 = vst.msk [vmem:[%s12 + $0x18] sm:$0xff] %vm3525, %v3612
  %3621 = vst.msk [vmem:[%s12 + $0x20] sm:$0xff] %vm3525, %v3613
  %3622 = vst.msk [vmem:[%s12 + $0x28] sm:$0xff] %vm3525, %v3614
  %3623 = vst.msk [vmem:[%s12 + $0x30] sm:$0xff] %vm3525, %v3615
  %3624 = vst.msk [vmem:[%s12 + $0x38] sm:$0xff] %vm3525, %v3616
  // Predicated region
  $region50: #{enc_forward.1} parent=0 // pred_check
    _
  $region51: #{enc_forward.1} parent=0 // pred_check_branch
    %3626 = sbr.rel (0) target = $region53
  $region52: #{enc_forward.1} parent=0 // pred_region
    _
  $region53: #{enc_forward.1} parent=0 // pred_fallthru
    _
  // Predicated region
  $region54: #{enc_forward.1} parent=0 // pred_check
    _
  $region55: #{enc_forward.1} parent=0 // pred_check_branch
    %3628 = sbr.rel (0) target = $region57
  $region56: #{enc_forward.1} parent=0 // pred_region
    _
  $region57: #{enc_forward.1} parent=0 // pred_fallthru
    _

</llo_original>
